<compile_context>
chip_gen: v7x
topology: tpu7x:2x2x1
jax: 0.10.0
libtpu: 0.0.40
codegen_flags: <defaults>
</compile_context>

<pallas_src>
import jax
import jax.numpy as jnp
from jax import lax
from jax.experimental import pallas as pl
from jax.experimental.pallas import tpu as pltpu


def _round_up(x, m):
    return (x + m - 1) // m * m


def _make_text_rnn_kernel(S, Bp, Hp):
    """Build the kernel body with static S / padded-B / padded-H baked in."""

    def kernel(x_ref, h0_ref, c0_ref, wih_ref, whh_ref, b_ref,
               wfc_ref, bfc_ref,
               out_ref, ht_ref, ct_ref,
               xp_sc, hall_sc):
        # ---- Batched input projection for ALL timesteps (off the serial
        # path).  Bias is folded in here, so it is broadcast exactly once.
        xp_sc[...] = (
            jnp.dot(x_ref[...], wih_ref[...],
                    preferred_element_type=jnp.float32)
            + b_ref[...])                                   # (S*Bp, 4Hp)

        # ---- Serial LSTM recurrence; only h @ W_hh^T per step.
        # PyTorch gate layout [i, f, g, o]; each gate block sits at a
        # 128-lane-aligned offset g*Hp, so slices below are full vregs.
        def step(t, carry):
            h, c = carry                                    # (Bp, Hp) each
            r = pl.multiple_of(t * Bp, Bp)                  # sublane-aligned row
            gates = (xp_sc[pl.ds(r, Bp), :]
                     + jnp.dot(h, whh_ref[...],
                               preferred_element_type=jnp.float32))  # (Bp, 4Hp)

            i_g = jax.nn.sigmoid(gates[:, 0 * Hp:1 * Hp])
            f_g = jax.nn.sigmoid(gates[:, 1 * Hp:2 * Hp])
            g_g = jnp.tanh(gates[:, 2 * Hp:3 * Hp])
            o_g = jax.nn.sigmoid(gates[:, 3 * Hp:4 * Hp])

            c_new = f_g * c + i_g * g_g
            h_new = o_g * jnp.tanh(c_new)

            hall_sc[pl.ds(r, Bp), :] = h_new                # stash for the FC
            return h_new, c_new

        h_last, c_last = lax.fori_loop(
            0, S, step, (h0_ref[...], c0_ref[...]), unroll=True)

        # Final (h, c): stored once, after the loop.
        ht_ref[...] = h_last
        ct_ref[...] = c_last

        # TODO(synk): nn.Dropout(0.2) is identity in eval mode; training-mode
        # dropout would need pltpu.prng_seed / prng_random_bits here.

        # ---- Single batched FC over all timesteps; one lane-dense store.
        out_ref[...] = (
            jnp.dot(hall_sc[...], wfc_ref[...],
                    preferred_element_type=jnp.float32)
            + bfc_ref[...])                                 # (S*Bp, Vp)

    return kernel


def text_rnn_forward(x_ids, hidden, params):
    """x_ids: (S, B, 1) int32; hidden: (h0, c0) each (1, B, H) float32."""
    h0, c0 = hidden
    emb = params["embedding"]                     # (V, E)
    S, B, _ = x_ids.shape
    V, E = emb.shape
    H = h0.shape[-1]

    Bp = _round_up(max(B, 8), 8)                  # sublane granularity
    Hp = _round_up(H, 128)                        # lane granularity
    Vp = _round_up(V, 128)

    # Embedding lookup + squeeze(2)  (glue, plain JAX)
    x_emb = emb[x_ids[..., 0]]                    # (S, B, E) float32

    # ---- Pad batch to Bp and flatten time into rows: (S*Bp, E).
    x_p = jnp.zeros((S, Bp, E), jnp.float32).at[:, :B, :].set(x_emb)
    x_p = x_p.reshape(S * Bp, E)

    h0_p = jnp.zeros((Bp, Hp), jnp.float32).at[:B, :H].set(h0[0])
    c0_p = jnp.zeros((Bp, Hp), jnp.float32).at[:B, :H].set(c0[0])

    # ---- Gate-block padding: each H-wide [i,f,g,o] block goes to a
    # 128-lane-aligned offset g*Hp; padded columns/rows are zero so padded
    # h/c lanes stay exactly zero through the recurrence.
    def pad_gate_cols(w_t):                       # (rows, 4H) -> (rows, 4Hp)
        rows = w_t.shape[0]
        out = jnp.zeros((rows, 4 * Hp), jnp.float32)
        for g in range(4):
            out = out.at[:, g * Hp:g * Hp + H].set(w_t[:, g * H:(g + 1) * H])
        return out

    wih_p = pad_gate_cols(params["w_ih"].T)                               # (E, 4Hp)
    whh_p = jnp.zeros((Hp, 4 * Hp), jnp.float32).at[:H, :].set(
        pad_gate_cols(params["w_hh"].T))                                  # (Hp, 4Hp)
    b_p = pad_gate_cols((params["b_ih"] + params["b_hh"]).reshape(1, 4 * H))

    wfc_p = jnp.zeros((Hp, Vp), jnp.float32).at[:H, :V].set(params["w_fc"].T)
    bfc_p = jnp.zeros((1, Vp), jnp.float32).at[:, :V].set(
        params["b_fc"].reshape(1, V))

    kernel = _make_text_rnn_kernel(S, Bp, Hp)

    out_shapes = (
        jax.ShapeDtypeStruct((S * Bp, Vp), jnp.float32),   # logits (padded)
        jax.ShapeDtypeStruct((Bp, Hp), jnp.float32),       # ht (padded)
        jax.ShapeDtypeStruct((Bp, Hp), jnp.float32),       # ct (padded)
    )

    grid_spec = pltpu.PrefetchScalarGridSpec(
        num_scalar_prefetch=0,
        grid=(1,),                                         # single invocation
        in_specs=[
            pl.BlockSpec((S * Bp, E), lambda i: (0, 0)),       # x_emb (flat)
            pl.BlockSpec((Bp, Hp), lambda i: (0, 0)),          # h0
            pl.BlockSpec((Bp, Hp), lambda i: (0, 0)),          # c0
            pl.BlockSpec((E, 4 * Hp), lambda i: (0, 0)),       # W_ih^T
            pl.BlockSpec((Hp, 4 * Hp), lambda i: (0, 0)),      # W_hh^T
            pl.BlockSpec((1, 4 * Hp), lambda i: (0, 0)),       # b_ih + b_hh
            pl.BlockSpec((Hp, Vp), lambda i: (0, 0)),          # W_fc^T
            pl.BlockSpec((1, Vp), lambda i: (0, 0)),           # b_fc
        ],
        out_specs=[
            pl.BlockSpec((S * Bp, Vp), lambda i: (0, 0)),      # logits
            pl.BlockSpec((Bp, Hp), lambda i: (0, 0)),          # ht
            pl.BlockSpec((Bp, Hp), lambda i: (0, 0)),          # ct
        ],
        scratch_shapes=[
            pltpu.VMEM((S * Bp, 4 * Hp), jnp.float32),         # x-projection
            pltpu.VMEM((S * Bp, Hp), jnp.float32),             # h for all t
        ],
    )

    logits_p, ht_p, ct_p = pl.pallas_call(
        kernel,
        out_shape=out_shapes,
        grid_spec=grid_spec,
        compiler_params=pltpu.CompilerParams(
            dimension_semantics=("arbitrary",)),
    )(x_p, h0_p, c0_p, wih_p, whh_p, b_p, wfc_p, bfc_p)

    logits = logits_p.reshape(S, Bp, Vp)[:, :B, :V]
    ht = ht_p[:B, :H][None]
    ct = ct_p[:B, :H][None]
    return logits, (ht, ct)


def _init_params(key, input_size, hidden_size, embedding_size):
    """Deterministic parameter init (PyTorch-style uniform ranges)."""
    ks = jax.random.split(key, 7)
    H, E, V = hidden_size, embedding_size, input_size
    bound = 1.0 / jnp.sqrt(jnp.float32(H))
    u = lambda k, shp, b: jax.random.uniform(k, shp, jnp.float32, -b, b)
    return {
        "embedding": jax.random.normal(ks[0], (V, E), jnp.float32),
        "w_ih": u(ks[1], (4 * H, E), bound),
        "w_hh": u(ks[2], (4 * H, H), bound),
        "b_ih": u(ks[3], (4 * H,), bound),
        "b_hh": u(ks[4], (4 * H,), bound),
        "w_fc": u(ks[5], (V, H), bound),
        "b_fc": u(ks[6], (V,), bound),
    }


def _reference_forward(x_ids, hidden, params):
    """Pure-JAX reference of the same forward (for sanity checking)."""
    h0, c0 = hidden
    emb = params["embedding"]
    x = emb[x_ids[..., 0]]                       # (S, B, E)
    wih, whh = params["w_ih"], params["w_hh"]
    b = params["b_ih"] + params["b_hh"]

    def step(carry, x_t):
        h, c = carry
        gates = x_t @ wih.T + h @ whh.T + b
        i, f, g, o = jnp.split(gates, 4, axis=-1)
        c_new = jax.nn.sigmoid(f) * c + jax.nn.sigmoid(i) * jnp.tanh(g)
        h_new = jax.nn.sigmoid(o) * jnp.tanh(c_new)
        return (h_new, c_new), h_new

    (hT, cT), outs = lax.scan(step, (h0[0], c0[0]), x)
    logits = outs @ params["w_fc"].T + params["b_fc"]
    return logits, (hT[None], cT[None])


if __name__ == "__main__":
    # Small shapes consistent with the module's forward.
    S, B = 8, 2
    input_size, hidden_size, embedding_size = 64, 32, 16

    key = jax.random.PRNGKey(0)
    k_par, k_x = jax.random.split(key)
    params = _init_params(k_par, input_size, hidden_size, embedding_size)

    x_ids = jax.random.randint(k_x, (S, B, 1), 0, input_size, jnp.int32)
    hidden = (jnp.zeros((1, B, hidden_size), jnp.float32),
              jnp.zeros((1, B, hidden_size), jnp.float32))

    logits, (ht, ct) = text_rnn_forward(x_ids, hidden, params)
    jax.block_until_ready(logits)
    jax.block_until_ready(ht)
    jax.block_until_ready(ct)

    ref_logits, (ref_ht, ref_ct) = _reference_forward(x_ids, hidden, params)
    assert jnp.allclose(logits, ref_logits, atol=1e-4, rtol=1e-4)
    assert jnp.allclose(ht, ref_ht, atol=1e-4, rtol=1e-4)
    assert jnp.allclose(ct, ref_ct, atol=1e-4, rtol=1e-4)

    print("KERNEL_OK")
</pallas_src>

<mosaic_0001>
module attributes {stable_mosaic.version = 11 : i64} {
  func.func @kernel(%arg0: i32, %arg1: memref<64x16xf32, #tpu.memory_space<vmem>>, %arg2: memref<8x128xf32, #tpu.memory_space<vmem>>, %arg3: memref<8x128xf32, #tpu.memory_space<vmem>>, %arg4: memref<16x512xf32, #tpu.memory_space<vmem>>, %arg5: memref<128x512xf32, #tpu.memory_space<vmem>>, %arg6: memref<1x512xf32, #tpu.memory_space<vmem>>, %arg7: memref<128x128xf32, #tpu.memory_space<vmem>>, %arg8: memref<1x128xf32, #tpu.memory_space<vmem>>, %arg9: memref<64x128xf32, #tpu.memory_space<vmem>>, %arg10: memref<8x128xf32, #tpu.memory_space<vmem>>, %arg11: memref<8x128xf32, #tpu.memory_space<vmem>>, %arg12: memref<64x512xf32, #tpu.memory_space<vmem>>, %arg13: memref<64x128xf32, #tpu.memory_space<vmem>>) attributes {dimension_semantics = [#tpu.dimension_semantics<arbitrary>], iteration_bounds = array<i64: 1>, scalar_prefetch = 0 : i64, scratch_operands = 2 : i64, tpu.core_type = #tpu.core_type<tc>, window_params = [{pipeline_mode = #tpu.pipeline_mode<synchronous>, transform_indices = @transform_0, window_bounds = array<i64: 64, 16>}, {pipeline_mode = #tpu.pipeline_mode<synchronous>, transform_indices = @transform_1, window_bounds = array<i64: 8, 128>}, {pipeline_mode = #tpu.pipeline_mode<synchronous>, transform_indices = @transform_2, window_bounds = array<i64: 8, 128>}, {pipeline_mode = #tpu.pipeline_mode<synchronous>, transform_indices = @transform_3, window_bounds = array<i64: 16, 512>}, {pipeline_mode = #tpu.pipeline_mode<synchronous>, transform_indices = @transform_4, window_bounds = array<i64: 128, 512>}, {pipeline_mode = #tpu.pipeline_mode<synchronous>, transform_indices = @transform_5, window_bounds = array<i64: 1, 512>}, {pipeline_mode = #tpu.pipeline_mode<synchronous>, transform_indices = @transform_6, window_bounds = array<i64: 128, 128>}, {pipeline_mode = #tpu.pipeline_mode<synchronous>, transform_indices = @transform_7, window_bounds = array<i64: 1, 128>}, {pipeline_mode = #tpu.pipeline_mode<synchronous>, transform_indices = @transform_8, window_bounds = array<i64: 64, 128>}, {pipeline_mode = #tpu.pipeline_mode<synchronous>, transform_indices = @transform_9, window_bounds = array<i64: 8, 128>}, {pipeline_mode = #tpu.pipeline_mode<synchronous>, transform_indices = @transform_10, window_bounds = array<i64: 8, 128>}]} {
    %c0 = arith.constant 0 : index
    %c0_0 = arith.constant 0 : index
    %0 = vector.load %arg1[%c0, %c0_0] : memref<64x16xf32, #tpu.memory_space<vmem>>, vector<64x16xf32>
    %c0_1 = arith.constant 0 : index
    %c0_2 = arith.constant 0 : index
    %1 = vector.load %arg4[%c0_1, %c0_2] : memref<16x512xf32, #tpu.memory_space<vmem>>, vector<16x512xf32>
    %cst = arith.constant dense<0.000000e+00> : vector<64x512xf32>
    %2 = tpu.matmul %0, %1, %cst {dimension_numbers = #tpu.dot_dimension_numbers<[1], [0], [0], [1], [0, 0, 1, 1], [], []>} : vector<64x16xf32>, vector<16x512xf32>, vector<64x512xf32> -> vector<64x512xf32>
    %c0_3 = arith.constant 0 : index
    %c0_4 = arith.constant 0 : index
    %3 = vector.load %arg6[%c0_3, %c0_4] : memref<1x512xf32, #tpu.memory_space<vmem>>, vector<1x512xf32>
    %4 = vector.broadcast %3 : vector<1x512xf32> to vector<64x512xf32>
    %5 = arith.addf %2, %4 : vector<64x512xf32>
    %c0_5 = arith.constant 0 : index
    %c0_6 = arith.constant 0 : index
    %6 = vector.load %arg12[%c0_5, %c0_6] : memref<64x512xf32, #tpu.memory_space<vmem>>, vector<64x512xf32>
    tpu.vector_store %arg12[%c0_5, %c0_6], %5 {strides = array<i32>} : memref<64x512xf32, #tpu.memory_space<vmem>>, vector<64x512xf32>,
    %c0_7 = arith.constant 0 : index
    %c0_8 = arith.constant 0 : index
    %7 = vector.load %arg2[%c0_7, %c0_8] : memref<8x128xf32, #tpu.memory_space<vmem>>, vector<8x128xf32>
    %c0_9 = arith.constant 0 : index
    %c0_10 = arith.constant 0 : index
    %8 = vector.load %arg3[%c0_9, %c0_10] : memref<8x128xf32, #tpu.memory_space<vmem>>, vector<8x128xf32>
    %c0_i32 = arith.constant 0 : i32
    %c8_i32 = arith.constant 8 : i32
    %9 = arith.muli %c0_i32, %c8_i32 : i32
    %10 = tpu.assume_multiple %9, 8 : i32
    %11 = arith.index_cast %10 : i32 to index
    %c0_11 = arith.constant 0 : index
    %12 = vector.load %arg12[%11, %c0_11] : memref<64x512xf32, #tpu.memory_space<vmem>>, vector<8x512xf32>
    %c0_12 = arith.constant 0 : index
    %c0_13 = arith.constant 0 : index
    %13 = vector.load %arg5[%c0_12, %c0_13] : memref<128x512xf32, #tpu.memory_space<vmem>>, vector<128x512xf32>
    %cst_14 = arith.constant dense<0.000000e+00> : vector<8x512xf32>
    %14 = tpu.matmul %7, %13, %cst_14 {dimension_numbers = #tpu.dot_dimension_numbers<[1], [0], [0], [1], [0, 0, 1, 1], [], []>} : vector<8x128xf32>, vector<128x512xf32>, vector<8x512xf32> -> vector<8x512xf32>
    %15 = arith.addf %12, %14 : vector<8x512xf32>
    %16 = vector.extract_strided_slice %15 {offsets = [0, 0], sizes = [8, 128], strides = [1, 1]} : vector<8x512xf32> to vector<8x128xf32>
    %17 = arith.negf %16 : vector<8x128xf32>
    %18 = math.exp %17 : vector<8x128xf32>
    %cst_15 = arith.constant 1.000000e+00 : f32
    %19 = vector.broadcast %cst_15 : f32 to vector<8x128xf32>
    %20 = arith.addf %19, %18 : vector<8x128xf32>
    %21 = arith.divf %19, %20 : vector<8x128xf32>
    %22 = vector.extract_strided_slice %15 {offsets = [0, 128], sizes = [8, 128], strides = [1, 1]} : vector<8x512xf32> to vector<8x128xf32>
    %23 = arith.negf %22 : vector<8x128xf32>
    %24 = math.exp %23 : vector<8x128xf32>
    %cst_16 = arith.constant 1.000000e+00 : f32
    %25 = vector.broadcast %cst_16 : f32 to vector<8x128xf32>
    %26 = arith.addf %25, %24 : vector<8x128xf32>
    %27 = arith.divf %25, %26 : vector<8x128xf32>
    %28 = vector.extract_strided_slice %15 {offsets = [0, 256], sizes = [8, 128], strides = [1, 1]} : vector<8x512xf32> to vector<8x128xf32>
    %29 = math.tanh %28 : vector<8x128xf32>
    %30 = vector.extract_strided_slice %15 {offsets = [0, 384], sizes = [8, 128], strides = [1, 1]} : vector<8x512xf32> to vector<8x128xf32>
    %31 = arith.negf %30 : vector<8x128xf32>
    %32 = math.exp %31 : vector<8x128xf32>
    %cst_17 = arith.constant 1.000000e+00 : f32
    %33 = vector.broadcast %cst_17 : f32 to vector<8x128xf32>
    %34 = arith.addf %33, %32 : vector<8x128xf32>
    %35 = arith.divf %33, %34 : vector<8x128xf32>
    %36 = arith.mulf %27, %8 : vector<8x128xf32>
    %37 = arith.mulf %21, %29 : vector<8x128xf32>
    %38 = arith.addf %36, %37 : vector<8x128xf32>
    %39 = math.tanh %38 : vector<8x128xf32>
    %40 = arith.mulf %35, %39 : vector<8x128xf32>
    %41 = arith.index_cast %10 : i32 to index
    %c0_18 = arith.constant 0 : index
    %42 = vector.load %arg13[%41, %c0_18] : memref<64x128xf32, #tpu.memory_space<vmem>>, vector<8x128xf32>
    tpu.vector_store %arg13[%41, %c0_18], %40 {strides = array<i32>} : memref<64x128xf32, #tpu.memory_space<vmem>>, vector<8x128xf32>,
    %c1_i32 = arith.constant 1 : i32
    %c8_i32_19 = arith.constant 8 : i32
    %43 = arith.muli %c1_i32, %c8_i32_19 : i32
    %44 = tpu.assume_multiple %43, 8 : i32
    %45 = arith.index_cast %44 : i32 to index
    %c0_20 = arith.constant 0 : index
    %46 = vector.load %arg12[%45, %c0_20] : memref<64x512xf32, #tpu.memory_space<vmem>>, vector<8x512xf32>
    %c0_21 = arith.constant 0 : index
    %c0_22 = arith.constant 0 : index
    %47 = vector.load %arg5[%c0_21, %c0_22] : memref<128x512xf32, #tpu.memory_space<vmem>>, vector<128x512xf32>
    %cst_23 = arith.constant dense<0.000000e+00> : vector<8x512xf32>
    %48 = tpu.matmul %40, %47, %cst_23 {dimension_numbers = #tpu.dot_dimension_numbers<[1], [0], [0], [1], [0, 0, 1, 1], [], []>} : vector<8x128xf32>, vector<128x512xf32>, vector<8x512xf32> -> vector<8x512xf32>
    %49 = arith.addf %46, %48 : vector<8x512xf32>
    %50 = vector.extract_strided_slice %49 {offsets = [0, 0], sizes = [8, 128], strides = [1, 1]} : vector<8x512xf32> to vector<8x128xf32>
    %51 = arith.negf %50 : vector<8x128xf32>
    %52 = math.exp %51 : vector<8x128xf32>
    %cst_24 = arith.constant 1.000000e+00 : f32
    %53 = vector.broadcast %cst_24 : f32 to vector<8x128xf32>
    %54 = arith.addf %53, %52 : vector<8x128xf32>
    %55 = arith.divf %53, %54 : vector<8x128xf32>
    %56 = vector.extract_strided_slice %49 {offsets = [0, 128], sizes = [8, 128], strides = [1, 1]} : vector<8x512xf32> to vector<8x128xf32>
    %57 = arith.negf %56 : vector<8x128xf32>
    %58 = math.exp %57 : vector<8x128xf32>
    %cst_25 = arith.constant 1.000000e+00 : f32
    %59 = vector.broadcast %cst_25 : f32 to vector<8x128xf32>
    %60 = arith.addf %59, %58 : vector<8x128xf32>
    %61 = arith.divf %59, %60 : vector<8x128xf32>
    %62 = vector.extract_strided_slice %49 {offsets = [0, 256], sizes = [8, 128], strides = [1, 1]} : vector<8x512xf32> to vector<8x128xf32>
    %63 = math.tanh %62 : vector<8x128xf32>
    %64 = vector.extract_strided_slice %49 {offsets = [0, 384], sizes = [8, 128], strides = [1, 1]} : vector<8x512xf32> to vector<8x128xf32>
    %65 = arith.negf %64 : vector<8x128xf32>
    %66 = math.exp %65 : vector<8x128xf32>
    %cst_26 = arith.constant 1.000000e+00 : f32
    %67 = vector.broadcast %cst_26 : f32 to vector<8x128xf32>
    %68 = arith.addf %67, %66 : vector<8x128xf32>
    %69 = arith.divf %67, %68 : vector<8x128xf32>
    %70 = arith.mulf %61, %38 : vector<8x128xf32>
    %71 = arith.mulf %55, %63 : vector<8x128xf32>
    %72 = arith.addf %70, %71 : vector<8x128xf32>
    %73 = math.tanh %72 : vector<8x128xf32>
    %74 = arith.mulf %69, %73 : vector<8x128xf32>
    %75 = arith.index_cast %44 : i32 to index
    %c0_27 = arith.constant 0 : index
    %76 = vector.load %arg13[%75, %c0_27] : memref<64x128xf32, #tpu.memory_space<vmem>>, vector<8x128xf32>
    tpu.vector_store %arg13[%75, %c0_27], %74 {strides = array<i32>} : memref<64x128xf32, #tpu.memory_space<vmem>>, vector<8x128xf32>,
    %c2_i32 = arith.constant 2 : i32
    %c8_i32_28 = arith.constant 8 : i32
    %77 = arith.muli %c2_i32, %c8_i32_28 : i32
    %78 = tpu.assume_multiple %77, 8 : i32
    %79 = arith.index_cast %78 : i32 to index
    %c0_29 = arith.constant 0 : index
    %80 = vector.load %arg12[%79, %c0_29] : memref<64x512xf32, #tpu.memory_space<vmem>>, vector<8x512xf32>
    %c0_30 = arith.constant 0 : index
    %c0_31 = arith.constant 0 : index
    %81 = vector.load %arg5[%c0_30, %c0_31] : memref<128x512xf32, #tpu.memory_space<vmem>>, vector<128x512xf32>
    %cst_32 = arith.constant dense<0.000000e+00> : vector<8x512xf32>
    %82 = tpu.matmul %74, %81, %cst_32 {dimension_numbers = #tpu.dot_dimension_numbers<[1], [0], [0], [1], [0, 0, 1, 1], [], []>} : vector<8x128xf32>, vector<128x512xf32>, vector<8x512xf32> -> vector<8x512xf32>
    %83 = arith.addf %80, %82 : vector<8x512xf32>
    %84 = vector.extract_strided_slice %83 {offsets = [0, 0], sizes = [8, 128], strides = [1, 1]} : vector<8x512xf32> to vector<8x128xf32>
    %85 = arith.negf %84 : vector<8x128xf32>
    %86 = math.exp %85 : vector<8x128xf32>
    %cst_33 = arith.constant 1.000000e+00 : f32
    %87 = vector.broadcast %cst_33 : f32 to vector<8x128xf32>
    %88 = arith.addf %87, %86 : vector<8x128xf32>
    %89 = arith.divf %87, %88 : vector<8x128xf32>
    %90 = vector.extract_strided_slice %83 {offsets = [0, 128], sizes = [8, 128], strides = [1, 1]} : vector<8x512xf32> to vector<8x128xf32>
    %91 = arith.negf %90 : vector<8x128xf32>
    %92 = math.exp %91 : vector<8x128xf32>
    %cst_34 = arith.constant 1.000000e+00 : f32
    %93 = vector.broadcast %cst_34 : f32 to vector<8x128xf32>
    %94 = arith.addf %93, %92 : vector<8x128xf32>
    %95 = arith.divf %93, %94 : vector<8x128xf32>
    %96 = vector.extract_strided_slice %83 {offsets = [0, 256], sizes = [8, 128], strides = [1, 1]} : vector<8x512xf32> to vector<8x128xf32>
    %97 = math.tanh %96 : vector<8x128xf32>
    %98 = vector.extract_strided_slice %83 {offsets = [0, 384], sizes = [8, 128], strides = [1, 1]} : vector<8x512xf32> to vector<8x128xf32>
    %99 = arith.negf %98 : vector<8x128xf32>
    %100 = math.exp %99 : vector<8x128xf32>
    %cst_35 = arith.constant 1.000000e+00 : f32
    %101 = vector.broadcast %cst_35 : f32 to vector<8x128xf32>
    %102 = arith.addf %101, %100 : vector<8x128xf32>
    %103 = arith.divf %101, %102 : vector<8x128xf32>
    %104 = arith.mulf %95, %72 : vector<8x128xf32>
    %105 = arith.mulf %89, %97 : vector<8x128xf32>
    %106 = arith.addf %104, %105 : vector<8x128xf32>
    %107 = math.tanh %106 : vector<8x128xf32>
    %108 = arith.mulf %103, %107 : vector<8x128xf32>
    %109 = arith.index_cast %78 : i32 to index
    %c0_36 = arith.constant 0 : index
    %110 = vector.load %arg13[%109, %c0_36] : memref<64x128xf32, #tpu.memory_space<vmem>>, vector<8x128xf32>
    tpu.vector_store %arg13[%109, %c0_36], %108 {strides = array<i32>} : memref<64x128xf32, #tpu.memory_space<vmem>>, vector<8x128xf32>,
    %c3_i32 = arith.constant 3 : i32
    %c8_i32_37 = arith.constant 8 : i32
    %111 = arith.muli %c3_i32, %c8_i32_37 : i32
    %112 = tpu.assume_multiple %111, 8 : i32
    %113 = arith.index_cast %112 : i32 to index
    %c0_38 = arith.constant 0 : index
    %114 = vector.load %arg12[%113, %c0_38] : memref<64x512xf32, #tpu.memory_space<vmem>>, vector<8x512xf32>
    %c0_39 = arith.constant 0 : index
    %c0_40 = arith.constant 0 : index
    %115 = vector.load %arg5[%c0_39, %c0_40] : memref<128x512xf32, #tpu.memory_space<vmem>>, vector<128x512xf32>
    %cst_41 = arith.constant dense<0.000000e+00> : vector<8x512xf32>
    %116 = tpu.matmul %108, %115, %cst_41 {dimension_numbers = #tpu.dot_dimension_numbers<[1], [0], [0], [1], [0, 0, 1, 1], [], []>} : vector<8x128xf32>, vector<128x512xf32>, vector<8x512xf32> -> vector<8x512xf32>
    %117 = arith.addf %114, %116 : vector<8x512xf32>
    %118 = vector.extract_strided_slice %117 {offsets = [0, 0], sizes = [8, 128], strides = [1, 1]} : vector<8x512xf32> to vector<8x128xf32>
    %119 = arith.negf %118 : vector<8x128xf32>
    %120 = math.exp %119 : vector<8x128xf32>
    %cst_42 = arith.constant 1.000000e+00 : f32
    %121 = vector.broadcast %cst_42 : f32 to vector<8x128xf32>
    %122 = arith.addf %121, %120 : vector<8x128xf32>
    %123 = arith.divf %121, %122 : vector<8x128xf32>
    %124 = vector.extract_strided_slice %117 {offsets = [0, 128], sizes = [8, 128], strides = [1, 1]} : vector<8x512xf32> to vector<8x128xf32>
    %125 = arith.negf %124 : vector<8x128xf32>
    %126 = math.exp %125 : vector<8x128xf32>
    %cst_43 = arith.constant 1.000000e+00 : f32
    %127 = vector.broadcast %cst_43 : f32 to vector<8x128xf32>
    %128 = arith.addf %127, %126 : vector<8x128xf32>
    %129 = arith.divf %127, %128 : vector<8x128xf32>
    %130 = vector.extract_strided_slice %117 {offsets = [0, 256], sizes = [8, 128], strides = [1, 1]} : vector<8x512xf32> to vector<8x128xf32>
    %131 = math.tanh %130 : vector<8x128xf32>
    %132 = vector.extract_strided_slice %117 {offsets = [0, 384], sizes = [8, 128], strides = [1, 1]} : vector<8x512xf32> to vector<8x128xf32>
    %133 = arith.negf %132 : vector<8x128xf32>
    %134 = math.exp %133 : vector<8x128xf32>
    %cst_44 = arith.constant 1.000000e+00 : f32
    %135 = vector.broadcast %cst_44 : f32 to vector<8x128xf32>
    %136 = arith.addf %135, %134 : vector<8x128xf32>
    %137 = arith.divf %135, %136 : vector<8x128xf32>
    %138 = arith.mulf %129, %106 : vector<8x128xf32>
    %139 = arith.mulf %123, %131 : vector<8x128xf32>
    %140 = arith.addf %138, %139 : vector<8x128xf32>
    %141 = math.tanh %140 : vector<8x128xf32>
    %142 = arith.mulf %137, %141 : vector<8x128xf32>
    %143 = arith.index_cast %112 : i32 to index
    %c0_45 = arith.constant 0 : index
    %144 = vector.load %arg13[%143, %c0_45] : memref<64x128xf32, #tpu.memory_space<vmem>>, vector<8x128xf32>
    tpu.vector_store %arg13[%143, %c0_45], %142 {strides = array<i32>} : memref<64x128xf32, #tpu.memory_space<vmem>>, vector<8x128xf32>,
    %c4_i32 = arith.constant 4 : i32
    %c8_i32_46 = arith.constant 8 : i32
    %145 = arith.muli %c4_i32, %c8_i32_46 : i32
    %146 = tpu.assume_multiple %145, 8 : i32
    %147 = arith.index_cast %146 : i32 to index
    %c0_47 = arith.constant 0 : index
    %148 = vector.load %arg12[%147, %c0_47] : memref<64x512xf32, #tpu.memory_space<vmem>>, vector<8x512xf32>
    %c0_48 = arith.constant 0 : index
    %c0_49 = arith.constant 0 : index
    %149 = vector.load %arg5[%c0_48, %c0_49] : memref<128x512xf32, #tpu.memory_space<vmem>>, vector<128x512xf32>
    %cst_50 = arith.constant dense<0.000000e+00> : vector<8x512xf32>
    %150 = tpu.matmul %142, %149, %cst_50 {dimension_numbers = #tpu.dot_dimension_numbers<[1], [0], [0], [1], [0, 0, 1, 1], [], []>} : vector<8x128xf32>, vector<128x512xf32>, vector<8x512xf32> -> vector<8x512xf32>
    %151 = arith.addf %148, %150 : vector<8x512xf32>
    %152 = vector.extract_strided_slice %151 {offsets = [0, 0], sizes = [8, 128], strides = [1, 1]} : vector<8x512xf32> to vector<8x128xf32>
    %153 = arith.negf %152 : vector<8x128xf32>
    %154 = math.exp %153 : vector<8x128xf32>
    %cst_51 = arith.constant 1.000000e+00 : f32
    %155 = vector.broadcast %cst_51 : f32 to vector<8x128xf32>
    %156 = arith.addf %155, %154 : vector<8x128xf32>
    %157 = arith.divf %155, %156 : vector<8x128xf32>
    %158 = vector.extract_strided_slice %151 {offsets = [0, 128], sizes = [8, 128], strides = [1, 1]} : vector<8x512xf32> to vector<8x128xf32>
    %159 = arith.negf %158 : vector<8x128xf32>
    %160 = math.exp %159 : vector<8x128xf32>
    %cst_52 = arith.constant 1.000000e+00 : f32
    %161 = vector.broadcast %cst_52 : f32 to vector<8x128xf32>
    %162 = arith.addf %161, %160 : vector<8x128xf32>
    %163 = arith.divf %161, %162 : vector<8x128xf32>
    %164 = vector.extract_strided_slice %151 {offsets = [0, 256], sizes = [8, 128], strides = [1, 1]} : vector<8x512xf32> to vector<8x128xf32>
    %165 = math.tanh %164 : vector<8x128xf32>
    %166 = vector.extract_strided_slice %151 {offsets = [0, 384], sizes = [8, 128], strides = [1, 1]} : vector<8x512xf32> to vector<8x128xf32>
    %167 = arith.negf %166 : vector<8x128xf32>
    %168 = math.exp %167 : vector<8x128xf32>
    %cst_53 = arith.constant 1.000000e+00 : f32
    %169 = vector.broadcast %cst_53 : f32 to vector<8x128xf32>
    %170 = arith.addf %169, %168 : vector<8x128xf32>
    %171 = arith.divf %169, %170 : vector<8x128xf32>
    %172 = arith.mulf %163, %140 : vector<8x128xf32>
    %173 = arith.mulf %157, %165 : vector<8x128xf32>
    %174 = arith.addf %172, %173 : vector<8x128xf32>
    %175 = math.tanh %174 : vector<8x128xf32>
    %176 = arith.mulf %171, %175 : vector<8x128xf32>
    %177 = arith.index_cast %146 : i32 to index
    %c0_54 = arith.constant 0 : index
    %178 = vector.load %arg13[%177, %c0_54] : memref<64x128xf32, #tpu.memory_space<vmem>>, vector<8x128xf32>
    tpu.vector_store %arg13[%177, %c0_54], %176 {strides = array<i32>} : memref<64x128xf32, #tpu.memory_space<vmem>>, vector<8x128xf32>,
    %c5_i32 = arith.constant 5 : i32
    %c8_i32_55 = arith.constant 8 : i32
    %179 = arith.muli %c5_i32, %c8_i32_55 : i32
    %180 = tpu.assume_multiple %179, 8 : i32
    %181 = arith.index_cast %180 : i32 to index
    %c0_56 = arith.constant 0 : index
    %182 = vector.load %arg12[%181, %c0_56] : memref<64x512xf32, #tpu.memory_space<vmem>>, vector<8x512xf32>
    %c0_57 = arith.constant 0 : index
    %c0_58 = arith.constant 0 : index
    %183 = vector.load %arg5[%c0_57, %c0_58] : memref<128x512xf32, #tpu.memory_space<vmem>>, vector<128x512xf32>
    %cst_59 = arith.constant dense<0.000000e+00> : vector<8x512xf32>
    %184 = tpu.matmul %176, %183, %cst_59 {dimension_numbers = #tpu.dot_dimension_numbers<[1], [0], [0], [1], [0, 0, 1, 1], [], []>} : vector<8x128xf32>, vector<128x512xf32>, vector<8x512xf32> -> vector<8x512xf32>
    %185 = arith.addf %182, %184 : vector<8x512xf32>
    %186 = vector.extract_strided_slice %185 {offsets = [0, 0], sizes = [8, 128], strides = [1, 1]} : vector<8x512xf32> to vector<8x128xf32>
    %187 = arith.negf %186 : vector<8x128xf32>
    %188 = math.exp %187 : vector<8x128xf32>
    %cst_60 = arith.constant 1.000000e+00 : f32
    %189 = vector.broadcast %cst_60 : f32 to vector<8x128xf32>
    %190 = arith.addf %189, %188 : vector<8x128xf32>
    %191 = arith.divf %189, %190 : vector<8x128xf32>
    %192 = vector.extract_strided_slice %185 {offsets = [0, 128], sizes = [8, 128], strides = [1, 1]} : vector<8x512xf32> to vector<8x128xf32>
    %193 = arith.negf %192 : vector<8x128xf32>
    %194 = math.exp %193 : vector<8x128xf32>
    %cst_61 = arith.constant 1.000000e+00 : f32
    %195 = vector.broadcast %cst_61 : f32 to vector<8x128xf32>
    %196 = arith.addf %195, %194 : vector<8x128xf32>
    %197 = arith.divf %195, %196 : vector<8x128xf32>
    %198 = vector.extract_strided_slice %185 {offsets = [0, 256], sizes = [8, 128], strides = [1, 1]} : vector<8x512xf32> to vector<8x128xf32>
    %199 = math.tanh %198 : vector<8x128xf32>
    %200 = vector.extract_strided_slice %185 {offsets = [0, 384], sizes = [8, 128], strides = [1, 1]} : vector<8x512xf32> to vector<8x128xf32>
    %201 = arith.negf %200 : vector<8x128xf32>
    %202 = math.exp %201 : vector<8x128xf32>
    %cst_62 = arith.constant 1.000000e+00 : f32
    %203 = vector.broadcast %cst_62 : f32 to vector<8x128xf32>
    %204 = arith.addf %203, %202 : vector<8x128xf32>
    %205 = arith.divf %203, %204 : vector<8x128xf32>
    %206 = arith.mulf %197, %174 : vector<8x128xf32>
    %207 = arith.mulf %191, %199 : vector<8x128xf32>
    %208 = arith.addf %206, %207 : vector<8x128xf32>
    %209 = math.tanh %208 : vector<8x128xf32>
    %210 = arith.mulf %205, %209 : vector<8x128xf32>
    %211 = arith.index_cast %180 : i32 to index
    %c0_63 = arith.constant 0 : index
    %212 = vector.load %arg13[%211, %c0_63] : memref<64x128xf32, #tpu.memory_space<vmem>>, vector<8x128xf32>
    tpu.vector_store %arg13[%211, %c0_63], %210 {strides = array<i32>} : memref<64x128xf32, #tpu.memory_space<vmem>>, vector<8x128xf32>,
    %c6_i32 = arith.constant 6 : i32
    %c8_i32_64 = arith.constant 8 : i32
    %213 = arith.muli %c6_i32, %c8_i32_64 : i32
    %214 = tpu.assume_multiple %213, 8 : i32
    %215 = arith.index_cast %214 : i32 to index
    %c0_65 = arith.constant 0 : index
    %216 = vector.load %arg12[%215, %c0_65] : memref<64x512xf32, #tpu.memory_space<vmem>>, vector<8x512xf32>
    %c0_66 = arith.constant 0 : index
    %c0_67 = arith.constant 0 : index
    %217 = vector.load %arg5[%c0_66, %c0_67] : memref<128x512xf32, #tpu.memory_space<vmem>>, vector<128x512xf32>
    %cst_68 = arith.constant dense<0.000000e+00> : vector<8x512xf32>
    %218 = tpu.matmul %210, %217, %cst_68 {dimension_numbers = #tpu.dot_dimension_numbers<[1], [0], [0], [1], [0, 0, 1, 1], [], []>} : vector<8x128xf32>, vector<128x512xf32>, vector<8x512xf32> -> vector<8x512xf32>
    %219 = arith.addf %216, %218 : vector<8x512xf32>
    %220 = vector.extract_strided_slice %219 {offsets = [0, 0], sizes = [8, 128], strides = [1, 1]} : vector<8x512xf32> to vector<8x128xf32>
    %221 = arith.negf %220 : vector<8x128xf32>
    %222 = math.exp %221 : vector<8x128xf32>
    %cst_69 = arith.constant 1.000000e+00 : f32
    %223 = vector.broadcast %cst_69 : f32 to vector<8x128xf32>
    %224 = arith.addf %223, %222 : vector<8x128xf32>
    %225 = arith.divf %223, %224 : vector<8x128xf32>
    %226 = vector.extract_strided_slice %219 {offsets = [0, 128], sizes = [8, 128], strides = [1, 1]} : vector<8x512xf32> to vector<8x128xf32>
    %227 = arith.negf %226 : vector<8x128xf32>
    %228 = math.exp %227 : vector<8x128xf32>
    %cst_70 = arith.constant 1.000000e+00 : f32
    %229 = vector.broadcast %cst_70 : f32 to vector<8x128xf32>
    %230 = arith.addf %229, %228 : vector<8x128xf32>
    %231 = arith.divf %229, %230 : vector<8x128xf32>
    %232 = vector.extract_strided_slice %219 {offsets = [0, 256], sizes = [8, 128], strides = [1, 1]} : vector<8x512xf32> to vector<8x128xf32>
    %233 = math.tanh %232 : vector<8x128xf32>
    %234 = vector.extract_strided_slice %219 {offsets = [0, 384], sizes = [8, 128], strides = [1, 1]} : vector<8x512xf32> to vector<8x128xf32>
    %235 = arith.negf %234 : vector<8x128xf32>
    %236 = math.exp %235 : vector<8x128xf32>
    %cst_71 = arith.constant 1.000000e+00 : f32
    %237 = vector.broadcast %cst_71 : f32 to vector<8x128xf32>
    %238 = arith.addf %237, %236 : vector<8x128xf32>
    %239 = arith.divf %237, %238 : vector<8x128xf32>
    %240 = arith.mulf %231, %208 : vector<8x128xf32>
    %241 = arith.mulf %225, %233 : vector<8x128xf32>
    %242 = arith.addf %240, %241 : vector<8x128xf32>
    %243 = math.tanh %242 : vector<8x128xf32>
    %244 = arith.mulf %239, %243 : vector<8x128xf32>
    %245 = arith.index_cast %214 : i32 to index
    %c0_72 = arith.constant 0 : index
    %246 = vector.load %arg13[%245, %c0_72] : memref<64x128xf32, #tpu.memory_space<vmem>>, vector<8x128xf32>
    tpu.vector_store %arg13[%245, %c0_72], %244 {strides = array<i32>} : memref<64x128xf32, #tpu.memory_space<vmem>>, vector<8x128xf32>,
    %c7_i32 = arith.constant 7 : i32
    %c8_i32_73 = arith.constant 8 : i32
    %247 = arith.muli %c7_i32, %c8_i32_73 : i32
    %248 = tpu.assume_multiple %247, 8 : i32
    %249 = arith.index_cast %248 : i32 to index
    %c0_74 = arith.constant 0 : index
    %250 = vector.load %arg12[%249, %c0_74] : memref<64x512xf32, #tpu.memory_space<vmem>>, vector<8x512xf32>
    %c0_75 = arith.constant 0 : index
    %c0_76 = arith.constant 0 : index
    %251 = vector.load %arg5[%c0_75, %c0_76] : memref<128x512xf32, #tpu.memory_space<vmem>>, vector<128x512xf32>
    %cst_77 = arith.constant dense<0.000000e+00> : vector<8x512xf32>
    %252 = tpu.matmul %244, %251, %cst_77 {dimension_numbers = #tpu.dot_dimension_numbers<[1], [0], [0], [1], [0, 0, 1, 1], [], []>} : vector<8x128xf32>, vector<128x512xf32>, vector<8x512xf32> -> vector<8x512xf32>
    %253 = arith.addf %250, %252 : vector<8x512xf32>
    %254 = vector.extract_strided_slice %253 {offsets = [0, 0], sizes = [8, 128], strides = [1, 1]} : vector<8x512xf32> to vector<8x128xf32>
    %255 = arith.negf %254 : vector<8x128xf32>
    %256 = math.exp %255 : vector<8x128xf32>
    %cst_78 = arith.constant 1.000000e+00 : f32
    %257 = vector.broadcast %cst_78 : f32 to vector<8x128xf32>
    %258 = arith.addf %257, %256 : vector<8x128xf32>
    %259 = arith.divf %257, %258 : vector<8x128xf32>
    %260 = vector.extract_strided_slice %253 {offsets = [0, 128], sizes = [8, 128], strides = [1, 1]} : vector<8x512xf32> to vector<8x128xf32>
    %261 = arith.negf %260 : vector<8x128xf32>
    %262 = math.exp %261 : vector<8x128xf32>
    %cst_79 = arith.constant 1.000000e+00 : f32
    %263 = vector.broadcast %cst_79 : f32 to vector<8x128xf32>
    %264 = arith.addf %263, %262 : vector<8x128xf32>
    %265 = arith.divf %263, %264 : vector<8x128xf32>
    %266 = vector.extract_strided_slice %253 {offsets = [0, 256], sizes = [8, 128], strides = [1, 1]} : vector<8x512xf32> to vector<8x128xf32>
    %267 = math.tanh %266 : vector<8x128xf32>
    %268 = vector.extract_strided_slice %253 {offsets = [0, 384], sizes = [8, 128], strides = [1, 1]} : vector<8x512xf32> to vector<8x128xf32>
    %269 = arith.negf %268 : vector<8x128xf32>
    %270 = math.exp %269 : vector<8x128xf32>
    %cst_80 = arith.constant 1.000000e+00 : f32
    %271 = vector.broadcast %cst_80 : f32 to vector<8x128xf32>
    %272 = arith.addf %271, %270 : vector<8x128xf32>
    %273 = arith.divf %271, %272 : vector<8x128xf32>
    %274 = arith.mulf %265, %242 : vector<8x128xf32>
    %275 = arith.mulf %259, %267 : vector<8x128xf32>
    %276 = arith.addf %274, %275 : vector<8x128xf32>
    %277 = math.tanh %276 : vector<8x128xf32>
    %278 = arith.mulf %273, %277 : vector<8x128xf32>
    %279 = arith.index_cast %248 : i32 to index
    %c0_81 = arith.constant 0 : index
    %280 = vector.load %arg13[%279, %c0_81] : memref<64x128xf32, #tpu.memory_space<vmem>>, vector<8x128xf32>
    tpu.vector_store %arg13[%279, %c0_81], %278 {strides = array<i32>} : memref<64x128xf32, #tpu.memory_space<vmem>>, vector<8x128xf32>,
    %c8_i32_82 = arith.constant 8 : i32
    %c0_83 = arith.constant 0 : index
    %c0_84 = arith.constant 0 : index
    %281 = vector.load %arg10[%c0_83, %c0_84] : memref<8x128xf32, #tpu.memory_space<vmem>>, vector<8x128xf32>
    tpu.vector_store %arg10[%c0_83, %c0_84], %278 {strides = array<i32>} : memref<8x128xf32, #tpu.memory_space<vmem>>, vector<8x128xf32>,
    %c0_85 = arith.constant 0 : index
    %c0_86 = arith.constant 0 : index
    %282 = vector.load %arg11[%c0_85, %c0_86] : memref<8x128xf32, #tpu.memory_space<vmem>>, vector<8x128xf32>
    tpu.vector_store %arg11[%c0_85, %c0_86], %276 {strides = array<i32>} : memref<8x128xf32, #tpu.memory_space<vmem>>, vector<8x128xf32>,
    %c0_87 = arith.constant 0 : index
    %c0_88 = arith.constant 0 : index
    %283 = vector.load %arg13[%c0_87, %c0_88] : memref<64x128xf32, #tpu.memory_space<vmem>>, vector<64x128xf32>
    %c0_89 = arith.constant 0 : index
    %c0_90 = arith.constant 0 : index
    %284 = vector.load %arg7[%c0_89, %c0_90] : memref<128x128xf32, #tpu.memory_space<vmem>>, vector<128x128xf32>
    %cst_91 = arith.constant dense<0.000000e+00> : vector<64x128xf32>
    %285 = tpu.matmul %283, %284, %cst_91 {dimension_numbers = #tpu.dot_dimension_numbers<[1], [0], [0], [1], [0, 0, 1, 1], [], []>} : vector<64x128xf32>, vector<128x128xf32>, vector<64x128xf32> -> vector<64x128xf32>
    %c0_92 = arith.constant 0 : index
    %c0_93 = arith.constant 0 : index
    %286 = vector.load %arg8[%c0_92, %c0_93] : memref<1x128xf32, #tpu.memory_space<vmem>>, vector<1x128xf32>
    %287 = vector.broadcast %286 : vector<1x128xf32> to vector<64x128xf32>
    %288 = arith.addf %285, %287 : vector<64x128xf32>
    %c0_94 = arith.constant 0 : index
    %c0_95 = arith.constant 0 : index
    %289 = vector.load %arg9[%c0_94, %c0_95] : memref<64x128xf32, #tpu.memory_space<vmem>>, vector<64x128xf32>
    tpu.vector_store %arg9[%c0_94, %c0_95], %288 {strides = array<i32>} : memref<64x128xf32, #tpu.memory_space<vmem>>, vector<64x128xf32>,
    return
  }
  func.func @transform_0(%arg0: i32) -> (i32, i32) {
    %c0_i32 = arith.constant 0 : i32
    %c0_i32_0 = arith.constant 0 : i32
    %c0_i32_1 = arith.constant 0 : i32
    return %c0_i32, %c0_i32_0 : i32, i32
  }
  func.func @transform_1(%arg0: i32) -> (i32, i32) {
    %c0_i32 = arith.constant 0 : i32
    %c0_i32_0 = arith.constant 0 : i32
    %c0_i32_1 = arith.constant 0 : i32
    return %c0_i32, %c0_i32_0 : i32, i32
  }
  func.func @transform_2(%arg0: i32) -> (i32, i32) {
    %c0_i32 = arith.constant 0 : i32
    %c0_i32_0 = arith.constant 0 : i32
    %c0_i32_1 = arith.constant 0 : i32
    return %c0_i32, %c0_i32_0 : i32, i32
  }
  func.func @transform_3(%arg0: i32) -> (i32, i32) {
    %c0_i32 = arith.constant 0 : i32
    %c0_i32_0 = arith.constant 0 : i32
    %c0_i32_1 = arith.constant 0 : i32
    return %c0_i32, %c0_i32_0 : i32, i32
  }
  func.func @transform_4(%arg0: i32) -> (i32, i32) {
    %c0_i32 = arith.constant 0 : i32
    %c0_i32_0 = arith.constant 0 : i32
    %c0_i32_1 = arith.constant 0 : i32
    return %c0_i32, %c0_i32_0 : i32, i32
  }
  func.func @transform_5(%arg0: i32) -> (i32, i32) {
    %c0_i32 = arith.constant 0 : i32
    %c0_i32_0 = arith.constant 0 : i32
    %c0_i32_1 = arith.constant 0 : i32
    return %c0_i32, %c0_i32_0 : i32, i32
  }
  func.func @transform_6(%arg0: i32) -> (i32, i32) {
    %c0_i32 = arith.constant 0 : i32
    %c0_i32_0 = arith.constant 0 : i32
    %c0_i32_1 = arith.constant 0 : i32
    return %c0_i32, %c0_i32_0 : i32, i32
  }
  func.func @transform_7(%arg0: i32) -> (i32, i32) {
    %c0_i32 = arith.constant 0 : i32
    %c0_i32_0 = arith.constant 0 : i32
    %c0_i32_1 = arith.constant 0 : i32
    return %c0_i32, %c0_i32_0 : i32, i32
  }
  func.func @transform_8(%arg0: i32) -> (i32, i32) {
    %c0_i32 = arith.constant 0 : i32
    %c0_i32_0 = arith.constant 0 : i32
    %c0_i32_1 = arith.constant 0 : i32
    return %c0_i32, %c0_i32_0 : i32, i32
  }
  func.func @transform_9(%arg0: i32) -> (i32, i32) {
    %c0_i32 = arith.constant 0 : i32
    %c0_i32_0 = arith.constant 0 : i32
    %c0_i32_1 = arith.constant 0 : i32
    return %c0_i32, %c0_i32_0 : i32, i32
  }
  func.func @transform_10(%arg0: i32) -> (i32, i32) {
    %c0_i32 = arith.constant 0 : i32
    %c0_i32_0 = arith.constant 0 : i32
    %c0_i32_1 = arith.constant 0 : i32
    return %c0_i32, %c0_i32_0 : i32, i32
  }
}

</mosaic_0001>

<llo_original>
// kernel: tpu_custom_call.1
$region0: #{tpu_custom_call.1}
  #allocation0 [shape = 'u32[]', space=smem, size = 0x4, offset = 0x4, fixed_abs, tag = 'smem constant byte address 0x4 - core index']
  #allocation1 [shape = 'u32[144,128]{1,0:T(1,128)}', space=vmem, size = 0x12000, scoped, tag = 'internal scratch']
  #allocation2 [shape = 'f32[64,512]{1,0:T(8,128)}', space=vmem, size = 0x20000, scoped, tag = 'scratch operand']
  #allocation3 [shape = 'f32[64,128]{1,0:T(8,128)}', space=vmem, size = 0x8000, scoped, tag = 'scratch operand']
  %s0 = inlined_call_operand.vmem [shape: f32[64,16], index: 0, kind: input, shape index: {}]
  %s1 = inlined_call_operand.vmem [shape: f32[8,128], index: 1, kind: input, shape index: {}]
  %s2 = inlined_call_operand.vmem [shape: f32[8,128], index: 2, kind: input, shape index: {}]
  %s3 = inlined_call_operand.vmem [shape: f32[16,512], index: 3, kind: input, shape index: {}]
  %s4 = inlined_call_operand.hbm [shape: f32[128,512], index: 4, kind: input, shape index: {}]
  %s5 = inlined_call_operand.vmem [shape: f32[1,512], index: 5, kind: input, shape index: {}]
  %s6 = inlined_call_operand.hbm [shape: f32[128,128], index: 6, kind: input, shape index: {}]
  %s7 = inlined_call_operand.vmem [shape: f32[1,128], index: 7, kind: input, shape index: {}]
  %s8 = inlined_call_operand.hbm [shape: f32[64,128], index: 8, kind: output, shape index: {0}]
  %s9 = inlined_call_operand.hbm [shape: f32[8,128], index: 9, kind: output, shape index: {1}]
  %s10 = inlined_call_operand.hbm [shape: f32[8,128], index: 10, kind: output, shape index: {2}]
  %11 = xla_tuple %s8, %s9, %s10
  %s12 = sld [smem:[#allocation0]]
  $region66: #{tpu_custom_call.1} parent=0
    _
  %s14 = ssub.s32 1, %s12
  %s15 = scalar_select 0, %s14, %s12
  $region1: #{tpu_custom_call.1} parent=0
    #allocation4 [shape = 'u8[262144]{0}', space=vmem, size = 0x40000, scoped, tag = 'input window, operand 4, single buffered']
    #allocation5 [shape = 's32[1]{0}', space=sflag, size = 0x4, scoped, tag = 'scoped memory for tpu_custom_call.1']
    #allocation6 [shape = 's32[1]{0}', space=sflag, size = 0x4, scoped, tag = 'scoped memory for tpu_custom_call.1']
    #allocation7 [shape = 'u8[65536]{0}', space=vmem, size = 0x10000, scoped, tag = 'input window, operand 6, single buffered']
    #allocation8 [shape = 's32[1]{0}', space=sflag, size = 0x4, scoped, tag = 'scoped memory for tpu_custom_call.1']
    #allocation9 [shape = 'u8[32768]{0}', space=vmem, size = 0x8000, scoped, tag = 'output window, operand 0, single buffered']
    #allocation10 [shape = 'u8[4096]{0}', space=vmem, size = 0x1000, scoped, tag = 'output window, operand 1, single buffered']
    #allocation11 [shape = 's32[1]{0}', space=sflag, size = 0x4, scoped, tag = 'scoped memory for tpu_custom_call.1']
    #allocation12 [shape = 'u8[4096]{0}', space=vmem, size = 0x1000, scoped, tag = 'output window, operand 2, single buffered']
    %16 = vsyncpa [#allocation5], 0
    %17 = vsyncpa [#allocation8], 0
    %18 = vsyncpa [#allocation6], 0
    %19 = vsyncpa [#allocation11], 0
    // Predicated region
    $region2: #{tpu_custom_call.1} parent=1 // pred_check
      _
    $region3: #{tpu_custom_call.1} parent=1 // pred_check_branch
      %21 = sbr.rel (0) target = $region5
    $region4: #{tpu_custom_call.1} parent=1 // pred_region
      _
    $region5: #{tpu_custom_call.1} parent=1 // pred_fallthru
      _
    // Predicated region
    $region6: #{tpu_custom_call.1} parent=1 // pred_check
      _
    $region7: #{tpu_custom_call.1} parent=1 // pred_check_branch
      %23 = sbr.rel (0) target = $region9
    $region8: #{tpu_custom_call.1} parent=1 // pred_region
      _
    $region9: #{tpu_custom_call.1} parent=1 // pred_fallthru
      _
    // Predicated region
    $region10: #{tpu_custom_call.1} parent=1 // pred_check
      _
    $region11: #{tpu_custom_call.1} parent=1 // pred_check_branch
      %25 = sbr.rel (0) target = $region13
    $region12: #{tpu_custom_call.1} parent=1 // pred_region
      _
    $region13: #{tpu_custom_call.1} parent=1 // pred_fallthru
      _
    // Predicated region
    $region14: #{tpu_custom_call.1} parent=1 // pred_check
      _
    $region15: #{tpu_custom_call.1} parent=1 // pred_check_branch
      %27 = sbr.rel (0) target = $region17
    $region16: #{tpu_custom_call.1} parent=1 // pred_region
      _
    $region17: #{tpu_custom_call.1} parent=1 // pred_fallthru
      _
    // Predicated region
    $region18: #{tpu_custom_call.1} parent=1 // pred_check
      _
    $region19: #{tpu_custom_call.1} parent=1 // pred_check_branch
      %29 = sbr.rel (0) target = $region21
    $region20: #{tpu_custom_call.1} parent=1 // pred_region
      %s31 = ssub.s32 8192, 8192
      %32 = vsyncadd [#allocation5], %s31
      %s33 = sshll.u32 [#allocation4], 4
      %s34 = int_to_ptr.vmem [resolvable:$true] %s33
      %39 = dma.hbm_to_vmem [thread:$0]  %s4, 8192, %s34, [#allocation5], 512, 512, 32
    $region21: #{tpu_custom_call.1} parent=1 // pred_fallthru
      _
    // Predicated region
    $region22: #{tpu_custom_call.1} parent=1 // pred_check
      _
    $region23: #{tpu_custom_call.1} parent=1 // pred_check_branch
      %41 = sbr.rel (0) target = $region25
    $region24: #{tpu_custom_call.1} parent=1 // pred_region
      _
    $region25: #{tpu_custom_call.1} parent=1 // pred_fallthru
      _
    // Predicated region
    $region26: #{tpu_custom_call.1} parent=1 // pred_check
      _
    $region27: #{tpu_custom_call.1} parent=1 // pred_check_branch
      %43 = sbr.rel (0) target = $region29
    $region28: #{tpu_custom_call.1} parent=1 // pred_region
      %s45 = ssub.s32 2048, 2048
      %46 = vsyncadd [#allocation8], %s45
      %s47 = sshll.u32 [#allocation7], 4
      %s48 = int_to_ptr.vmem [resolvable:$true] %s47
      %53 = dma.hbm_to_vmem [thread:$0]  %s6, 2048, %s48, [#allocation8], 128, 128, 8
    $region29: #{tpu_custom_call.1} parent=1 // pred_fallthru
      _
    // Predicated region
    $region30: #{tpu_custom_call.1} parent=1 // pred_check
      _
    $region31: #{tpu_custom_call.1} parent=1 // pred_check_branch
      %55 = sbr.rel (0) target = $region33
    $region32: #{tpu_custom_call.1} parent=1 // pred_region
      _
    $region33: #{tpu_custom_call.1} parent=1 // pred_fallthru
      _
    // Predicated region
    $region34: #{tpu_custom_call.1} parent=1 // pred_check
      _
    $region35: #{tpu_custom_call.1} parent=1 // pred_check_branch
      %57 = sbr.rel (0) target = $region37
    $region36: #{tpu_custom_call.1} parent=1 // pred_region
      %58 = dma.done [#allocation5], 8192
    $region37: #{tpu_custom_call.1} parent=1 // pred_fallthru
      _
    // Predicated region
    $region38: #{tpu_custom_call.1} parent=1 // pred_check
      _
    $region39: #{tpu_custom_call.1} parent=1 // pred_check_branch
      %60 = sbr.rel (0) target = $region41
    $region40: #{tpu_custom_call.1} parent=1 // pred_region
      %61 = dma.done [#allocation8], 2048
    $region41: #{tpu_custom_call.1} parent=1 // pred_fallthru
      _
    %v62 = vld [vmem:[%s0] sm:$0xff]
    %v63 = vld [vmem:[%s0 + $0x8] sm:$0xff]
    %v64 = vld [vmem:[%s0 + $0x10] sm:$0xff]
    %v65 = vld [vmem:[%s0 + $0x18] sm:$0xff]
    %v66 = vld [vmem:[%s0 + $0x20] sm:$0xff]
    %v67 = vld [vmem:[%s0 + $0x28] sm:$0xff]
    %v68 = vld [vmem:[%s0 + $0x30] sm:$0xff]
    %v69 = vld [vmem:[%s0 + $0x38] sm:$0xff]
    %v70 = vld [vmem:[%s3] sm:$0xff]
    %v71 = vld [vmem:[%s3 + $0x8] sm:$0xff]
    %v72 = vld [vmem:[%s3 + $0x10] sm:$0xff]
    %v73 = vld [vmem:[%s3 + $0x18] sm:$0xff]
    %v74 = vld [vmem:[%s3 + $0x20] sm:$0xff]
    %v75 = vld [vmem:[%s3 + $0x28] sm:$0xff]
    %v76 = vld [vmem:[%s3 + $0x30] sm:$0xff]
    %v77 = vld [vmem:[%s3 + $0x38] sm:$0xff]
    %v78 = vld [vmem:[%s5] sm:$0xf]
    %v80 = vlaneseq
    %v81 = vshrl.u32 %v80, 7
    %v82 = vsub.s32 0, %v81
    %v83 = vrot.slane %v78, %v82
    %v84 = vlaneseq
    %v85 = vshrl.u32 %v84, 7
    %v86 = vsub.s32 1, %v85
    %v87 = vrot.slane %v78, %v86
    %v88 = vlaneseq
    %v89 = vshrl.u32 %v88, 7
    %v90 = vsub.s32 2, %v89
    %v91 = vrot.slane %v78, %v90
    %v92 = vlaneseq
    %v93 = vshrl.u32 %v92, 7
    %v94 = vsub.s32 3, %v93
    %v95 = vrot.slane %v78, %v94
    %vm100 = vcmask 130048
    %v102 = vsel %vm100, %v62, 0
    %v105 = vsel %vm100, %v63, 0
    %v108 = vsel %vm100, %v64, 0
    %v111 = vsel %vm100, %v65, 0
    %v114 = vsel %vm100, %v66, 0
    %v117 = vsel %vm100, %v67, 0
    %v120 = vsel %vm100, %v68, 0
    %v123 = vsel %vm100, %v69, 0
    %125 = vmatprep.subr.mxu0 %v71
    %126 = vmatpush1.msra.mxu0 %v70
    %127 = vmatprep.subr.mxu0 %v75
    %128 = vmatpush1.msra.mxu0 %v74
    %129 = vmatprep.subr.mxu0 0.0
    %130 = vmatpush1.msra.mxu0 0.0
    %131 = vmatprep.subr.mxu0 0.0
    %132 = vmatpush1.msra.mxu0 0.0
    %133 = vmatprep.subr.mxu0 0.0
    %134 = vmatpush1.msra.mxu0 0.0
    %135 = vmatprep.subr.mxu0 0.0
    %136 = vmatpush1.msra.mxu0 0.0
    %137 = vmatprep.subr.mxu0 0.0
    %138 = vmatpush1.msra.mxu0 0.0
    %139 = vmatprep.subr.mxu0 0.0
    %140 = vmatpush1.msra.mxu0 0.0
    %141 = vmatprep.subr.mxu0 0.0
    %142 = vmatpush1.msra.mxu0 0.0
    %143 = vmatprep.subr.mxu0 0.0
    %144 = vmatpush1.msra.mxu0 0.0
    %145 = vmatprep.subr.mxu0 0.0
    %146 = vmatpush1.msra.mxu0 0.0
    %147 = vmatprep.subr.mxu0 0.0
    %148 = vmatpush1.msra.mxu0 0.0
    %149 = vmatprep.subr.mxu0 0.0
    %150 = vmatpush1.msra.mxu0 0.0
    %151 = vmatprep.subr.mxu0 0.0
    %152 = vmatpush1.msra.mxu0 0.0
    %153 = vmatprep.subr.mxu0 0.0
    %154 = vmatpush1.msra.mxu0 0.0
    %155 = vmatprep.subr.mxu0 0.0
    %156 = vmatpush1.msra.mxu0 0.0
    %157 = vmatprep.subr.mxu0 0.0
    %158 = vmatpush1.msra.mxu0 0.0
    %159 = vmatprep.subr.mxu0 0.0
    %160 = vmatpush1.msra.mxu0 0.0
    %161 = vmatprep.subr.mxu0 0.0
    %162 = vmatpush1.msra.mxu0 0.0
    %163 = vmatprep.subr.mxu0 0.0
    %164 = vmatpush1.msra.mxu0 0.0
    %165 = vmatprep.subr.mxu0 0.0
    %166 = vmatpush1.msra.mxu0 0.0
    %167 = vmatprep.subr.mxu0 0.0
    %168 = vmatpush1.msra.mxu0 0.0
    %169 = vmatprep.subr.mxu0 0.0
    %170 = vmatpush1.msra.mxu0 0.0
    %171 = vmatprep.subr.mxu0 0.0
    %172 = vmatpush1.msra.mxu0 0.0
    %173 = vmatprep.subr.mxu0 0.0
    %174 = vmatpush1.msra.mxu0 0.0
    %175 = vmatprep.subr.mxu0 0.0
    %176 = vmatpush1.msra.mxu0 0.0
    %177 = vmatprep.subr.mxu0 0.0
    %178 = vmatpush1.msra.mxu0 0.0
    %179 = vmatprep.subr.mxu0 0.0
    %180 = vmatpush1.msra.mxu0 0.0
    %181 = vmatprep.subr.mxu0 0.0
    %182 = vmatpush1.msra.mxu0 0.0
    %183 = vmatprep.subr.mxu0 0.0
    %184 = vmatpush1.msra.mxu0 0.0
    %185 = vmatprep.subr.mxu0 0.0
    %186 = vmatpush1.msra.mxu0 0.0
    %187 = vmatprep.subr.mxu0 0.0
    %188 = vmatpush1.msra.mxu0 0.0
    %189 = vmatprep.mubr.f32.mxu0 0.0
    %190 = vmatmul.mubr.f32.gmra.mrb[0].mxu0 %v102
    %v191 = vpop.f32.mrb[0].mxu0
    %v192 = vadd.f32 %v83, %v191
    %v193 = vpop.f32.mrb[0].mxu0
    %v194 = vadd.f32 %v87, %v193
    %195 = vmatprep.mubr.f32.mxu0 0.0
    %196 = vmatmul.mubr.f32.gmra.mrb[0].mxu0 %v105
    %v197 = vpop.f32.mrb[0].mxu0
    %v198 = vadd.f32 %v83, %v197
    %v199 = vpop.f32.mrb[0].mxu0
    %v200 = vadd.f32 %v87, %v199
    %201 = vmatprep.mubr.f32.mxu0 0.0
    %202 = vmatmul.mubr.f32.gmra.mrb[0].mxu0 %v108
    %v203 = vpop.f32.mrb[0].mxu0
    %v204 = vadd.f32 %v83, %v203
    %v205 = vpop.f32.mrb[0].mxu0
    %v206 = vadd.f32 %v87, %v205
    %207 = vmatprep.mubr.f32.mxu0 0.0
    %208 = vmatmul.mubr.f32.gmra.mrb[0].mxu0 %v111
    %v209 = vpop.f32.mrb[0].mxu0
    %v210 = vadd.f32 %v83, %v209
    %v211 = vpop.f32.mrb[0].mxu0
    %v212 = vadd.f32 %v87, %v211
    %213 = vmatprep.mubr.f32.mxu0 0.0
    %214 = vmatmul.mubr.f32.gmra.mrb[0].mxu0 %v114
    %v215 = vpop.f32.mrb[0].mxu0
    %v216 = vadd.f32 %v83, %v215
    %v217 = vpop.f32.mrb[0].mxu0
    %v218 = vadd.f32 %v87, %v217
    %219 = vmatprep.mubr.f32.mxu0 0.0
    %220 = vmatmul.mubr.f32.gmra.mrb[0].mxu0 %v117
    %v221 = vpop.f32.mrb[0].mxu0
    %v222 = vadd.f32 %v83, %v221
    %v223 = vpop.f32.mrb[0].mxu0
    %v224 = vadd.f32 %v87, %v223
    %225 = vmatprep.mubr.f32.mxu0 0.0
    %226 = vmatmul.mubr.f32.gmra.mrb[0].mxu0 %v120
    %v227 = vpop.f32.mrb[0].mxu0
    %v228 = vadd.f32 %v83, %v227
    %v229 = vpop.f32.mrb[0].mxu0
    %v230 = vadd.f32 %v87, %v229
    %231 = vmatprep.mubr.f32.mxu0 0.0
    %232 = vmatmul.mubr.f32.gmra.mrb[0].mxu0 %v123
    %v233 = vpop.f32.mrb[0].mxu0
    %v234 = vadd.f32 %v83, %v233
    %v235 = vpop.f32.mrb[0].mxu0
    %v236 = vadd.f32 %v87, %v235
    %237 = vdwg.mxu0
    %238 = vmatprep.subr.mxu0 %v73
    %239 = vmatpush1.msra.mxu0 %v72
    %240 = vmatprep.subr.mxu0 %v77
    %241 = vmatpush1.msra.mxu0 %v76
    %242 = vmatprep.subr.mxu0 0.0
    %243 = vmatpush1.msra.mxu0 0.0
    %244 = vmatprep.subr.mxu0 0.0
    %245 = vmatpush1.msra.mxu0 0.0
    %246 = vmatprep.subr.mxu0 0.0
    %247 = vmatpush1.msra.mxu0 0.0
    %248 = vmatprep.subr.mxu0 0.0
    %249 = vmatpush1.msra.mxu0 0.0
    %250 = vmatprep.subr.mxu0 0.0
    %251 = vmatpush1.msra.mxu0 0.0
    %252 = vmatprep.subr.mxu0 0.0
    %253 = vmatpush1.msra.mxu0 0.0
    %254 = vmatprep.subr.mxu0 0.0
    %255 = vmatpush1.msra.mxu0 0.0
    %256 = vmatprep.subr.mxu0 0.0
    %257 = vmatpush1.msra.mxu0 0.0
    %258 = vmatprep.subr.mxu0 0.0
    %259 = vmatpush1.msra.mxu0 0.0
    %260 = vmatprep.subr.mxu0 0.0
    %261 = vmatpush1.msra.mxu0 0.0
    %262 = vmatprep.subr.mxu0 0.0
    %263 = vmatpush1.msra.mxu0 0.0
    %264 = vmatprep.subr.mxu0 0.0
    %265 = vmatpush1.msra.mxu0 0.0
    %266 = vmatprep.subr.mxu0 0.0
    %267 = vmatpush1.msra.mxu0 0.0
    %268 = vmatprep.subr.mxu0 0.0
    %269 = vmatpush1.msra.mxu0 0.0
    %270 = vmatprep.subr.mxu0 0.0
    %271 = vmatpush1.msra.mxu0 0.0
    %272 = vmatprep.subr.mxu0 0.0
    %273 = vmatpush1.msra.mxu0 0.0
    %274 = vmatprep.subr.mxu0 0.0
    %275 = vmatpush1.msra.mxu0 0.0
    %276 = vmatprep.subr.mxu0 0.0
    %277 = vmatpush1.msra.mxu0 0.0
    %278 = vmatprep.subr.mxu0 0.0
    %279 = vmatpush1.msra.mxu0 0.0
    %280 = vmatprep.subr.mxu0 0.0
    %281 = vmatpush1.msra.mxu0 0.0
    %282 = vmatprep.subr.mxu0 0.0
    %283 = vmatpush1.msra.mxu0 0.0
    %284 = vmatprep.subr.mxu0 0.0
    %285 = vmatpush1.msra.mxu0 0.0
    %286 = vmatprep.subr.mxu0 0.0
    %287 = vmatpush1.msra.mxu0 0.0
    %288 = vmatprep.subr.mxu0 0.0
    %289 = vmatpush1.msra.mxu0 0.0
    %290 = vmatprep.subr.mxu0 0.0
    %291 = vmatpush1.msra.mxu0 0.0
    %292 = vmatprep.subr.mxu0 0.0
    %293 = vmatpush1.msra.mxu0 0.0
    %294 = vmatprep.subr.mxu0 0.0
    %295 = vmatpush1.msra.mxu0 0.0
    %296 = vmatprep.subr.mxu0 0.0
    %297 = vmatpush1.msra.mxu0 0.0
    %298 = vmatprep.subr.mxu0 0.0
    %299 = vmatpush1.msra.mxu0 0.0
    %300 = vmatprep.subr.mxu0 0.0
    %301 = vmatpush1.msra.mxu0 0.0
    %302 = vmatprep.mubr.f32.mxu0 0.0
    %303 = vmatmul.mubr.f32.gmra.mrb[0].mxu0 %v102
    %v304 = vpop.f32.mrb[0].mxu0
    %v305 = vadd.f32 %v91, %v304
    %v306 = vpop.f32.mrb[0].mxu0
    %v307 = vadd.f32 %v95, %v306
    %308 = vmatprep.mubr.f32.mxu0 0.0
    %309 = vmatmul.mubr.f32.gmra.mrb[0].mxu0 %v105
    %v310 = vpop.f32.mrb[0].mxu0
    %v311 = vadd.f32 %v91, %v310
    %v312 = vpop.f32.mrb[0].mxu0
    %v313 = vadd.f32 %v95, %v312
    %314 = vmatprep.mubr.f32.mxu0 0.0
    %315 = vmatmul.mubr.f32.gmra.mrb[0].mxu0 %v108
    %v316 = vpop.f32.mrb[0].mxu0
    %v317 = vadd.f32 %v91, %v316
    %v318 = vpop.f32.mrb[0].mxu0
    %v319 = vadd.f32 %v95, %v318
    %320 = vmatprep.mubr.f32.mxu0 0.0
    %321 = vmatmul.mubr.f32.gmra.mrb[0].mxu0 %v111
    %v322 = vpop.f32.mrb[0].mxu0
    %v323 = vadd.f32 %v91, %v322
    %v324 = vpop.f32.mrb[0].mxu0
    %v325 = vadd.f32 %v95, %v324
    %326 = vmatprep.mubr.f32.mxu0 0.0
    %327 = vmatmul.mubr.f32.gmra.mrb[0].mxu0 %v114
    %v328 = vpop.f32.mrb[0].mxu0
    %v329 = vadd.f32 %v91, %v328
    %v330 = vpop.f32.mrb[0].mxu0
    %v331 = vadd.f32 %v95, %v330
    %332 = vmatprep.mubr.f32.mxu0 0.0
    %333 = vmatmul.mubr.f32.gmra.mrb[0].mxu0 %v117
    %v334 = vpop.f32.mrb[0].mxu0
    %v335 = vadd.f32 %v91, %v334
    %v336 = vpop.f32.mrb[0].mxu0
    %v337 = vadd.f32 %v95, %v336
    %338 = vmatprep.mubr.f32.mxu0 0.0
    %339 = vmatmul.mubr.f32.gmra.mrb[0].mxu0 %v120
    %v340 = vpop.f32.mrb[0].mxu0
    %v341 = vadd.f32 %v91, %v340
    %v342 = vpop.f32.mrb[0].mxu0
    %v343 = vadd.f32 %v95, %v342
    %344 = vmatprep.mubr.f32.mxu0 0.0
    %345 = vmatmul.mubr.f32.gmra.mrb[0].mxu0 %v123
    %v346 = vpop.f32.mrb[0].mxu0
    %v347 = vadd.f32 %v91, %v346
    %v348 = vpop.f32.mrb[0].mxu0
    %v349 = vadd.f32 %v95, %v348
    %350 = vdwg.mxu0
    %351 = vst [vmem:[#allocation2] sm:$0xff] %v192
    %352 = vst [vmem:[#allocation2 + $0x8] sm:$0xff] %v194
    %353 = vst [vmem:[#allocation2 + $0x10] sm:$0xff] %v305
    %354 = vst [vmem:[#allocation2 + $0x18] sm:$0xff] %v307
    %355 = vst [vmem:[#allocation2 + $0x20] sm:$0xff] %v198
    %356 = vst [vmem:[#allocation2 + $0x28] sm:$0xff] %v200
    %357 = vst [vmem:[#allocation2 + $0x30] sm:$0xff] %v311
    %358 = vst [vmem:[#allocation2 + $0x38] sm:$0xff] %v313
    %359 = vst [vmem:[#allocation2 + $0x40] sm:$0xff] %v204
    %360 = vst [vmem:[#allocation2 + $0x48] sm:$0xff] %v206
    %361 = vst [vmem:[#allocation2 + $0x50] sm:$0xff] %v317
    %362 = vst [vmem:[#allocation2 + $0x58] sm:$0xff] %v319
    %363 = vst [vmem:[#allocation2 + $0x60] sm:$0xff] %v210
    %364 = vst [vmem:[#allocation2 + $0x68] sm:$0xff] %v212
    %365 = vst [vmem:[#allocation2 + $0x70] sm:$0xff] %v323
    %366 = vst [vmem:[#allocation2 + $0x78] sm:$0xff] %v325
    %367 = vst [vmem:[#allocation2 + $0x80] sm:$0xff] %v216
    %368 = vst [vmem:[#allocation2 + $0x88] sm:$0xff] %v218
    %369 = vst [vmem:[#allocation2 + $0x90] sm:$0xff] %v329
    %370 = vst [vmem:[#allocation2 + $0x98] sm:$0xff] %v331
    %371 = vst [vmem:[#allocation2 + $0xa0] sm:$0xff] %v222
    %372 = vst [vmem:[#allocation2 + $0xa8] sm:$0xff] %v224
    %373 = vst [vmem:[#allocation2 + $0xb0] sm:$0xff] %v335
    %374 = vst [vmem:[#allocation2 + $0xb8] sm:$0xff] %v337
    %375 = vst [vmem:[#allocation2 + $0xc0] sm:$0xff] %v228
    %376 = vst [vmem:[#allocation2 + $0xc8] sm:$0xff] %v230
    %377 = vst [vmem:[#allocation2 + $0xd0] sm:$0xff] %v341
    %378 = vst [vmem:[#allocation2 + $0xd8] sm:$0xff] %v343
    %379 = vst [vmem:[#allocation2 + $0xe0] sm:$0xff] %v234
    %380 = vst [vmem:[#allocation2 + $0xe8] sm:$0xff] %v236
    %381 = vst [vmem:[#allocation2 + $0xf0] sm:$0xff] %v347
    %382 = vst [vmem:[#allocation2 + $0xf8] sm:$0xff] %v349
    %v383 = vld [vmem:[%s1] sm:$0xff]
    %v384 = vld [vmem:[%s2] sm:$0xff]
    %s385 = smul.u32 0, 4
    %s386 = smul.addr %s385, 8
    %s387 = scalar_lea.vmem [#allocation2], %s386
    %v388 = vld [vmem:[%s387] sm:$0xff]
    %v389 = vld [vmem:[%s387 + $0x8] sm:$0xff]
    %v390 = vld [vmem:[%s387 + $0x10] sm:$0xff]
    %v391 = vld [vmem:[%s387 + $0x18] sm:$0xff]
    %v392 = vld [vmem:[#allocation4] sm:$0xff]
    %v393 = vld [vmem:[#allocation4 + $0x8] sm:$0xff]
    %v394 = vld [vmem:[#allocation4 + $0x10] sm:$0xff]
    %v395 = vld [vmem:[#allocation4 + $0x18] sm:$0xff]
    %v396 = vld [vmem:[#allocation4 + $0x20] sm:$0xff]
    %v397 = vld [vmem:[#allocation4 + $0x28] sm:$0xff]
    %v398 = vld [vmem:[#allocation4 + $0x30] sm:$0xff]
    %v399 = vld [vmem:[#allocation4 + $0x38] sm:$0xff]
    %v400 = vld [vmem:[#allocation4 + $0x40] sm:$0xff]
    %v401 = vld [vmem:[#allocation4 + $0x48] sm:$0xff]
    %v402 = vld [vmem:[#allocation4 + $0x50] sm:$0xff]
    %v403 = vld [vmem:[#allocation4 + $0x58] sm:$0xff]
    %v404 = vld [vmem:[#allocation4 + $0x60] sm:$0xff]
    %v405 = vld [vmem:[#allocation4 + $0x68] sm:$0xff]
    %v406 = vld [vmem:[#allocation4 + $0x70] sm:$0xff]
    %v407 = vld [vmem:[#allocation4 + $0x78] sm:$0xff]
    %v408 = vld [vmem:[#allocation4 + $0x80] sm:$0xff]
    %v409 = vld [vmem:[#allocation4 + $0x88] sm:$0xff]
    %v410 = vld [vmem:[#allocation4 + $0x90] sm:$0xff]
    %v411 = vld [vmem:[#allocation4 + $0x98] sm:$0xff]
    %v412 = vld [vmem:[#allocation4 + $0xa0] sm:$0xff]
    %v413 = vld [vmem:[#allocation4 + $0xa8] sm:$0xff]
    %v414 = vld [vmem:[#allocation4 + $0xb0] sm:$0xff]
    %v415 = vld [vmem:[#allocation4 + $0xb8] sm:$0xff]
    %v416 = vld [vmem:[#allocation4 + $0xc0] sm:$0xff]
    %v417 = vld [vmem:[#allocation4 + $0xc8] sm:$0xff]
    %v418 = vld [vmem:[#allocation4 + $0xd0] sm:$0xff]
    %v419 = vld [vmem:[#allocation4 + $0xd8] sm:$0xff]
    %v420 = vld [vmem:[#allocation4 + $0xe0] sm:$0xff]
    %v421 = vld [vmem:[#allocation4 + $0xe8] sm:$0xff]
    %v422 = vld [vmem:[#allocation4 + $0xf0] sm:$0xff]
    %v423 = vld [vmem:[#allocation4 + $0xf8] sm:$0xff]
    %v424 = vld [vmem:[#allocation4 + $0x100] sm:$0xff]
    %v425 = vld [vmem:[#allocation4 + $0x108] sm:$0xff]
    %v426 = vld [vmem:[#allocation4 + $0x110] sm:$0xff]
    %v427 = vld [vmem:[#allocation4 + $0x118] sm:$0xff]
    %v428 = vld [vmem:[#allocation4 + $0x120] sm:$0xff]
    %v429 = vld [vmem:[#allocation4 + $0x128] sm:$0xff]
    %v430 = vld [vmem:[#allocation4 + $0x130] sm:$0xff]
    %v431 = vld [vmem:[#allocation4 + $0x138] sm:$0xff]
    %v432 = vld [vmem:[#allocation4 + $0x140] sm:$0xff]
    %v433 = vld [vmem:[#allocation4 + $0x148] sm:$0xff]
    %v434 = vld [vmem:[#allocation4 + $0x150] sm:$0xff]
    %v435 = vld [vmem:[#allocation4 + $0x158] sm:$0xff]
    %v436 = vld [vmem:[#allocation4 + $0x160] sm:$0xff]
    %v437 = vld [vmem:[#allocation4 + $0x168] sm:$0xff]
    %v438 = vld [vmem:[#allocation4 + $0x170] sm:$0xff]
    %v439 = vld [vmem:[#allocation4 + $0x178] sm:$0xff]
    %v440 = vld [vmem:[#allocation4 + $0x180] sm:$0xff]
    %v441 = vld [vmem:[#allocation4 + $0x188] sm:$0xff]
    %v442 = vld [vmem:[#allocation4 + $0x190] sm:$0xff]
    %v443 = vld [vmem:[#allocation4 + $0x198] sm:$0xff]
    %v444 = vld [vmem:[#allocation4 + $0x1a0] sm:$0xff]
    %v445 = vld [vmem:[#allocation4 + $0x1a8] sm:$0xff]
    %v446 = vld [vmem:[#allocation4 + $0x1b0] sm:$0xff]
    %v447 = vld [vmem:[#allocation4 + $0x1b8] sm:$0xff]
    %v448 = vld [vmem:[#allocation4 + $0x1c0] sm:$0xff]
    %v449 = vld [vmem:[#allocation4 + $0x1c8] sm:$0xff]
    %v450 = vld [vmem:[#allocation4 + $0x1d0] sm:$0xff]
    %v451 = vld [vmem:[#allocation4 + $0x1d8] sm:$0xff]
    %v452 = vld [vmem:[#allocation4 + $0x1e0] sm:$0xff]
    %v453 = vld [vmem:[#allocation4 + $0x1e8] sm:$0xff]
    %v454 = vld [vmem:[#allocation4 + $0x1f0] sm:$0xff]
    %v455 = vld [vmem:[#allocation4 + $0x1f8] sm:$0xff]
    %456 = vmatprep.subr.mxu0 %v393
    %457 = vmatpush1.msra.mxu0 %v392
    %458 = vmatprep.subr.mxu0 %v397
    %459 = vmatpush1.msra.mxu0 %v396
    %460 = vmatprep.subr.mxu0 %v401
    %461 = vmatpush1.msra.mxu0 %v400
    %462 = vmatprep.subr.mxu0 %v405
    %463 = vmatpush1.msra.mxu0 %v404
    %464 = vmatprep.subr.mxu0 %v409
    %465 = vmatpush1.msra.mxu0 %v408
    %466 = vmatprep.subr.mxu0 %v413
    %467 = vmatpush1.msra.mxu0 %v412
    %468 = vmatprep.subr.mxu0 %v417
    %469 = vmatpush1.msra.mxu0 %v416
    %470 = vmatprep.subr.mxu0 %v421
    %471 = vmatpush1.msra.mxu0 %v420
    %472 = vmatprep.subr.mxu0 %v425
    %473 = vmatpush1.msra.mxu0 %v424
    %474 = vmatprep.subr.mxu0 %v429
    %475 = vmatpush1.msra.mxu0 %v428
    %476 = vmatprep.subr.mxu0 %v433
    %477 = vmatpush1.msra.mxu0 %v432
    %478 = vmatprep.subr.mxu0 %v437
    %479 = vmatpush1.msra.mxu0 %v436
    %480 = vmatprep.subr.mxu0 %v441
    %481 = vmatpush1.msra.mxu0 %v440
    %482 = vmatprep.subr.mxu0 %v445
    %483 = vmatpush1.msra.mxu0 %v444
    %484 = vmatprep.subr.mxu0 %v449
    %485 = vmatpush1.msra.mxu0 %v448
    %486 = vmatprep.subr.mxu0 %v453
    %487 = vmatpush1.msra.mxu0 %v452
    %488 = vmatprep.subr.mxu0 0.0
    %489 = vmatpush1.msra.mxu0 0.0
    %490 = vmatprep.subr.mxu0 0.0
    %491 = vmatpush1.msra.mxu0 0.0
    %492 = vmatprep.subr.mxu0 0.0
    %493 = vmatpush1.msra.mxu0 0.0
    %494 = vmatprep.subr.mxu0 0.0
    %495 = vmatpush1.msra.mxu0 0.0
    %496 = vmatprep.subr.mxu0 0.0
    %497 = vmatpush1.msra.mxu0 0.0
    %498 = vmatprep.subr.mxu0 0.0
    %499 = vmatpush1.msra.mxu0 0.0
    %500 = vmatprep.subr.mxu0 0.0
    %501 = vmatpush1.msra.mxu0 0.0
    %502 = vmatprep.subr.mxu0 0.0
    %503 = vmatpush1.msra.mxu0 0.0
    %504 = vmatprep.subr.mxu0 0.0
    %505 = vmatpush1.msra.mxu0 0.0
    %506 = vmatprep.subr.mxu0 0.0
    %507 = vmatpush1.msra.mxu0 0.0
    %508 = vmatprep.subr.mxu0 0.0
    %509 = vmatpush1.msra.mxu0 0.0
    %510 = vmatprep.subr.mxu0 0.0
    %511 = vmatpush1.msra.mxu0 0.0
    %512 = vmatprep.subr.mxu0 0.0
    %513 = vmatpush1.msra.mxu0 0.0
    %514 = vmatprep.subr.mxu0 0.0
    %515 = vmatpush1.msra.mxu0 0.0
    %516 = vmatprep.subr.mxu0 0.0
    %517 = vmatpush1.msra.mxu0 0.0
    %518 = vmatprep.subr.mxu0 0.0
    %519 = vmatpush1.msra.mxu0 0.0
    %520 = vmatprep.mubr.f32.mxu0 0.0
    %521 = vmatmul.mubr.f32.gmra.mrb[0].mxu0 %v383
    %v522 = vpop.f32.mrb[0].mxu0
    %v523 = vadd.f32 0.0, %v522
    %v524 = vpop.f32.mrb[0].mxu0
    %v525 = vadd.f32 0.0, %v524
    %526 = vdwg.mxu0
    %527 = vmatprep.subr.mxu0 %v395
    %528 = vmatpush1.msra.mxu0 %v394
    %529 = vmatprep.subr.mxu0 %v399
    %530 = vmatpush1.msra.mxu0 %v398
    %531 = vmatprep.subr.mxu0 %v403
    %532 = vmatpush1.msra.mxu0 %v402
    %533 = vmatprep.subr.mxu0 %v407
    %534 = vmatpush1.msra.mxu0 %v406
    %535 = vmatprep.subr.mxu0 %v411
    %536 = vmatpush1.msra.mxu0 %v410
    %537 = vmatprep.subr.mxu0 %v415
    %538 = vmatpush1.msra.mxu0 %v414
    %539 = vmatprep.subr.mxu0 %v419
    %540 = vmatpush1.msra.mxu0 %v418
    %541 = vmatprep.subr.mxu0 %v423
    %542 = vmatpush1.msra.mxu0 %v422
    %543 = vmatprep.subr.mxu0 %v427
    %544 = vmatpush1.msra.mxu0 %v426
    %545 = vmatprep.subr.mxu0 %v431
    %546 = vmatpush1.msra.mxu0 %v430
    %547 = vmatprep.subr.mxu0 %v435
    %548 = vmatpush1.msra.mxu0 %v434
    %549 = vmatprep.subr.mxu0 %v439
    %550 = vmatpush1.msra.mxu0 %v438
    %551 = vmatprep.subr.mxu0 %v443
    %552 = vmatpush1.msra.mxu0 %v442
    %553 = vmatprep.subr.mxu0 %v447
    %554 = vmatpush1.msra.mxu0 %v446
    %555 = vmatprep.subr.mxu0 %v451
    %556 = vmatpush1.msra.mxu0 %v450
    %557 = vmatprep.subr.mxu0 %v455
    %558 = vmatpush1.msra.mxu0 %v454
    %559 = vmatprep.subr.mxu0 0.0
    %560 = vmatpush1.msra.mxu0 0.0
    %561 = vmatprep.subr.mxu0 0.0
    %562 = vmatpush1.msra.mxu0 0.0
    %563 = vmatprep.subr.mxu0 0.0
    %564 = vmatpush1.msra.mxu0 0.0
    %565 = vmatprep.subr.mxu0 0.0
    %566 = vmatpush1.msra.mxu0 0.0
    %567 = vmatprep.subr.mxu0 0.0
    %568 = vmatpush1.msra.mxu0 0.0
    %569 = vmatprep.subr.mxu0 0.0
    %570 = vmatpush1.msra.mxu0 0.0
    %571 = vmatprep.subr.mxu0 0.0
    %572 = vmatpush1.msra.mxu0 0.0
    %573 = vmatprep.subr.mxu0 0.0
    %574 = vmatpush1.msra.mxu0 0.0
    %575 = vmatprep.subr.mxu0 0.0
    %576 = vmatpush1.msra.mxu0 0.0
    %577 = vmatprep.subr.mxu0 0.0
    %578 = vmatpush1.msra.mxu0 0.0
    %579 = vmatprep.subr.mxu0 0.0
    %580 = vmatpush1.msra.mxu0 0.0
    %581 = vmatprep.subr.mxu0 0.0
    %582 = vmatpush1.msra.mxu0 0.0
    %583 = vmatprep.subr.mxu0 0.0
    %584 = vmatpush1.msra.mxu0 0.0
    %585 = vmatprep.subr.mxu0 0.0
    %586 = vmatpush1.msra.mxu0 0.0
    %587 = vmatprep.subr.mxu0 0.0
    %588 = vmatpush1.msra.mxu0 0.0
    %589 = vmatprep.subr.mxu0 0.0
    %590 = vmatpush1.msra.mxu0 0.0
    %591 = vmatprep.mubr.f32.mxu0 0.0
    %592 = vmatmul.mubr.f32.gmra.mrb[0].mxu0 %v383
    %v593 = vpop.f32.mrb[0].mxu0
    %v594 = vadd.f32 0.0, %v593
    %v595 = vpop.f32.mrb[0].mxu0
    %v596 = vadd.f32 0.0, %v595
    %597 = vdwg.mxu0
    %v598 = vadd.f32 %v388, %v523
    %v599 = vadd.f32 %v389, %v525
    %v600 = vadd.f32 %v390, %v594
    %v601 = vadd.f32 %v391, %v596
    %v602 = vxor.u32 %v598, 2147483648
    %v603 = vmul.f32 %v602, 1.442695
    %v604 = vpow.pop %v603
    %v605 = vadd.f32 %v604, 1.0
    %v606 = vrcp.pop %v605
    %v607 = vmul.f32 1.0, %v606
    %v608 = vxor.u32 %v599, 2147483648
    %v609 = vmul.f32 %v608, 1.442695
    %v610 = vpow.pop %v609
    %v611 = vadd.f32 %v610, 1.0
    %v612 = vrcp.pop %v611
    %v613 = vmul.f32 1.0, %v612
    %v614 = vtanh.pop %v600
    %v615 = vxor.u32 %v601, 2147483648
    %v616 = vmul.f32 %v615, 1.442695
    %v617 = vpow.pop %v616
    %v618 = vadd.f32 %v617, 1.0
    %v619 = vrcp.pop %v618
    %v620 = vmul.f32 1.0, %v619
    %v621 = vmul.f32 %v613, %v384
    %v622 = vmul.f32 %v607, %v614
    %v623 = vadd.f32 %v621, %v622
    %v624 = vtanh.pop %v623
    %v625 = vmul.f32 %v620, %v624
    %626 = vst [vmem:[#allocation3] sm:$0xff] %v625
    %s627 = smul.u32 1, 4
    %s628 = smul.addr %s627, 8
    %s629 = scalar_lea.vmem [#allocation2], %s628
    %v630 = vld [vmem:[%s629] sm:$0xff]
    %v631 = vld [vmem:[%s629 + $0x8] sm:$0xff]
    %v632 = vld [vmem:[%s629 + $0x10] sm:$0xff]
    %v633 = vld [vmem:[%s629 + $0x18] sm:$0xff]
    %v634 = vld [vmem:[#allocation4] sm:$0xff]
    %v635 = vld [vmem:[#allocation4 + $0x8] sm:$0xff]
    %v636 = vld [vmem:[#allocation4 + $0x10] sm:$0xff]
    %v637 = vld [vmem:[#allocation4 + $0x18] sm:$0xff]
    %v638 = vld [vmem:[#allocation4 + $0x20] sm:$0xff]
    %v639 = vld [vmem:[#allocation4 + $0x28] sm:$0xff]
    %v640 = vld [vmem:[#allocation4 + $0x30] sm:$0xff]
    %v641 = vld [vmem:[#allocation4 + $0x38] sm:$0xff]
    %v642 = vld [vmem:[#allocation4 + $0x40] sm:$0xff]
    %v643 = vld [vmem:[#allocation4 + $0x48] sm:$0xff]
    %v644 = vld [vmem:[#allocation4 + $0x50] sm:$0xff]
    %v645 = vld [vmem:[#allocation4 + $0x58] sm:$0xff]
    %v646 = vld [vmem:[#allocation4 + $0x60] sm:$0xff]
    %v647 = vld [vmem:[#allocation4 + $0x68] sm:$0xff]
    %v648 = vld [vmem:[#allocation4 + $0x70] sm:$0xff]
    %v649 = vld [vmem:[#allocation4 + $0x78] sm:$0xff]
    %v650 = vld [vmem:[#allocation4 + $0x80] sm:$0xff]
    %v651 = vld [vmem:[#allocation4 + $0x88] sm:$0xff]
    %v652 = vld [vmem:[#allocation4 + $0x90] sm:$0xff]
    %v653 = vld [vmem:[#allocation4 + $0x98] sm:$0xff]
    %v654 = vld [vmem:[#allocation4 + $0xa0] sm:$0xff]
    %v655 = vld [vmem:[#allocation4 + $0xa8] sm:$0xff]
    %v656 = vld [vmem:[#allocation4 + $0xb0] sm:$0xff]
    %v657 = vld [vmem:[#allocation4 + $0xb8] sm:$0xff]
    %v658 = vld [vmem:[#allocation4 + $0xc0] sm:$0xff]
    %v659 = vld [vmem:[#allocation4 + $0xc8] sm:$0xff]
    %v660 = vld [vmem:[#allocation4 + $0xd0] sm:$0xff]
    %v661 = vld [vmem:[#allocation4 + $0xd8] sm:$0xff]
    %v662 = vld [vmem:[#allocation4 + $0xe0] sm:$0xff]
    %v663 = vld [vmem:[#allocation4 + $0xe8] sm:$0xff]
    %v664 = vld [vmem:[#allocation4 + $0xf0] sm:$0xff]
    %v665 = vld [vmem:[#allocation4 + $0xf8] sm:$0xff]
    %v666 = vld [vmem:[#allocation4 + $0x100] sm:$0xff]
    %v667 = vld [vmem:[#allocation4 + $0x108] sm:$0xff]
    %v668 = vld [vmem:[#allocation4 + $0x110] sm:$0xff]
    %v669 = vld [vmem:[#allocation4 + $0x118] sm:$0xff]
    %v670 = vld [vmem:[#allocation4 + $0x120] sm:$0xff]
    %v671 = vld [vmem:[#allocation4 + $0x128] sm:$0xff]
    %v672 = vld [vmem:[#allocation4 + $0x130] sm:$0xff]
    %v673 = vld [vmem:[#allocation4 + $0x138] sm:$0xff]
    %v674 = vld [vmem:[#allocation4 + $0x140] sm:$0xff]
    %v675 = vld [vmem:[#allocation4 + $0x148] sm:$0xff]
    %v676 = vld [vmem:[#allocation4 + $0x150] sm:$0xff]
    %v677 = vld [vmem:[#allocation4 + $0x158] sm:$0xff]
    %v678 = vld [vmem:[#allocation4 + $0x160] sm:$0xff]
    %v679 = vld [vmem:[#allocation4 + $0x168] sm:$0xff]
    %v680 = vld [vmem:[#allocation4 + $0x170] sm:$0xff]
    %v681 = vld [vmem:[#allocation4 + $0x178] sm:$0xff]
    %v682 = vld [vmem:[#allocation4 + $0x180] sm:$0xff]
    %v683 = vld [vmem:[#allocation4 + $0x188] sm:$0xff]
    %v684 = vld [vmem:[#allocation4 + $0x190] sm:$0xff]
    %v685 = vld [vmem:[#allocation4 + $0x198] sm:$0xff]
    %v686 = vld [vmem:[#allocation4 + $0x1a0] sm:$0xff]
    %v687 = vld [vmem:[#allocation4 + $0x1a8] sm:$0xff]
    %v688 = vld [vmem:[#allocation4 + $0x1b0] sm:$0xff]
    %v689 = vld [vmem:[#allocation4 + $0x1b8] sm:$0xff]
    %v690 = vld [vmem:[#allocation4 + $0x1c0] sm:$0xff]
    %v691 = vld [vmem:[#allocation4 + $0x1c8] sm:$0xff]
    %v692 = vld [vmem:[#allocation4 + $0x1d0] sm:$0xff]
    %v693 = vld [vmem:[#allocation4 + $0x1d8] sm:$0xff]
    %v694 = vld [vmem:[#allocation4 + $0x1e0] sm:$0xff]
    %v695 = vld [vmem:[#allocation4 + $0x1e8] sm:$0xff]
    %v696 = vld [vmem:[#allocation4 + $0x1f0] sm:$0xff]
    %v697 = vld [vmem:[#allocation4 + $0x1f8] sm:$0xff]
    %698 = vmatprep.subr.mxu0 %v635
    %699 = vmatpush1.msra.mxu0 %v634
    %700 = vmatprep.subr.mxu0 %v639
    %701 = vmatpush1.msra.mxu0 %v638
    %702 = vmatprep.subr.mxu0 %v643
    %703 = vmatpush1.msra.mxu0 %v642
    %704 = vmatprep.subr.mxu0 %v647
    %705 = vmatpush1.msra.mxu0 %v646
    %706 = vmatprep.subr.mxu0 %v651
    %707 = vmatpush1.msra.mxu0 %v650
    %708 = vmatprep.subr.mxu0 %v655
    %709 = vmatpush1.msra.mxu0 %v654
    %710 = vmatprep.subr.mxu0 %v659
    %711 = vmatpush1.msra.mxu0 %v658
    %712 = vmatprep.subr.mxu0 %v663
    %713 = vmatpush1.msra.mxu0 %v662
    %714 = vmatprep.subr.mxu0 %v667
    %715 = vmatpush1.msra.mxu0 %v666
    %716 = vmatprep.subr.mxu0 %v671
    %717 = vmatpush1.msra.mxu0 %v670
    %718 = vmatprep.subr.mxu0 %v675
    %719 = vmatpush1.msra.mxu0 %v674
    %720 = vmatprep.subr.mxu0 %v679
    %721 = vmatpush1.msra.mxu0 %v678
    %722 = vmatprep.subr.mxu0 %v683
    %723 = vmatpush1.msra.mxu0 %v682
    %724 = vmatprep.subr.mxu0 %v687
    %725 = vmatpush1.msra.mxu0 %v686
    %726 = vmatprep.subr.mxu0 %v691
    %727 = vmatpush1.msra.mxu0 %v690
    %728 = vmatprep.subr.mxu0 %v695
    %729 = vmatpush1.msra.mxu0 %v694
    %730 = vmatprep.subr.mxu0 0.0
    %731 = vmatpush1.msra.mxu0 0.0
    %732 = vmatprep.subr.mxu0 0.0
    %733 = vmatpush1.msra.mxu0 0.0
    %734 = vmatprep.subr.mxu0 0.0
    %735 = vmatpush1.msra.mxu0 0.0
    %736 = vmatprep.subr.mxu0 0.0
    %737 = vmatpush1.msra.mxu0 0.0
    %738 = vmatprep.subr.mxu0 0.0
    %739 = vmatpush1.msra.mxu0 0.0
    %740 = vmatprep.subr.mxu0 0.0
    %741 = vmatpush1.msra.mxu0 0.0
    %742 = vmatprep.subr.mxu0 0.0
    %743 = vmatpush1.msra.mxu0 0.0
    %744 = vmatprep.subr.mxu0 0.0
    %745 = vmatpush1.msra.mxu0 0.0
    %746 = vmatprep.subr.mxu0 0.0
    %747 = vmatpush1.msra.mxu0 0.0
    %748 = vmatprep.subr.mxu0 0.0
    %749 = vmatpush1.msra.mxu0 0.0
    %750 = vmatprep.subr.mxu0 0.0
    %751 = vmatpush1.msra.mxu0 0.0
    %752 = vmatprep.subr.mxu0 0.0
    %753 = vmatpush1.msra.mxu0 0.0
    %754 = vmatprep.subr.mxu0 0.0
    %755 = vmatpush1.msra.mxu0 0.0
    %756 = vmatprep.subr.mxu0 0.0
    %757 = vmatpush1.msra.mxu0 0.0
    %758 = vmatprep.subr.mxu0 0.0
    %759 = vmatpush1.msra.mxu0 0.0
    %760 = vmatprep.subr.mxu0 0.0
    %761 = vmatpush1.msra.mxu0 0.0
    %762 = vmatprep.mubr.f32.mxu0 0.0
    %763 = vmatmul.mubr.f32.gmra.mrb[0].mxu0 %v625
    %v764 = vpop.f32.mrb[0].mxu0
    %v765 = vadd.f32 0.0, %v764
    %v766 = vpop.f32.mrb[0].mxu0
    %v767 = vadd.f32 0.0, %v766
    %768 = vdwg.mxu0
    %769 = vmatprep.subr.mxu0 %v637
    %770 = vmatpush1.msra.mxu0 %v636
    %771 = vmatprep.subr.mxu0 %v641
    %772 = vmatpush1.msra.mxu0 %v640
    %773 = vmatprep.subr.mxu0 %v645
    %774 = vmatpush1.msra.mxu0 %v644
    %775 = vmatprep.subr.mxu0 %v649
    %776 = vmatpush1.msra.mxu0 %v648
    %777 = vmatprep.subr.mxu0 %v653
    %778 = vmatpush1.msra.mxu0 %v652
    %779 = vmatprep.subr.mxu0 %v657
    %780 = vmatpush1.msra.mxu0 %v656
    %781 = vmatprep.subr.mxu0 %v661
    %782 = vmatpush1.msra.mxu0 %v660
    %783 = vmatprep.subr.mxu0 %v665
    %784 = vmatpush1.msra.mxu0 %v664
    %785 = vmatprep.subr.mxu0 %v669
    %786 = vmatpush1.msra.mxu0 %v668
    %787 = vmatprep.subr.mxu0 %v673
    %788 = vmatpush1.msra.mxu0 %v672
    %789 = vmatprep.subr.mxu0 %v677
    %790 = vmatpush1.msra.mxu0 %v676
    %791 = vmatprep.subr.mxu0 %v681
    %792 = vmatpush1.msra.mxu0 %v680
    %793 = vmatprep.subr.mxu0 %v685
    %794 = vmatpush1.msra.mxu0 %v684
    %795 = vmatprep.subr.mxu0 %v689
    %796 = vmatpush1.msra.mxu0 %v688
    %797 = vmatprep.subr.mxu0 %v693
    %798 = vmatpush1.msra.mxu0 %v692
    %799 = vmatprep.subr.mxu0 %v697
    %800 = vmatpush1.msra.mxu0 %v696
    %801 = vmatprep.subr.mxu0 0.0
    %802 = vmatpush1.msra.mxu0 0.0
    %803 = vmatprep.subr.mxu0 0.0
    %804 = vmatpush1.msra.mxu0 0.0
    %805 = vmatprep.subr.mxu0 0.0
    %806 = vmatpush1.msra.mxu0 0.0
    %807 = vmatprep.subr.mxu0 0.0
    %808 = vmatpush1.msra.mxu0 0.0
    %809 = vmatprep.subr.mxu0 0.0
    %810 = vmatpush1.msra.mxu0 0.0
    %811 = vmatprep.subr.mxu0 0.0
    %812 = vmatpush1.msra.mxu0 0.0
    %813 = vmatprep.subr.mxu0 0.0
    %814 = vmatpush1.msra.mxu0 0.0
    %815 = vmatprep.subr.mxu0 0.0
    %816 = vmatpush1.msra.mxu0 0.0
    %817 = vmatprep.subr.mxu0 0.0
    %818 = vmatpush1.msra.mxu0 0.0
    %819 = vmatprep.subr.mxu0 0.0
    %820 = vmatpush1.msra.mxu0 0.0
    %821 = vmatprep.subr.mxu0 0.0
    %822 = vmatpush1.msra.mxu0 0.0
    %823 = vmatprep.subr.mxu0 0.0
    %824 = vmatpush1.msra.mxu0 0.0
    %825 = vmatprep.subr.mxu0 0.0
    %826 = vmatpush1.msra.mxu0 0.0
    %827 = vmatprep.subr.mxu0 0.0
    %828 = vmatpush1.msra.mxu0 0.0
    %829 = vmatprep.subr.mxu0 0.0
    %830 = vmatpush1.msra.mxu0 0.0
    %831 = vmatprep.subr.mxu0 0.0
    %832 = vmatpush1.msra.mxu0 0.0
    %833 = vmatprep.mubr.f32.mxu0 0.0
    %834 = vmatmul.mubr.f32.gmra.mrb[0].mxu0 %v625
    %v835 = vpop.f32.mrb[0].mxu0
    %v836 = vadd.f32 0.0, %v835
    %v837 = vpop.f32.mrb[0].mxu0
    %v838 = vadd.f32 0.0, %v837
    %839 = vdwg.mxu0
    %v840 = vadd.f32 %v630, %v765
    %v841 = vadd.f32 %v631, %v767
    %v842 = vadd.f32 %v632, %v836
    %v843 = vadd.f32 %v633, %v838
    %v844 = vxor.u32 %v840, 2147483648
    %v845 = vmul.f32 %v844, 1.442695
    %v846 = vpow.pop %v845
    %v847 = vadd.f32 %v846, 1.0
    %v848 = vrcp.pop %v847
    %v849 = vmul.f32 1.0, %v848
    %v850 = vxor.u32 %v841, 2147483648
    %v851 = vmul.f32 %v850, 1.442695
    %v852 = vpow.pop %v851
    %v853 = vadd.f32 %v852, 1.0
    %v854 = vrcp.pop %v853
    %v855 = vmul.f32 1.0, %v854
    %v856 = vtanh.pop %v842
    %v857 = vxor.u32 %v843, 2147483648
    %v858 = vmul.f32 %v857, 1.442695
    %v859 = vpow.pop %v858
    %v860 = vadd.f32 %v859, 1.0
    %v861 = vrcp.pop %v860
    %v862 = vmul.f32 1.0, %v861
    %v863 = vmul.f32 %v855, %v623
    %v864 = vmul.f32 %v849, %v856
    %v865 = vadd.f32 %v863, %v864
    %v866 = vtanh.pop %v865
    %v867 = vmul.f32 %v862, %v866
    %s868 = scalar_lea.vmem [#allocation3], 8
    %869 = vst [vmem:[%s868] sm:$0xff] %v867
    %s870 = smul.u32 2, 4
    %s871 = smul.addr %s870, 8
    %s872 = scalar_lea.vmem [#allocation2], %s871
    %v873 = vld [vmem:[%s872] sm:$0xff]
    %v874 = vld [vmem:[%s872 + $0x8] sm:$0xff]
    %v875 = vld [vmem:[%s872 + $0x10] sm:$0xff]
    %v876 = vld [vmem:[%s872 + $0x18] sm:$0xff]
    %v877 = vld [vmem:[#allocation4] sm:$0xff]
    %v878 = vld [vmem:[#allocation4 + $0x8] sm:$0xff]
    %v879 = vld [vmem:[#allocation4 + $0x10] sm:$0xff]
    %v880 = vld [vmem:[#allocation4 + $0x18] sm:$0xff]
    %v881 = vld [vmem:[#allocation4 + $0x20] sm:$0xff]
    %v882 = vld [vmem:[#allocation4 + $0x28] sm:$0xff]
    %v883 = vld [vmem:[#allocation4 + $0x30] sm:$0xff]
    %v884 = vld [vmem:[#allocation4 + $0x38] sm:$0xff]
    %v885 = vld [vmem:[#allocation4 + $0x40] sm:$0xff]
    %v886 = vld [vmem:[#allocation4 + $0x48] sm:$0xff]
    %v887 = vld [vmem:[#allocation4 + $0x50] sm:$0xff]
    %v888 = vld [vmem:[#allocation4 + $0x58] sm:$0xff]
    %v889 = vld [vmem:[#allocation4 + $0x60] sm:$0xff]
    %v890 = vld [vmem:[#allocation4 + $0x68] sm:$0xff]
    %v891 = vld [vmem:[#allocation4 + $0x70] sm:$0xff]
    %v892 = vld [vmem:[#allocation4 + $0x78] sm:$0xff]
    %v893 = vld [vmem:[#allocation4 + $0x80] sm:$0xff]
    %v894 = vld [vmem:[#allocation4 + $0x88] sm:$0xff]
    %v895 = vld [vmem:[#allocation4 + $0x90] sm:$0xff]
    %v896 = vld [vmem:[#allocation4 + $0x98] sm:$0xff]
    %v897 = vld [vmem:[#allocation4 + $0xa0] sm:$0xff]
    %v898 = vld [vmem:[#allocation4 + $0xa8] sm:$0xff]
    %v899 = vld [vmem:[#allocation4 + $0xb0] sm:$0xff]
    %v900 = vld [vmem:[#allocation4 + $0xb8] sm:$0xff]
    %v901 = vld [vmem:[#allocation4 + $0xc0] sm:$0xff]
    %v902 = vld [vmem:[#allocation4 + $0xc8] sm:$0xff]
    %v903 = vld [vmem:[#allocation4 + $0xd0] sm:$0xff]
    %v904 = vld [vmem:[#allocation4 + $0xd8] sm:$0xff]
    %v905 = vld [vmem:[#allocation4 + $0xe0] sm:$0xff]
    %v906 = vld [vmem:[#allocation4 + $0xe8] sm:$0xff]
    %v907 = vld [vmem:[#allocation4 + $0xf0] sm:$0xff]
    %v908 = vld [vmem:[#allocation4 + $0xf8] sm:$0xff]
    %v909 = vld [vmem:[#allocation4 + $0x100] sm:$0xff]
    %v910 = vld [vmem:[#allocation4 + $0x108] sm:$0xff]
    %v911 = vld [vmem:[#allocation4 + $0x110] sm:$0xff]
    %v912 = vld [vmem:[#allocation4 + $0x118] sm:$0xff]
    %v913 = vld [vmem:[#allocation4 + $0x120] sm:$0xff]
    %v914 = vld [vmem:[#allocation4 + $0x128] sm:$0xff]
    %v915 = vld [vmem:[#allocation4 + $0x130] sm:$0xff]
    %v916 = vld [vmem:[#allocation4 + $0x138] sm:$0xff]
    %v917 = vld [vmem:[#allocation4 + $0x140] sm:$0xff]
    %v918 = vld [vmem:[#allocation4 + $0x148] sm:$0xff]
    %v919 = vld [vmem:[#allocation4 + $0x150] sm:$0xff]
    %v920 = vld [vmem:[#allocation4 + $0x158] sm:$0xff]
    %v921 = vld [vmem:[#allocation4 + $0x160] sm:$0xff]
    %v922 = vld [vmem:[#allocation4 + $0x168] sm:$0xff]
    %v923 = vld [vmem:[#allocation4 + $0x170] sm:$0xff]
    %v924 = vld [vmem:[#allocation4 + $0x178] sm:$0xff]
    %v925 = vld [vmem:[#allocation4 + $0x180] sm:$0xff]
    %v926 = vld [vmem:[#allocation4 + $0x188] sm:$0xff]
    %v927 = vld [vmem:[#allocation4 + $0x190] sm:$0xff]
    %v928 = vld [vmem:[#allocation4 + $0x198] sm:$0xff]
    %v929 = vld [vmem:[#allocation4 + $0x1a0] sm:$0xff]
    %v930 = vld [vmem:[#allocation4 + $0x1a8] sm:$0xff]
    %v931 = vld [vmem:[#allocation4 + $0x1b0] sm:$0xff]
    %v932 = vld [vmem:[#allocation4 + $0x1b8] sm:$0xff]
    %v933 = vld [vmem:[#allocation4 + $0x1c0] sm:$0xff]
    %v934 = vld [vmem:[#allocation4 + $0x1c8] sm:$0xff]
    %v935 = vld [vmem:[#allocation4 + $0x1d0] sm:$0xff]
    %v936 = vld [vmem:[#allocation4 + $0x1d8] sm:$0xff]
    %v937 = vld [vmem:[#allocation4 + $0x1e0] sm:$0xff]
    %v938 = vld [vmem:[#allocation4 + $0x1e8] sm:$0xff]
    %v939 = vld [vmem:[#allocation4 + $0x1f0] sm:$0xff]
    %v940 = vld [vmem:[#allocation4 + $0x1f8] sm:$0xff]
    %941 = vmatprep.subr.mxu0 %v878
    %942 = vmatpush1.msra.mxu0 %v877
    %943 = vmatprep.subr.mxu0 %v882
    %944 = vmatpush1.msra.mxu0 %v881
    %945 = vmatprep.subr.mxu0 %v886
    %946 = vmatpush1.msra.mxu0 %v885
    %947 = vmatprep.subr.mxu0 %v890
    %948 = vmatpush1.msra.mxu0 %v889
    %949 = vmatprep.subr.mxu0 %v894
    %950 = vmatpush1.msra.mxu0 %v893
    %951 = vmatprep.subr.mxu0 %v898
    %952 = vmatpush1.msra.mxu0 %v897
    %953 = vmatprep.subr.mxu0 %v902
    %954 = vmatpush1.msra.mxu0 %v901
    %955 = vmatprep.subr.mxu0 %v906
    %956 = vmatpush1.msra.mxu0 %v905
    %957 = vmatprep.subr.mxu0 %v910
    %958 = vmatpush1.msra.mxu0 %v909
    %959 = vmatprep.subr.mxu0 %v914
    %960 = vmatpush1.msra.mxu0 %v913
    %961 = vmatprep.subr.mxu0 %v918
    %962 = vmatpush1.msra.mxu0 %v917
    %963 = vmatprep.subr.mxu0 %v922
    %964 = vmatpush1.msra.mxu0 %v921
    %965 = vmatprep.subr.mxu0 %v926
    %966 = vmatpush1.msra.mxu0 %v925
    %967 = vmatprep.subr.mxu0 %v930
    %968 = vmatpush1.msra.mxu0 %v929
    %969 = vmatprep.subr.mxu0 %v934
    %970 = vmatpush1.msra.mxu0 %v933
    %971 = vmatprep.subr.mxu0 %v938
    %972 = vmatpush1.msra.mxu0 %v937
    %973 = vmatprep.subr.mxu0 0.0
    %974 = vmatpush1.msra.mxu0 0.0
    %975 = vmatprep.subr.mxu0 0.0
    %976 = vmatpush1.msra.mxu0 0.0
    %977 = vmatprep.subr.mxu0 0.0
    %978 = vmatpush1.msra.mxu0 0.0
    %979 = vmatprep.subr.mxu0 0.0
    %980 = vmatpush1.msra.mxu0 0.0
    %981 = vmatprep.subr.mxu0 0.0
    %982 = vmatpush1.msra.mxu0 0.0
    %983 = vmatprep.subr.mxu0 0.0
    %984 = vmatpush1.msra.mxu0 0.0
    %985 = vmatprep.subr.mxu0 0.0
    %986 = vmatpush1.msra.mxu0 0.0
    %987 = vmatprep.subr.mxu0 0.0
    %988 = vmatpush1.msra.mxu0 0.0
    %989 = vmatprep.subr.mxu0 0.0
    %990 = vmatpush1.msra.mxu0 0.0
    %991 = vmatprep.subr.mxu0 0.0
    %992 = vmatpush1.msra.mxu0 0.0
    %993 = vmatprep.subr.mxu0 0.0
    %994 = vmatpush1.msra.mxu0 0.0
    %995 = vmatprep.subr.mxu0 0.0
    %996 = vmatpush1.msra.mxu0 0.0
    %997 = vmatprep.subr.mxu0 0.0
    %998 = vmatpush1.msra.mxu0 0.0
    %999 = vmatprep.subr.mxu0 0.0
    %1000 = vmatpush1.msra.mxu0 0.0
    %1001 = vmatprep.subr.mxu0 0.0
    %1002 = vmatpush1.msra.mxu0 0.0
    %1003 = vmatprep.subr.mxu0 0.0
    %1004 = vmatpush1.msra.mxu0 0.0
    %1005 = vmatprep.mubr.f32.mxu0 0.0
    %1006 = vmatmul.mubr.f32.gmra.mrb[0].mxu0 %v867
    %v1007 = vpop.f32.mrb[0].mxu0
    %v1008 = vadd.f32 0.0, %v1007
    %v1009 = vpop.f32.mrb[0].mxu0
    %v1010 = vadd.f32 0.0, %v1009
    %1011 = vdwg.mxu0
    %1012 = vmatprep.subr.mxu0 %v880
    %1013 = vmatpush1.msra.mxu0 %v879
    %1014 = vmatprep.subr.mxu0 %v884
    %1015 = vmatpush1.msra.mxu0 %v883
    %1016 = vmatprep.subr.mxu0 %v888
    %1017 = vmatpush1.msra.mxu0 %v887
    %1018 = vmatprep.subr.mxu0 %v892
    %1019 = vmatpush1.msra.mxu0 %v891
    %1020 = vmatprep.subr.mxu0 %v896
    %1021 = vmatpush1.msra.mxu0 %v895
    %1022 = vmatprep.subr.mxu0 %v900
    %1023 = vmatpush1.msra.mxu0 %v899
    %1024 = vmatprep.subr.mxu0 %v904
    %1025 = vmatpush1.msra.mxu0 %v903
    %1026 = vmatprep.subr.mxu0 %v908
    %1027 = vmatpush1.msra.mxu0 %v907
    %1028 = vmatprep.subr.mxu0 %v912
    %1029 = vmatpush1.msra.mxu0 %v911
    %1030 = vmatprep.subr.mxu0 %v916
    %1031 = vmatpush1.msra.mxu0 %v915
    %1032 = vmatprep.subr.mxu0 %v920
    %1033 = vmatpush1.msra.mxu0 %v919
    %1034 = vmatprep.subr.mxu0 %v924
    %1035 = vmatpush1.msra.mxu0 %v923
    %1036 = vmatprep.subr.mxu0 %v928
    %1037 = vmatpush1.msra.mxu0 %v927
    %1038 = vmatprep.subr.mxu0 %v932
    %1039 = vmatpush1.msra.mxu0 %v931
    %1040 = vmatprep.subr.mxu0 %v936
    %1041 = vmatpush1.msra.mxu0 %v935
    %1042 = vmatprep.subr.mxu0 %v940
    %1043 = vmatpush1.msra.mxu0 %v939
    %1044 = vmatprep.subr.mxu0 0.0
    %1045 = vmatpush1.msra.mxu0 0.0
    %1046 = vmatprep.subr.mxu0 0.0
    %1047 = vmatpush1.msra.mxu0 0.0
    %1048 = vmatprep.subr.mxu0 0.0
    %1049 = vmatpush1.msra.mxu0 0.0
    %1050 = vmatprep.subr.mxu0 0.0
    %1051 = vmatpush1.msra.mxu0 0.0
    %1052 = vmatprep.subr.mxu0 0.0
    %1053 = vmatpush1.msra.mxu0 0.0
    %1054 = vmatprep.subr.mxu0 0.0
    %1055 = vmatpush1.msra.mxu0 0.0
    %1056 = vmatprep.subr.mxu0 0.0
    %1057 = vmatpush1.msra.mxu0 0.0
    %1058 = vmatprep.subr.mxu0 0.0
    %1059 = vmatpush1.msra.mxu0 0.0
    %1060 = vmatprep.subr.mxu0 0.0
    %1061 = vmatpush1.msra.mxu0 0.0
    %1062 = vmatprep.subr.mxu0 0.0
    %1063 = vmatpush1.msra.mxu0 0.0
    %1064 = vmatprep.subr.mxu0 0.0
    %1065 = vmatpush1.msra.mxu0 0.0
    %1066 = vmatprep.subr.mxu0 0.0
    %1067 = vmatpush1.msra.mxu0 0.0
    %1068 = vmatprep.subr.mxu0 0.0
    %1069 = vmatpush1.msra.mxu0 0.0
    %1070 = vmatprep.subr.mxu0 0.0
    %1071 = vmatpush1.msra.mxu0 0.0
    %1072 = vmatprep.subr.mxu0 0.0
    %1073 = vmatpush1.msra.mxu0 0.0
    %1074 = vmatprep.subr.mxu0 0.0
    %1075 = vmatpush1.msra.mxu0 0.0
    %1076 = vmatprep.mubr.f32.mxu0 0.0
    %1077 = vmatmul.mubr.f32.gmra.mrb[0].mxu0 %v867
    %v1078 = vpop.f32.mrb[0].mxu0
    %v1079 = vadd.f32 0.0, %v1078
    %v1080 = vpop.f32.mrb[0].mxu0
    %v1081 = vadd.f32 0.0, %v1080
    %1082 = vdwg.mxu0
    %v1083 = vadd.f32 %v873, %v1008
    %v1084 = vadd.f32 %v874, %v1010
    %v1085 = vadd.f32 %v875, %v1079
    %v1086 = vadd.f32 %v876, %v1081
    %v1087 = vxor.u32 %v1083, 2147483648
    %v1088 = vmul.f32 %v1087, 1.442695
    %v1089 = vpow.pop %v1088
    %v1090 = vadd.f32 %v1089, 1.0
    %v1091 = vrcp.pop %v1090
    %v1092 = vmul.f32 1.0, %v1091
    %v1093 = vxor.u32 %v1084, 2147483648
    %v1094 = vmul.f32 %v1093, 1.442695
    %v1095 = vpow.pop %v1094
    %v1096 = vadd.f32 %v1095, 1.0
    %v1097 = vrcp.pop %v1096
    %v1098 = vmul.f32 1.0, %v1097
    %v1099 = vtanh.pop %v1085
    %v1100 = vxor.u32 %v1086, 2147483648
    %v1101 = vmul.f32 %v1100, 1.442695
    %v1102 = vpow.pop %v1101
    %v1103 = vadd.f32 %v1102, 1.0
    %v1104 = vrcp.pop %v1103
    %v1105 = vmul.f32 1.0, %v1104
    %v1106 = vmul.f32 %v1098, %v865
    %v1107 = vmul.f32 %v1092, %v1099
    %v1108 = vadd.f32 %v1106, %v1107
    %v1109 = vtanh.pop %v1108
    %v1110 = vmul.f32 %v1105, %v1109
    %s1111 = scalar_lea.vmem [#allocation3], 16
    %1112 = vst [vmem:[%s1111] sm:$0xff] %v1110
    %s1113 = smul.u32 3, 4
    %s1114 = smul.addr %s1113, 8
    %s1115 = scalar_lea.vmem [#allocation2], %s1114
    %v1116 = vld [vmem:[%s1115] sm:$0xff]
    %v1117 = vld [vmem:[%s1115 + $0x8] sm:$0xff]
    %v1118 = vld [vmem:[%s1115 + $0x10] sm:$0xff]
    %v1119 = vld [vmem:[%s1115 + $0x18] sm:$0xff]
    %v1120 = vld [vmem:[#allocation4] sm:$0xff]
    %v1121 = vld [vmem:[#allocation4 + $0x8] sm:$0xff]
    %v1122 = vld [vmem:[#allocation4 + $0x10] sm:$0xff]
    %v1123 = vld [vmem:[#allocation4 + $0x18] sm:$0xff]
    %v1124 = vld [vmem:[#allocation4 + $0x20] sm:$0xff]
    %v1125 = vld [vmem:[#allocation4 + $0x28] sm:$0xff]
    %v1126 = vld [vmem:[#allocation4 + $0x30] sm:$0xff]
    %v1127 = vld [vmem:[#allocation4 + $0x38] sm:$0xff]
    %v1128 = vld [vmem:[#allocation4 + $0x40] sm:$0xff]
    %v1129 = vld [vmem:[#allocation4 + $0x48] sm:$0xff]
    %v1130 = vld [vmem:[#allocation4 + $0x50] sm:$0xff]
    %v1131 = vld [vmem:[#allocation4 + $0x58] sm:$0xff]
    %v1132 = vld [vmem:[#allocation4 + $0x60] sm:$0xff]
    %v1133 = vld [vmem:[#allocation4 + $0x68] sm:$0xff]
    %v1134 = vld [vmem:[#allocation4 + $0x70] sm:$0xff]
    %v1135 = vld [vmem:[#allocation4 + $0x78] sm:$0xff]
    %v1136 = vld [vmem:[#allocation4 + $0x80] sm:$0xff]
    %v1137 = vld [vmem:[#allocation4 + $0x88] sm:$0xff]
    %v1138 = vld [vmem:[#allocation4 + $0x90] sm:$0xff]
    %v1139 = vld [vmem:[#allocation4 + $0x98] sm:$0xff]
    %v1140 = vld [vmem:[#allocation4 + $0xa0] sm:$0xff]
    %v1141 = vld [vmem:[#allocation4 + $0xa8] sm:$0xff]
    %v1142 = vld [vmem:[#allocation4 + $0xb0] sm:$0xff]
    %v1143 = vld [vmem:[#allocation4 + $0xb8] sm:$0xff]
    %v1144 = vld [vmem:[#allocation4 + $0xc0] sm:$0xff]
    %v1145 = vld [vmem:[#allocation4 + $0xc8] sm:$0xff]
    %v1146 = vld [vmem:[#allocation4 + $0xd0] sm:$0xff]
    %v1147 = vld [vmem:[#allocation4 + $0xd8] sm:$0xff]
    %v1148 = vld [vmem:[#allocation4 + $0xe0] sm:$0xff]
    %v1149 = vld [vmem:[#allocation4 + $0xe8] sm:$0xff]
    %v1150 = vld [vmem:[#allocation4 + $0xf0] sm:$0xff]
    %v1151 = vld [vmem:[#allocation4 + $0xf8] sm:$0xff]
    %v1152 = vld [vmem:[#allocation4 + $0x100] sm:$0xff]
    %v1153 = vld [vmem:[#allocation4 + $0x108] sm:$0xff]
    %v1154 = vld [vmem:[#allocation4 + $0x110] sm:$0xff]
    %v1155 = vld [vmem:[#allocation4 + $0x118] sm:$0xff]
    %v1156 = vld [vmem:[#allocation4 + $0x120] sm:$0xff]
    %v1157 = vld [vmem:[#allocation4 + $0x128] sm:$0xff]
    %v1158 = vld [vmem:[#allocation4 + $0x130] sm:$0xff]
    %v1159 = vld [vmem:[#allocation4 + $0x138] sm:$0xff]
    %v1160 = vld [vmem:[#allocation4 + $0x140] sm:$0xff]
    %v1161 = vld [vmem:[#allocation4 + $0x148] sm:$0xff]
    %v1162 = vld [vmem:[#allocation4 + $0x150] sm:$0xff]
    %v1163 = vld [vmem:[#allocation4 + $0x158] sm:$0xff]
    %v1164 = vld [vmem:[#allocation4 + $0x160] sm:$0xff]
    %v1165 = vld [vmem:[#allocation4 + $0x168] sm:$0xff]
    %v1166 = vld [vmem:[#allocation4 + $0x170] sm:$0xff]
    %v1167 = vld [vmem:[#allocation4 + $0x178] sm:$0xff]
    %v1168 = vld [vmem:[#allocation4 + $0x180] sm:$0xff]
    %v1169 = vld [vmem:[#allocation4 + $0x188] sm:$0xff]
    %v1170 = vld [vmem:[#allocation4 + $0x190] sm:$0xff]
    %v1171 = vld [vmem:[#allocation4 + $0x198] sm:$0xff]
    %v1172 = vld [vmem:[#allocation4 + $0x1a0] sm:$0xff]
    %v1173 = vld [vmem:[#allocation4 + $0x1a8] sm:$0xff]
    %v1174 = vld [vmem:[#allocation4 + $0x1b0] sm:$0xff]
    %v1175 = vld [vmem:[#allocation4 + $0x1b8] sm:$0xff]
    %v1176 = vld [vmem:[#allocation4 + $0x1c0] sm:$0xff]
    %v1177 = vld [vmem:[#allocation4 + $0x1c8] sm:$0xff]
    %v1178 = vld [vmem:[#allocation4 + $0x1d0] sm:$0xff]
    %v1179 = vld [vmem:[#allocation4 + $0x1d8] sm:$0xff]
    %v1180 = vld [vmem:[#allocation4 + $0x1e0] sm:$0xff]
    %v1181 = vld [vmem:[#allocation4 + $0x1e8] sm:$0xff]
    %v1182 = vld [vmem:[#allocation4 + $0x1f0] sm:$0xff]
    %v1183 = vld [vmem:[#allocation4 + $0x1f8] sm:$0xff]
    %1184 = vmatprep.subr.mxu0 %v1121
    %1185 = vmatpush1.msra.mxu0 %v1120
    %1186 = vmatprep.subr.mxu0 %v1125
    %1187 = vmatpush1.msra.mxu0 %v1124
    %1188 = vmatprep.subr.mxu0 %v1129
    %1189 = vmatpush1.msra.mxu0 %v1128
    %1190 = vmatprep.subr.mxu0 %v1133
    %1191 = vmatpush1.msra.mxu0 %v1132
    %1192 = vmatprep.subr.mxu0 %v1137
    %1193 = vmatpush1.msra.mxu0 %v1136
    %1194 = vmatprep.subr.mxu0 %v1141
    %1195 = vmatpush1.msra.mxu0 %v1140
    %1196 = vmatprep.subr.mxu0 %v1145
    %1197 = vmatpush1.msra.mxu0 %v1144
    %1198 = vmatprep.subr.mxu0 %v1149
    %1199 = vmatpush1.msra.mxu0 %v1148
    %1200 = vmatprep.subr.mxu0 %v1153
    %1201 = vmatpush1.msra.mxu0 %v1152
    %1202 = vmatprep.subr.mxu0 %v1157
    %1203 = vmatpush1.msra.mxu0 %v1156
    %1204 = vmatprep.subr.mxu0 %v1161
    %1205 = vmatpush1.msra.mxu0 %v1160
    %1206 = vmatprep.subr.mxu0 %v1165
    %1207 = vmatpush1.msra.mxu0 %v1164
    %1208 = vmatprep.subr.mxu0 %v1169
    %1209 = vmatpush1.msra.mxu0 %v1168
    %1210 = vmatprep.subr.mxu0 %v1173
    %1211 = vmatpush1.msra.mxu0 %v1172
    %1212 = vmatprep.subr.mxu0 %v1177
    %1213 = vmatpush1.msra.mxu0 %v1176
    %1214 = vmatprep.subr.mxu0 %v1181
    %1215 = vmatpush1.msra.mxu0 %v1180
    %1216 = vmatprep.subr.mxu0 0.0
    %1217 = vmatpush1.msra.mxu0 0.0
    %1218 = vmatprep.subr.mxu0 0.0
    %1219 = vmatpush1.msra.mxu0 0.0
    %1220 = vmatprep.subr.mxu0 0.0
    %1221 = vmatpush1.msra.mxu0 0.0
    %1222 = vmatprep.subr.mxu0 0.0
    %1223 = vmatpush1.msra.mxu0 0.0
    %1224 = vmatprep.subr.mxu0 0.0
    %1225 = vmatpush1.msra.mxu0 0.0
    %1226 = vmatprep.subr.mxu0 0.0
    %1227 = vmatpush1.msra.mxu0 0.0
    %1228 = vmatprep.subr.mxu0 0.0
    %1229 = vmatpush1.msra.mxu0 0.0
    %1230 = vmatprep.subr.mxu0 0.0
    %1231 = vmatpush1.msra.mxu0 0.0
    %1232 = vmatprep.subr.mxu0 0.0
    %1233 = vmatpush1.msra.mxu0 0.0
    %1234 = vmatprep.subr.mxu0 0.0
    %1235 = vmatpush1.msra.mxu0 0.0
    %1236 = vmatprep.subr.mxu0 0.0
    %1237 = vmatpush1.msra.mxu0 0.0
    %1238 = vmatprep.subr.mxu0 0.0
    %1239 = vmatpush1.msra.mxu0 0.0
    %1240 = vmatprep.subr.mxu0 0.0
    %1241 = vmatpush1.msra.mxu0 0.0
    %1242 = vmatprep.subr.mxu0 0.0
    %1243 = vmatpush1.msra.mxu0 0.0
    %1244 = vmatprep.subr.mxu0 0.0
    %1245 = vmatpush1.msra.mxu0 0.0
    %1246 = vmatprep.subr.mxu0 0.0
    %1247 = vmatpush1.msra.mxu0 0.0
    %1248 = vmatprep.mubr.f32.mxu0 0.0
    %1249 = vmatmul.mubr.f32.gmra.mrb[0].mxu0 %v1110
    %v1250 = vpop.f32.mrb[0].mxu0
    %v1251 = vadd.f32 0.0, %v1250
    %v1252 = vpop.f32.mrb[0].mxu0
    %v1253 = vadd.f32 0.0, %v1252
    %1254 = vdwg.mxu0
    %1255 = vmatprep.subr.mxu0 %v1123
    %1256 = vmatpush1.msra.mxu0 %v1122
    %1257 = vmatprep.subr.mxu0 %v1127
    %1258 = vmatpush1.msra.mxu0 %v1126
    %1259 = vmatprep.subr.mxu0 %v1131
    %1260 = vmatpush1.msra.mxu0 %v1130
    %1261 = vmatprep.subr.mxu0 %v1135
    %1262 = vmatpush1.msra.mxu0 %v1134
    %1263 = vmatprep.subr.mxu0 %v1139
    %1264 = vmatpush1.msra.mxu0 %v1138
    %1265 = vmatprep.subr.mxu0 %v1143
    %1266 = vmatpush1.msra.mxu0 %v1142
    %1267 = vmatprep.subr.mxu0 %v1147
    %1268 = vmatpush1.msra.mxu0 %v1146
    %1269 = vmatprep.subr.mxu0 %v1151
    %1270 = vmatpush1.msra.mxu0 %v1150
    %1271 = vmatprep.subr.mxu0 %v1155
    %1272 = vmatpush1.msra.mxu0 %v1154
    %1273 = vmatprep.subr.mxu0 %v1159
    %1274 = vmatpush1.msra.mxu0 %v1158
    %1275 = vmatprep.subr.mxu0 %v1163
    %1276 = vmatpush1.msra.mxu0 %v1162
    %1277 = vmatprep.subr.mxu0 %v1167
    %1278 = vmatpush1.msra.mxu0 %v1166
    %1279 = vmatprep.subr.mxu0 %v1171
    %1280 = vmatpush1.msra.mxu0 %v1170
    %1281 = vmatprep.subr.mxu0 %v1175
    %1282 = vmatpush1.msra.mxu0 %v1174
    %1283 = vmatprep.subr.mxu0 %v1179
    %1284 = vmatpush1.msra.mxu0 %v1178
    %1285 = vmatprep.subr.mxu0 %v1183
    %1286 = vmatpush1.msra.mxu0 %v1182
    %1287 = vmatprep.subr.mxu0 0.0
    %1288 = vmatpush1.msra.mxu0 0.0
    %1289 = vmatprep.subr.mxu0 0.0
    %1290 = vmatpush1.msra.mxu0 0.0
    %1291 = vmatprep.subr.mxu0 0.0
    %1292 = vmatpush1.msra.mxu0 0.0
    %1293 = vmatprep.subr.mxu0 0.0
    %1294 = vmatpush1.msra.mxu0 0.0
    %1295 = vmatprep.subr.mxu0 0.0
    %1296 = vmatpush1.msra.mxu0 0.0
    %1297 = vmatprep.subr.mxu0 0.0
    %1298 = vmatpush1.msra.mxu0 0.0
    %1299 = vmatprep.subr.mxu0 0.0
    %1300 = vmatpush1.msra.mxu0 0.0
    %1301 = vmatprep.subr.mxu0 0.0
    %1302 = vmatpush1.msra.mxu0 0.0
    %1303 = vmatprep.subr.mxu0 0.0
    %1304 = vmatpush1.msra.mxu0 0.0
    %1305 = vmatprep.subr.mxu0 0.0
    %1306 = vmatpush1.msra.mxu0 0.0
    %1307 = vmatprep.subr.mxu0 0.0
    %1308 = vmatpush1.msra.mxu0 0.0
    %1309 = vmatprep.subr.mxu0 0.0
    %1310 = vmatpush1.msra.mxu0 0.0
    %1311 = vmatprep.subr.mxu0 0.0
    %1312 = vmatpush1.msra.mxu0 0.0
    %1313 = vmatprep.subr.mxu0 0.0
    %1314 = vmatpush1.msra.mxu0 0.0
    %1315 = vmatprep.subr.mxu0 0.0
    %1316 = vmatpush1.msra.mxu0 0.0
    %1317 = vmatprep.subr.mxu0 0.0
    %1318 = vmatpush1.msra.mxu0 0.0
    %1319 = vmatprep.mubr.f32.mxu0 0.0
    %1320 = vmatmul.mubr.f32.gmra.mrb[0].mxu0 %v1110
    %v1321 = vpop.f32.mrb[0].mxu0
    %v1322 = vadd.f32 0.0, %v1321
    %v1323 = vpop.f32.mrb[0].mxu0
    %v1324 = vadd.f32 0.0, %v1323
    %1325 = vdwg.mxu0
    %v1326 = vadd.f32 %v1116, %v1251
    %v1327 = vadd.f32 %v1117, %v1253
    %v1328 = vadd.f32 %v1118, %v1322
    %v1329 = vadd.f32 %v1119, %v1324
    %v1330 = vxor.u32 %v1326, 2147483648
    %v1331 = vmul.f32 %v1330, 1.442695
    %v1332 = vpow.pop %v1331
    %v1333 = vadd.f32 %v1332, 1.0
    %v1334 = vrcp.pop %v1333
    %v1335 = vmul.f32 1.0, %v1334
    %v1336 = vxor.u32 %v1327, 2147483648
    %v1337 = vmul.f32 %v1336, 1.442695
    %v1338 = vpow.pop %v1337
    %v1339 = vadd.f32 %v1338, 1.0
    %v1340 = vrcp.pop %v1339
    %v1341 = vmul.f32 1.0, %v1340
    %v1342 = vtanh.pop %v1328
    %v1343 = vxor.u32 %v1329, 2147483648
    %v1344 = vmul.f32 %v1343, 1.442695
    %v1345 = vpow.pop %v1344
    %v1346 = vadd.f32 %v1345, 1.0
    %v1347 = vrcp.pop %v1346
    %v1348 = vmul.f32 1.0, %v1347
    %v1349 = vmul.f32 %v1341, %v1108
    %v1350 = vmul.f32 %v1335, %v1342
    %v1351 = vadd.f32 %v1349, %v1350
    %v1352 = vtanh.pop %v1351
    %v1353 = vmul.f32 %v1348, %v1352
    %s1354 = scalar_lea.vmem [#allocation3], 24
    %1355 = vst [vmem:[%s1354] sm:$0xff] %v1353
    %s1356 = smul.u32 4, 4
    %s1357 = smul.addr %s1356, 8
    %s1358 = scalar_lea.vmem [#allocation2], %s1357
    %v1359 = vld [vmem:[%s1358] sm:$0xff]
    %v1360 = vld [vmem:[%s1358 + $0x8] sm:$0xff]
    %v1361 = vld [vmem:[%s1358 + $0x10] sm:$0xff]
    %v1362 = vld [vmem:[%s1358 + $0x18] sm:$0xff]
    %v1363 = vld [vmem:[#allocation4] sm:$0xff]
    %v1364 = vld [vmem:[#allocation4 + $0x8] sm:$0xff]
    %v1365 = vld [vmem:[#allocation4 + $0x10] sm:$0xff]
    %v1366 = vld [vmem:[#allocation4 + $0x18] sm:$0xff]
    %v1367 = vld [vmem:[#allocation4 + $0x20] sm:$0xff]
    %v1368 = vld [vmem:[#allocation4 + $0x28] sm:$0xff]
    %v1369 = vld [vmem:[#allocation4 + $0x30] sm:$0xff]
    %v1370 = vld [vmem:[#allocation4 + $0x38] sm:$0xff]
    %v1371 = vld [vmem:[#allocation4 + $0x40] sm:$0xff]
    %v1372 = vld [vmem:[#allocation4 + $0x48] sm:$0xff]
    %v1373 = vld [vmem:[#allocation4 + $0x50] sm:$0xff]
    %v1374 = vld [vmem:[#allocation4 + $0x58] sm:$0xff]
    %v1375 = vld [vmem:[#allocation4 + $0x60] sm:$0xff]
    %v1376 = vld [vmem:[#allocation4 + $0x68] sm:$0xff]
    %v1377 = vld [vmem:[#allocation4 + $0x70] sm:$0xff]
    %v1378 = vld [vmem:[#allocation4 + $0x78] sm:$0xff]
    %v1379 = vld [vmem:[#allocation4 + $0x80] sm:$0xff]
    %v1380 = vld [vmem:[#allocation4 + $0x88] sm:$0xff]
    %v1381 = vld [vmem:[#allocation4 + $0x90] sm:$0xff]
    %v1382 = vld [vmem:[#allocation4 + $0x98] sm:$0xff]
    %v1383 = vld [vmem:[#allocation4 + $0xa0] sm:$0xff]
    %v1384 = vld [vmem:[#allocation4 + $0xa8] sm:$0xff]
    %v1385 = vld [vmem:[#allocation4 + $0xb0] sm:$0xff]
    %v1386 = vld [vmem:[#allocation4 + $0xb8] sm:$0xff]
    %v1387 = vld [vmem:[#allocation4 + $0xc0] sm:$0xff]
    %v1388 = vld [vmem:[#allocation4 + $0xc8] sm:$0xff]
    %v1389 = vld [vmem:[#allocation4 + $0xd0] sm:$0xff]
    %v1390 = vld [vmem:[#allocation4 + $0xd8] sm:$0xff]
    %v1391 = vld [vmem:[#allocation4 + $0xe0] sm:$0xff]
    %v1392 = vld [vmem:[#allocation4 + $0xe8] sm:$0xff]
    %v1393 = vld [vmem:[#allocation4 + $0xf0] sm:$0xff]
    %v1394 = vld [vmem:[#allocation4 + $0xf8] sm:$0xff]
    %v1395 = vld [vmem:[#allocation4 + $0x100] sm:$0xff]
    %v1396 = vld [vmem:[#allocation4 + $0x108] sm:$0xff]
    %v1397 = vld [vmem:[#allocation4 + $0x110] sm:$0xff]
    %v1398 = vld [vmem:[#allocation4 + $0x118] sm:$0xff]
    %v1399 = vld [vmem:[#allocation4 + $0x120] sm:$0xff]
    %v1400 = vld [vmem:[#allocation4 + $0x128] sm:$0xff]
    %v1401 = vld [vmem:[#allocation4 + $0x130] sm:$0xff]
    %v1402 = vld [vmem:[#allocation4 + $0x138] sm:$0xff]
    %v1403 = vld [vmem:[#allocation4 + $0x140] sm:$0xff]
    %v1404 = vld [vmem:[#allocation4 + $0x148] sm:$0xff]
    %v1405 = vld [vmem:[#allocation4 + $0x150] sm:$0xff]
    %v1406 = vld [vmem:[#allocation4 + $0x158] sm:$0xff]
    %v1407 = vld [vmem:[#allocation4 + $0x160] sm:$0xff]
    %v1408 = vld [vmem:[#allocation4 + $0x168] sm:$0xff]
    %v1409 = vld [vmem:[#allocation4 + $0x170] sm:$0xff]
    %v1410 = vld [vmem:[#allocation4 + $0x178] sm:$0xff]
    %v1411 = vld [vmem:[#allocation4 + $0x180] sm:$0xff]
    %v1412 = vld [vmem:[#allocation4 + $0x188] sm:$0xff]
    %v1413 = vld [vmem:[#allocation4 + $0x190] sm:$0xff]
    %v1414 = vld [vmem:[#allocation4 + $0x198] sm:$0xff]
    %v1415 = vld [vmem:[#allocation4 + $0x1a0] sm:$0xff]
    %v1416 = vld [vmem:[#allocation4 + $0x1a8] sm:$0xff]
    %v1417 = vld [vmem:[#allocation4 + $0x1b0] sm:$0xff]
    %v1418 = vld [vmem:[#allocation4 + $0x1b8] sm:$0xff]
    %v1419 = vld [vmem:[#allocation4 + $0x1c0] sm:$0xff]
    %v1420 = vld [vmem:[#allocation4 + $0x1c8] sm:$0xff]
    %v1421 = vld [vmem:[#allocation4 + $0x1d0] sm:$0xff]
    %v1422 = vld [vmem:[#allocation4 + $0x1d8] sm:$0xff]
    %v1423 = vld [vmem:[#allocation4 + $0x1e0] sm:$0xff]
    %v1424 = vld [vmem:[#allocation4 + $0x1e8] sm:$0xff]
    %v1425 = vld [vmem:[#allocation4 + $0x1f0] sm:$0xff]
    %v1426 = vld [vmem:[#allocation4 + $0x1f8] sm:$0xff]
    %1427 = vmatprep.subr.mxu0 %v1364
    %1428 = vmatpush1.msra.mxu0 %v1363
    %1429 = vmatprep.subr.mxu0 %v1368
    %1430 = vmatpush1.msra.mxu0 %v1367
    %1431 = vmatprep.subr.mxu0 %v1372
    %1432 = vmatpush1.msra.mxu0 %v1371
    %1433 = vmatprep.subr.mxu0 %v1376
    %1434 = vmatpush1.msra.mxu0 %v1375
    %1435 = vmatprep.subr.mxu0 %v1380
    %1436 = vmatpush1.msra.mxu0 %v1379
    %1437 = vmatprep.subr.mxu0 %v1384
    %1438 = vmatpush1.msra.mxu0 %v1383
    %1439 = vmatprep.subr.mxu0 %v1388
    %1440 = vmatpush1.msra.mxu0 %v1387
    %1441 = vmatprep.subr.mxu0 %v1392
    %1442 = vmatpush1.msra.mxu0 %v1391
    %1443 = vmatprep.subr.mxu0 %v1396
    %1444 = vmatpush1.msra.mxu0 %v1395
    %1445 = vmatprep.subr.mxu0 %v1400
    %1446 = vmatpush1.msra.mxu0 %v1399
    %1447 = vmatprep.subr.mxu0 %v1404
    %1448 = vmatpush1.msra.mxu0 %v1403
    %1449 = vmatprep.subr.mxu0 %v1408
    %1450 = vmatpush1.msra.mxu0 %v1407
    %1451 = vmatprep.subr.mxu0 %v1412
    %1452 = vmatpush1.msra.mxu0 %v1411
    %1453 = vmatprep.subr.mxu0 %v1416
    %1454 = vmatpush1.msra.mxu0 %v1415
    %1455 = vmatprep.subr.mxu0 %v1420
    %1456 = vmatpush1.msra.mxu0 %v1419
    %1457 = vmatprep.subr.mxu0 %v1424
    %1458 = vmatpush1.msra.mxu0 %v1423
    %1459 = vmatprep.subr.mxu0 0.0
    %1460 = vmatpush1.msra.mxu0 0.0
    %1461 = vmatprep.subr.mxu0 0.0
    %1462 = vmatpush1.msra.mxu0 0.0
    %1463 = vmatprep.subr.mxu0 0.0
    %1464 = vmatpush1.msra.mxu0 0.0
    %1465 = vmatprep.subr.mxu0 0.0
    %1466 = vmatpush1.msra.mxu0 0.0
    %1467 = vmatprep.subr.mxu0 0.0
    %1468 = vmatpush1.msra.mxu0 0.0
    %1469 = vmatprep.subr.mxu0 0.0
    %1470 = vmatpush1.msra.mxu0 0.0
    %1471 = vmatprep.subr.mxu0 0.0
    %1472 = vmatpush1.msra.mxu0 0.0
    %1473 = vmatprep.subr.mxu0 0.0
    %1474 = vmatpush1.msra.mxu0 0.0
    %1475 = vmatprep.subr.mxu0 0.0
    %1476 = vmatpush1.msra.mxu0 0.0
    %1477 = vmatprep.subr.mxu0 0.0
    %1478 = vmatpush1.msra.mxu0 0.0
    %1479 = vmatprep.subr.mxu0 0.0
    %1480 = vmatpush1.msra.mxu0 0.0
    %1481 = vmatprep.subr.mxu0 0.0
    %1482 = vmatpush1.msra.mxu0 0.0
    %1483 = vmatprep.subr.mxu0 0.0
    %1484 = vmatpush1.msra.mxu0 0.0
    %1485 = vmatprep.subr.mxu0 0.0
    %1486 = vmatpush1.msra.mxu0 0.0
    %1487 = vmatprep.subr.mxu0 0.0
    %1488 = vmatpush1.msra.mxu0 0.0
    %1489 = vmatprep.subr.mxu0 0.0
    %1490 = vmatpush1.msra.mxu0 0.0
    %1491 = vmatprep.mubr.f32.mxu0 0.0
    %1492 = vmatmul.mubr.f32.gmra.mrb[0].mxu0 %v1353
    %v1493 = vpop.f32.mrb[0].mxu0
    %v1494 = vadd.f32 0.0, %v1493
    %v1495 = vpop.f32.mrb[0].mxu0
    %v1496 = vadd.f32 0.0, %v1495
    %1497 = vdwg.mxu0
    %1498 = vmatprep.subr.mxu0 %v1366
    %1499 = vmatpush1.msra.mxu0 %v1365
    %1500 = vmatprep.subr.mxu0 %v1370
    %1501 = vmatpush1.msra.mxu0 %v1369
    %1502 = vmatprep.subr.mxu0 %v1374
    %1503 = vmatpush1.msra.mxu0 %v1373
    %1504 = vmatprep.subr.mxu0 %v1378
    %1505 = vmatpush1.msra.mxu0 %v1377
    %1506 = vmatprep.subr.mxu0 %v1382
    %1507 = vmatpush1.msra.mxu0 %v1381
    %1508 = vmatprep.subr.mxu0 %v1386
    %1509 = vmatpush1.msra.mxu0 %v1385
    %1510 = vmatprep.subr.mxu0 %v1390
    %1511 = vmatpush1.msra.mxu0 %v1389
    %1512 = vmatprep.subr.mxu0 %v1394
    %1513 = vmatpush1.msra.mxu0 %v1393
    %1514 = vmatprep.subr.mxu0 %v1398
    %1515 = vmatpush1.msra.mxu0 %v1397
    %1516 = vmatprep.subr.mxu0 %v1402
    %1517 = vmatpush1.msra.mxu0 %v1401
    %1518 = vmatprep.subr.mxu0 %v1406
    %1519 = vmatpush1.msra.mxu0 %v1405
    %1520 = vmatprep.subr.mxu0 %v1410
    %1521 = vmatpush1.msra.mxu0 %v1409
    %1522 = vmatprep.subr.mxu0 %v1414
    %1523 = vmatpush1.msra.mxu0 %v1413
    %1524 = vmatprep.subr.mxu0 %v1418
    %1525 = vmatpush1.msra.mxu0 %v1417
    %1526 = vmatprep.subr.mxu0 %v1422
    %1527 = vmatpush1.msra.mxu0 %v1421
    %1528 = vmatprep.subr.mxu0 %v1426
    %1529 = vmatpush1.msra.mxu0 %v1425
    %1530 = vmatprep.subr.mxu0 0.0
    %1531 = vmatpush1.msra.mxu0 0.0
    %1532 = vmatprep.subr.mxu0 0.0
    %1533 = vmatpush1.msra.mxu0 0.0
    %1534 = vmatprep.subr.mxu0 0.0
    %1535 = vmatpush1.msra.mxu0 0.0
    %1536 = vmatprep.subr.mxu0 0.0
    %1537 = vmatpush1.msra.mxu0 0.0
    %1538 = vmatprep.subr.mxu0 0.0
    %1539 = vmatpush1.msra.mxu0 0.0
    %1540 = vmatprep.subr.mxu0 0.0
    %1541 = vmatpush1.msra.mxu0 0.0
    %1542 = vmatprep.subr.mxu0 0.0
    %1543 = vmatpush1.msra.mxu0 0.0
    %1544 = vmatprep.subr.mxu0 0.0
    %1545 = vmatpush1.msra.mxu0 0.0
    %1546 = vmatprep.subr.mxu0 0.0
    %1547 = vmatpush1.msra.mxu0 0.0
    %1548 = vmatprep.subr.mxu0 0.0
    %1549 = vmatpush1.msra.mxu0 0.0
    %1550 = vmatprep.subr.mxu0 0.0
    %1551 = vmatpush1.msra.mxu0 0.0
    %1552 = vmatprep.subr.mxu0 0.0
    %1553 = vmatpush1.msra.mxu0 0.0
    %1554 = vmatprep.subr.mxu0 0.0
    %1555 = vmatpush1.msra.mxu0 0.0
    %1556 = vmatprep.subr.mxu0 0.0
    %1557 = vmatpush1.msra.mxu0 0.0
    %1558 = vmatprep.subr.mxu0 0.0
    %1559 = vmatpush1.msra.mxu0 0.0
    %1560 = vmatprep.subr.mxu0 0.0
    %1561 = vmatpush1.msra.mxu0 0.0
    %1562 = vmatprep.mubr.f32.mxu0 0.0
    %1563 = vmatmul.mubr.f32.gmra.mrb[0].mxu0 %v1353
    %v1564 = vpop.f32.mrb[0].mxu0
    %v1565 = vadd.f32 0.0, %v1564
    %v1566 = vpop.f32.mrb[0].mxu0
    %v1567 = vadd.f32 0.0, %v1566
    %1568 = vdwg.mxu0
    %v1569 = vadd.f32 %v1359, %v1494
    %v1570 = vadd.f32 %v1360, %v1496
    %v1571 = vadd.f32 %v1361, %v1565
    %v1572 = vadd.f32 %v1362, %v1567
    %v1573 = vxor.u32 %v1569, 2147483648
    %v1574 = vmul.f32 %v1573, 1.442695
    %v1575 = vpow.pop %v1574
    %v1576 = vadd.f32 %v1575, 1.0
    %v1577 = vrcp.pop %v1576
    %v1578 = vmul.f32 1.0, %v1577
    %v1579 = vxor.u32 %v1570, 2147483648
    %v1580 = vmul.f32 %v1579, 1.442695
    %v1581 = vpow.pop %v1580
    %v1582 = vadd.f32 %v1581, 1.0
    %v1583 = vrcp.pop %v1582
    %v1584 = vmul.f32 1.0, %v1583
    %v1585 = vtanh.pop %v1571
    %v1586 = vxor.u32 %v1572, 2147483648
    %v1587 = vmul.f32 %v1586, 1.442695
    %v1588 = vpow.pop %v1587
    %v1589 = vadd.f32 %v1588, 1.0
    %v1590 = vrcp.pop %v1589
    %v1591 = vmul.f32 1.0, %v1590
    %v1592 = vmul.f32 %v1584, %v1351
    %v1593 = vmul.f32 %v1578, %v1585
    %v1594 = vadd.f32 %v1592, %v1593
    %v1595 = vtanh.pop %v1594
    %v1596 = vmul.f32 %v1591, %v1595
    %s1597 = scalar_lea.vmem [#allocation3], 32
    %1598 = vst [vmem:[%s1597] sm:$0xff] %v1596
    %s1599 = smul.u32 5, 4
    %s1600 = smul.addr %s1599, 8
    %s1601 = scalar_lea.vmem [#allocation2], %s1600
    %v1602 = vld [vmem:[%s1601] sm:$0xff]
    %v1603 = vld [vmem:[%s1601 + $0x8] sm:$0xff]
    %v1604 = vld [vmem:[%s1601 + $0x10] sm:$0xff]
    %v1605 = vld [vmem:[%s1601 + $0x18] sm:$0xff]
    %v1606 = vld [vmem:[#allocation4] sm:$0xff]
    %v1607 = vld [vmem:[#allocation4 + $0x8] sm:$0xff]
    %v1608 = vld [vmem:[#allocation4 + $0x10] sm:$0xff]
    %v1609 = vld [vmem:[#allocation4 + $0x18] sm:$0xff]
    %v1610 = vld [vmem:[#allocation4 + $0x20] sm:$0xff]
    %v1611 = vld [vmem:[#allocation4 + $0x28] sm:$0xff]
    %v1612 = vld [vmem:[#allocation4 + $0x30] sm:$0xff]
    %v1613 = vld [vmem:[#allocation4 + $0x38] sm:$0xff]
    %v1614 = vld [vmem:[#allocation4 + $0x40] sm:$0xff]
    %v1615 = vld [vmem:[#allocation4 + $0x48] sm:$0xff]
    %v1616 = vld [vmem:[#allocation4 + $0x50] sm:$0xff]
    %v1617 = vld [vmem:[#allocation4 + $0x58] sm:$0xff]
    %v1618 = vld [vmem:[#allocation4 + $0x60] sm:$0xff]
    %v1619 = vld [vmem:[#allocation4 + $0x68] sm:$0xff]
    %v1620 = vld [vmem:[#allocation4 + $0x70] sm:$0xff]
    %v1621 = vld [vmem:[#allocation4 + $0x78] sm:$0xff]
    %v1622 = vld [vmem:[#allocation4 + $0x80] sm:$0xff]
    %v1623 = vld [vmem:[#allocation4 + $0x88] sm:$0xff]
    %v1624 = vld [vmem:[#allocation4 + $0x90] sm:$0xff]
    %v1625 = vld [vmem:[#allocation4 + $0x98] sm:$0xff]
    %v1626 = vld [vmem:[#allocation4 + $0xa0] sm:$0xff]
    %v1627 = vld [vmem:[#allocation4 + $0xa8] sm:$0xff]
    %v1628 = vld [vmem:[#allocation4 + $0xb0] sm:$0xff]
    %v1629 = vld [vmem:[#allocation4 + $0xb8] sm:$0xff]
    %v1630 = vld [vmem:[#allocation4 + $0xc0] sm:$0xff]
    %v1631 = vld [vmem:[#allocation4 + $0xc8] sm:$0xff]
    %v1632 = vld [vmem:[#allocation4 + $0xd0] sm:$0xff]
    %v1633 = vld [vmem:[#allocation4 + $0xd8] sm:$0xff]
    %v1634 = vld [vmem:[#allocation4 + $0xe0] sm:$0xff]
    %v1635 = vld [vmem:[#allocation4 + $0xe8] sm:$0xff]
    %v1636 = vld [vmem:[#allocation4 + $0xf0] sm:$0xff]
    %v1637 = vld [vmem:[#allocation4 + $0xf8] sm:$0xff]
    %v1638 = vld [vmem:[#allocation4 + $0x100] sm:$0xff]
    %v1639 = vld [vmem:[#allocation4 + $0x108] sm:$0xff]
    %v1640 = vld [vmem:[#allocation4 + $0x110] sm:$0xff]
    %v1641 = vld [vmem:[#allocation4 + $0x118] sm:$0xff]
    %v1642 = vld [vmem:[#allocation4 + $0x120] sm:$0xff]
    %v1643 = vld [vmem:[#allocation4 + $0x128] sm:$0xff]
    %v1644 = vld [vmem:[#allocation4 + $0x130] sm:$0xff]
    %v1645 = vld [vmem:[#allocation4 + $0x138] sm:$0xff]
    %v1646 = vld [vmem:[#allocation4 + $0x140] sm:$0xff]
    %v1647 = vld [vmem:[#allocation4 + $0x148] sm:$0xff]
    %v1648 = vld [vmem:[#allocation4 + $0x150] sm:$0xff]
    %v1649 = vld [vmem:[#allocation4 + $0x158] sm:$0xff]
    %v1650 = vld [vmem:[#allocation4 + $0x160] sm:$0xff]
    %v1651 = vld [vmem:[#allocation4 + $0x168] sm:$0xff]
    %v1652 = vld [vmem:[#allocation4 + $0x170] sm:$0xff]
    %v1653 = vld [vmem:[#allocation4 + $0x178] sm:$0xff]
    %v1654 = vld [vmem:[#allocation4 + $0x180] sm:$0xff]
    %v1655 = vld [vmem:[#allocation4 + $0x188] sm:$0xff]
    %v1656 = vld [vmem:[#allocation4 + $0x190] sm:$0xff]
    %v1657 = vld [vmem:[#allocation4 + $0x198] sm:$0xff]
    %v1658 = vld [vmem:[#allocation4 + $0x1a0] sm:$0xff]
    %v1659 = vld [vmem:[#allocation4 + $0x1a8] sm:$0xff]
    %v1660 = vld [vmem:[#allocation4 + $0x1b0] sm:$0xff]
    %v1661 = vld [vmem:[#allocation4 + $0x1b8] sm:$0xff]
    %v1662 = vld [vmem:[#allocation4 + $0x1c0] sm:$0xff]
    %v1663 = vld [vmem:[#allocation4 + $0x1c8] sm:$0xff]
    %v1664 = vld [vmem:[#allocation4 + $0x1d0] sm:$0xff]
    %v1665 = vld [vmem:[#allocation4 + $0x1d8] sm:$0xff]
    %v1666 = vld [vmem:[#allocation4 + $0x1e0] sm:$0xff]
    %v1667 = vld [vmem:[#allocation4 + $0x1e8] sm:$0xff]
    %v1668 = vld [vmem:[#allocation4 + $0x1f0] sm:$0xff]
    %v1669 = vld [vmem:[#allocation4 + $0x1f8] sm:$0xff]
    %1670 = vmatprep.subr.mxu0 %v1607
    %1671 = vmatpush1.msra.mxu0 %v1606
    %1672 = vmatprep.subr.mxu0 %v1611
    %1673 = vmatpush1.msra.mxu0 %v1610
    %1674 = vmatprep.subr.mxu0 %v1615
    %1675 = vmatpush1.msra.mxu0 %v1614
    %1676 = vmatprep.subr.mxu0 %v1619
    %1677 = vmatpush1.msra.mxu0 %v1618
    %1678 = vmatprep.subr.mxu0 %v1623
    %1679 = vmatpush1.msra.mxu0 %v1622
    %1680 = vmatprep.subr.mxu0 %v1627
    %1681 = vmatpush1.msra.mxu0 %v1626
    %1682 = vmatprep.subr.mxu0 %v1631
    %1683 = vmatpush1.msra.mxu0 %v1630
    %1684 = vmatprep.subr.mxu0 %v1635
    %1685 = vmatpush1.msra.mxu0 %v1634
    %1686 = vmatprep.subr.mxu0 %v1639
    %1687 = vmatpush1.msra.mxu0 %v1638
    %1688 = vmatprep.subr.mxu0 %v1643
    %1689 = vmatpush1.msra.mxu0 %v1642
    %1690 = vmatprep.subr.mxu0 %v1647
    %1691 = vmatpush1.msra.mxu0 %v1646
    %1692 = vmatprep.subr.mxu0 %v1651
    %1693 = vmatpush1.msra.mxu0 %v1650
    %1694 = vmatprep.subr.mxu0 %v1655
    %1695 = vmatpush1.msra.mxu0 %v1654
    %1696 = vmatprep.subr.mxu0 %v1659
    %1697 = vmatpush1.msra.mxu0 %v1658
    %1698 = vmatprep.subr.mxu0 %v1663
    %1699 = vmatpush1.msra.mxu0 %v1662
    %1700 = vmatprep.subr.mxu0 %v1667
    %1701 = vmatpush1.msra.mxu0 %v1666
    %1702 = vmatprep.subr.mxu0 0.0
    %1703 = vmatpush1.msra.mxu0 0.0
    %1704 = vmatprep.subr.mxu0 0.0
    %1705 = vmatpush1.msra.mxu0 0.0
    %1706 = vmatprep.subr.mxu0 0.0
    %1707 = vmatpush1.msra.mxu0 0.0
    %1708 = vmatprep.subr.mxu0 0.0
    %1709 = vmatpush1.msra.mxu0 0.0
    %1710 = vmatprep.subr.mxu0 0.0
    %1711 = vmatpush1.msra.mxu0 0.0
    %1712 = vmatprep.subr.mxu0 0.0
    %1713 = vmatpush1.msra.mxu0 0.0
    %1714 = vmatprep.subr.mxu0 0.0
    %1715 = vmatpush1.msra.mxu0 0.0
    %1716 = vmatprep.subr.mxu0 0.0
    %1717 = vmatpush1.msra.mxu0 0.0
    %1718 = vmatprep.subr.mxu0 0.0
    %1719 = vmatpush1.msra.mxu0 0.0
    %1720 = vmatprep.subr.mxu0 0.0
    %1721 = vmatpush1.msra.mxu0 0.0
    %1722 = vmatprep.subr.mxu0 0.0
    %1723 = vmatpush1.msra.mxu0 0.0
    %1724 = vmatprep.subr.mxu0 0.0
    %1725 = vmatpush1.msra.mxu0 0.0
    %1726 = vmatprep.subr.mxu0 0.0
    %1727 = vmatpush1.msra.mxu0 0.0
    %1728 = vmatprep.subr.mxu0 0.0
    %1729 = vmatpush1.msra.mxu0 0.0
    %1730 = vmatprep.subr.mxu0 0.0
    %1731 = vmatpush1.msra.mxu0 0.0
    %1732 = vmatprep.subr.mxu0 0.0
    %1733 = vmatpush1.msra.mxu0 0.0
    %1734 = vmatprep.mubr.f32.mxu0 0.0
    %1735 = vmatmul.mubr.f32.gmra.mrb[0].mxu0 %v1596
    %v1736 = vpop.f32.mrb[0].mxu0
    %v1737 = vadd.f32 0.0, %v1736
    %v1738 = vpop.f32.mrb[0].mxu0
    %v1739 = vadd.f32 0.0, %v1738
    %1740 = vdwg.mxu0
    %1741 = vmatprep.subr.mxu0 %v1609
    %1742 = vmatpush1.msra.mxu0 %v1608
    %1743 = vmatprep.subr.mxu0 %v1613
    %1744 = vmatpush1.msra.mxu0 %v1612
    %1745 = vmatprep.subr.mxu0 %v1617
    %1746 = vmatpush1.msra.mxu0 %v1616
    %1747 = vmatprep.subr.mxu0 %v1621
    %1748 = vmatpush1.msra.mxu0 %v1620
    %1749 = vmatprep.subr.mxu0 %v1625
    %1750 = vmatpush1.msra.mxu0 %v1624
    %1751 = vmatprep.subr.mxu0 %v1629
    %1752 = vmatpush1.msra.mxu0 %v1628
    %1753 = vmatprep.subr.mxu0 %v1633
    %1754 = vmatpush1.msra.mxu0 %v1632
    %1755 = vmatprep.subr.mxu0 %v1637
    %1756 = vmatpush1.msra.mxu0 %v1636
    %1757 = vmatprep.subr.mxu0 %v1641
    %1758 = vmatpush1.msra.mxu0 %v1640
    %1759 = vmatprep.subr.mxu0 %v1645
    %1760 = vmatpush1.msra.mxu0 %v1644
    %1761 = vmatprep.subr.mxu0 %v1649
    %1762 = vmatpush1.msra.mxu0 %v1648
    %1763 = vmatprep.subr.mxu0 %v1653
    %1764 = vmatpush1.msra.mxu0 %v1652
    %1765 = vmatprep.subr.mxu0 %v1657
    %1766 = vmatpush1.msra.mxu0 %v1656
    %1767 = vmatprep.subr.mxu0 %v1661
    %1768 = vmatpush1.msra.mxu0 %v1660
    %1769 = vmatprep.subr.mxu0 %v1665
    %1770 = vmatpush1.msra.mxu0 %v1664
    %1771 = vmatprep.subr.mxu0 %v1669
    %1772 = vmatpush1.msra.mxu0 %v1668
    %1773 = vmatprep.subr.mxu0 0.0
    %1774 = vmatpush1.msra.mxu0 0.0
    %1775 = vmatprep.subr.mxu0 0.0
    %1776 = vmatpush1.msra.mxu0 0.0
    %1777 = vmatprep.subr.mxu0 0.0
    %1778 = vmatpush1.msra.mxu0 0.0
    %1779 = vmatprep.subr.mxu0 0.0
    %1780 = vmatpush1.msra.mxu0 0.0
    %1781 = vmatprep.subr.mxu0 0.0
    %1782 = vmatpush1.msra.mxu0 0.0
    %1783 = vmatprep.subr.mxu0 0.0
    %1784 = vmatpush1.msra.mxu0 0.0
    %1785 = vmatprep.subr.mxu0 0.0
    %1786 = vmatpush1.msra.mxu0 0.0
    %1787 = vmatprep.subr.mxu0 0.0
    %1788 = vmatpush1.msra.mxu0 0.0
    %1789 = vmatprep.subr.mxu0 0.0
    %1790 = vmatpush1.msra.mxu0 0.0
    %1791 = vmatprep.subr.mxu0 0.0
    %1792 = vmatpush1.msra.mxu0 0.0
    %1793 = vmatprep.subr.mxu0 0.0
    %1794 = vmatpush1.msra.mxu0 0.0
    %1795 = vmatprep.subr.mxu0 0.0
    %1796 = vmatpush1.msra.mxu0 0.0
    %1797 = vmatprep.subr.mxu0 0.0
    %1798 = vmatpush1.msra.mxu0 0.0
    %1799 = vmatprep.subr.mxu0 0.0
    %1800 = vmatpush1.msra.mxu0 0.0
    %1801 = vmatprep.subr.mxu0 0.0
    %1802 = vmatpush1.msra.mxu0 0.0
    %1803 = vmatprep.subr.mxu0 0.0
    %1804 = vmatpush1.msra.mxu0 0.0
    %1805 = vmatprep.mubr.f32.mxu0 0.0
    %1806 = vmatmul.mubr.f32.gmra.mrb[0].mxu0 %v1596
    %v1807 = vpop.f32.mrb[0].mxu0
    %v1808 = vadd.f32 0.0, %v1807
    %v1809 = vpop.f32.mrb[0].mxu0
    %v1810 = vadd.f32 0.0, %v1809
    %1811 = vdwg.mxu0
    %v1812 = vadd.f32 %v1602, %v1737
    %v1813 = vadd.f32 %v1603, %v1739
    %v1814 = vadd.f32 %v1604, %v1808
    %v1815 = vadd.f32 %v1605, %v1810
    %v1816 = vxor.u32 %v1812, 2147483648
    %v1817 = vmul.f32 %v1816, 1.442695
    %v1818 = vpow.pop %v1817
    %v1819 = vadd.f32 %v1818, 1.0
    %v1820 = vrcp.pop %v1819
    %v1821 = vmul.f32 1.0, %v1820
    %v1822 = vxor.u32 %v1813, 2147483648
    %v1823 = vmul.f32 %v1822, 1.442695
    %v1824 = vpow.pop %v1823
    %v1825 = vadd.f32 %v1824, 1.0
    %v1826 = vrcp.pop %v1825
    %v1827 = vmul.f32 1.0, %v1826
    %v1828 = vtanh.pop %v1814
    %v1829 = vxor.u32 %v1815, 2147483648
    %v1830 = vmul.f32 %v1829, 1.442695
    %v1831 = vpow.pop %v1830
    %v1832 = vadd.f32 %v1831, 1.0
    %v1833 = vrcp.pop %v1832
    %v1834 = vmul.f32 1.0, %v1833
    %v1835 = vmul.f32 %v1827, %v1594
    %v1836 = vmul.f32 %v1821, %v1828
    %v1837 = vadd.f32 %v1835, %v1836
    %v1838 = vtanh.pop %v1837
    %v1839 = vmul.f32 %v1834, %v1838
    %s1840 = scalar_lea.vmem [#allocation3], 40
    %1841 = vst [vmem:[%s1840] sm:$0xff] %v1839
    %s1842 = smul.u32 6, 4
    %s1843 = smul.addr %s1842, 8
    %s1844 = scalar_lea.vmem [#allocation2], %s1843
    %v1845 = vld [vmem:[%s1844] sm:$0xff]
    %v1846 = vld [vmem:[%s1844 + $0x8] sm:$0xff]
    %v1847 = vld [vmem:[%s1844 + $0x10] sm:$0xff]
    %v1848 = vld [vmem:[%s1844 + $0x18] sm:$0xff]
    %v1849 = vld [vmem:[#allocation4] sm:$0xff]
    %v1850 = vld [vmem:[#allocation4 + $0x8] sm:$0xff]
    %v1851 = vld [vmem:[#allocation4 + $0x10] sm:$0xff]
    %v1852 = vld [vmem:[#allocation4 + $0x18] sm:$0xff]
    %v1853 = vld [vmem:[#allocation4 + $0x20] sm:$0xff]
    %v1854 = vld [vmem:[#allocation4 + $0x28] sm:$0xff]
    %v1855 = vld [vmem:[#allocation4 + $0x30] sm:$0xff]
    %v1856 = vld [vmem:[#allocation4 + $0x38] sm:$0xff]
    %v1857 = vld [vmem:[#allocation4 + $0x40] sm:$0xff]
    %v1858 = vld [vmem:[#allocation4 + $0x48] sm:$0xff]
    %v1859 = vld [vmem:[#allocation4 + $0x50] sm:$0xff]
    %v1860 = vld [vmem:[#allocation4 + $0x58] sm:$0xff]
    %v1861 = vld [vmem:[#allocation4 + $0x60] sm:$0xff]
    %v1862 = vld [vmem:[#allocation4 + $0x68] sm:$0xff]
    %v1863 = vld [vmem:[#allocation4 + $0x70] sm:$0xff]
    %v1864 = vld [vmem:[#allocation4 + $0x78] sm:$0xff]
    %v1865 = vld [vmem:[#allocation4 + $0x80] sm:$0xff]
    %v1866 = vld [vmem:[#allocation4 + $0x88] sm:$0xff]
    %v1867 = vld [vmem:[#allocation4 + $0x90] sm:$0xff]
    %v1868 = vld [vmem:[#allocation4 + $0x98] sm:$0xff]
    %v1869 = vld [vmem:[#allocation4 + $0xa0] sm:$0xff]
    %v1870 = vld [vmem:[#allocation4 + $0xa8] sm:$0xff]
    %v1871 = vld [vmem:[#allocation4 + $0xb0] sm:$0xff]
    %v1872 = vld [vmem:[#allocation4 + $0xb8] sm:$0xff]
    %v1873 = vld [vmem:[#allocation4 + $0xc0] sm:$0xff]
    %v1874 = vld [vmem:[#allocation4 + $0xc8] sm:$0xff]
    %v1875 = vld [vmem:[#allocation4 + $0xd0] sm:$0xff]
    %v1876 = vld [vmem:[#allocation4 + $0xd8] sm:$0xff]
    %v1877 = vld [vmem:[#allocation4 + $0xe0] sm:$0xff]
    %v1878 = vld [vmem:[#allocation4 + $0xe8] sm:$0xff]
    %v1879 = vld [vmem:[#allocation4 + $0xf0] sm:$0xff]
    %v1880 = vld [vmem:[#allocation4 + $0xf8] sm:$0xff]
    %v1881 = vld [vmem:[#allocation4 + $0x100] sm:$0xff]
    %v1882 = vld [vmem:[#allocation4 + $0x108] sm:$0xff]
    %v1883 = vld [vmem:[#allocation4 + $0x110] sm:$0xff]
    %v1884 = vld [vmem:[#allocation4 + $0x118] sm:$0xff]
    %v1885 = vld [vmem:[#allocation4 + $0x120] sm:$0xff]
    %v1886 = vld [vmem:[#allocation4 + $0x128] sm:$0xff]
    %v1887 = vld [vmem:[#allocation4 + $0x130] sm:$0xff]
    %v1888 = vld [vmem:[#allocation4 + $0x138] sm:$0xff]
    %v1889 = vld [vmem:[#allocation4 + $0x140] sm:$0xff]
    %v1890 = vld [vmem:[#allocation4 + $0x148] sm:$0xff]
    %v1891 = vld [vmem:[#allocation4 + $0x150] sm:$0xff]
    %v1892 = vld [vmem:[#allocation4 + $0x158] sm:$0xff]
    %v1893 = vld [vmem:[#allocation4 + $0x160] sm:$0xff]
    %v1894 = vld [vmem:[#allocation4 + $0x168] sm:$0xff]
    %v1895 = vld [vmem:[#allocation4 + $0x170] sm:$0xff]
    %v1896 = vld [vmem:[#allocation4 + $0x178] sm:$0xff]
    %v1897 = vld [vmem:[#allocation4 + $0x180] sm:$0xff]
    %v1898 = vld [vmem:[#allocation4 + $0x188] sm:$0xff]
    %v1899 = vld [vmem:[#allocation4 + $0x190] sm:$0xff]
    %v1900 = vld [vmem:[#allocation4 + $0x198] sm:$0xff]
    %v1901 = vld [vmem:[#allocation4 + $0x1a0] sm:$0xff]
    %v1902 = vld [vmem:[#allocation4 + $0x1a8] sm:$0xff]
    %v1903 = vld [vmem:[#allocation4 + $0x1b0] sm:$0xff]
    %v1904 = vld [vmem:[#allocation4 + $0x1b8] sm:$0xff]
    %v1905 = vld [vmem:[#allocation4 + $0x1c0] sm:$0xff]
    %v1906 = vld [vmem:[#allocation4 + $0x1c8] sm:$0xff]
    %v1907 = vld [vmem:[#allocation4 + $0x1d0] sm:$0xff]
    %v1908 = vld [vmem:[#allocation4 + $0x1d8] sm:$0xff]
    %v1909 = vld [vmem:[#allocation4 + $0x1e0] sm:$0xff]
    %v1910 = vld [vmem:[#allocation4 + $0x1e8] sm:$0xff]
    %v1911 = vld [vmem:[#allocation4 + $0x1f0] sm:$0xff]
    %v1912 = vld [vmem:[#allocation4 + $0x1f8] sm:$0xff]
    %1913 = vmatprep.subr.mxu0 %v1850
    %1914 = vmatpush1.msra.mxu0 %v1849
    %1915 = vmatprep.subr.mxu0 %v1854
    %1916 = vmatpush1.msra.mxu0 %v1853
    %1917 = vmatprep.subr.mxu0 %v1858
    %1918 = vmatpush1.msra.mxu0 %v1857
    %1919 = vmatprep.subr.mxu0 %v1862
    %1920 = vmatpush1.msra.mxu0 %v1861
    %1921 = vmatprep.subr.mxu0 %v1866
    %1922 = vmatpush1.msra.mxu0 %v1865
    %1923 = vmatprep.subr.mxu0 %v1870
    %1924 = vmatpush1.msra.mxu0 %v1869
    %1925 = vmatprep.subr.mxu0 %v1874
    %1926 = vmatpush1.msra.mxu0 %v1873
    %1927 = vmatprep.subr.mxu0 %v1878
    %1928 = vmatpush1.msra.mxu0 %v1877
    %1929 = vmatprep.subr.mxu0 %v1882
    %1930 = vmatpush1.msra.mxu0 %v1881
    %1931 = vmatprep.subr.mxu0 %v1886
    %1932 = vmatpush1.msra.mxu0 %v1885
    %1933 = vmatprep.subr.mxu0 %v1890
    %1934 = vmatpush1.msra.mxu0 %v1889
    %1935 = vmatprep.subr.mxu0 %v1894
    %1936 = vmatpush1.msra.mxu0 %v1893
    %1937 = vmatprep.subr.mxu0 %v1898
    %1938 = vmatpush1.msra.mxu0 %v1897
    %1939 = vmatprep.subr.mxu0 %v1902
    %1940 = vmatpush1.msra.mxu0 %v1901
    %1941 = vmatprep.subr.mxu0 %v1906
    %1942 = vmatpush1.msra.mxu0 %v1905
    %1943 = vmatprep.subr.mxu0 %v1910
    %1944 = vmatpush1.msra.mxu0 %v1909
    %1945 = vmatprep.subr.mxu0 0.0
    %1946 = vmatpush1.msra.mxu0 0.0
    %1947 = vmatprep.subr.mxu0 0.0
    %1948 = vmatpush1.msra.mxu0 0.0
    %1949 = vmatprep.subr.mxu0 0.0
    %1950 = vmatpush1.msra.mxu0 0.0
    %1951 = vmatprep.subr.mxu0 0.0
    %1952 = vmatpush1.msra.mxu0 0.0
    %1953 = vmatprep.subr.mxu0 0.0
    %1954 = vmatpush1.msra.mxu0 0.0
    %1955 = vmatprep.subr.mxu0 0.0
    %1956 = vmatpush1.msra.mxu0 0.0
    %1957 = vmatprep.subr.mxu0 0.0
    %1958 = vmatpush1.msra.mxu0 0.0
    %1959 = vmatprep.subr.mxu0 0.0
    %1960 = vmatpush1.msra.mxu0 0.0
    %1961 = vmatprep.subr.mxu0 0.0
    %1962 = vmatpush1.msra.mxu0 0.0
    %1963 = vmatprep.subr.mxu0 0.0
    %1964 = vmatpush1.msra.mxu0 0.0
    %1965 = vmatprep.subr.mxu0 0.0
    %1966 = vmatpush1.msra.mxu0 0.0
    %1967 = vmatprep.subr.mxu0 0.0
    %1968 = vmatpush1.msra.mxu0 0.0
    %1969 = vmatprep.subr.mxu0 0.0
    %1970 = vmatpush1.msra.mxu0 0.0
    %1971 = vmatprep.subr.mxu0 0.0
    %1972 = vmatpush1.msra.mxu0 0.0
    %1973 = vmatprep.subr.mxu0 0.0
    %1974 = vmatpush1.msra.mxu0 0.0
    %1975 = vmatprep.subr.mxu0 0.0
    %1976 = vmatpush1.msra.mxu0 0.0
    %1977 = vmatprep.mubr.f32.mxu0 0.0
    %1978 = vmatmul.mubr.f32.gmra.mrb[0].mxu0 %v1839
    %v1979 = vpop.f32.mrb[0].mxu0
    %v1980 = vadd.f32 0.0, %v1979
    %v1981 = vpop.f32.mrb[0].mxu0
    %v1982 = vadd.f32 0.0, %v1981
    %1983 = vdwg.mxu0
    %1984 = vmatprep.subr.mxu0 %v1852
    %1985 = vmatpush1.msra.mxu0 %v1851
    %1986 = vmatprep.subr.mxu0 %v1856
    %1987 = vmatpush1.msra.mxu0 %v1855
    %1988 = vmatprep.subr.mxu0 %v1860
    %1989 = vmatpush1.msra.mxu0 %v1859
    %1990 = vmatprep.subr.mxu0 %v1864
    %1991 = vmatpush1.msra.mxu0 %v1863
    %1992 = vmatprep.subr.mxu0 %v1868
    %1993 = vmatpush1.msra.mxu0 %v1867
    %1994 = vmatprep.subr.mxu0 %v1872
    %1995 = vmatpush1.msra.mxu0 %v1871
    %1996 = vmatprep.subr.mxu0 %v1876
    %1997 = vmatpush1.msra.mxu0 %v1875
    %1998 = vmatprep.subr.mxu0 %v1880
    %1999 = vmatpush1.msra.mxu0 %v1879
    %2000 = vmatprep.subr.mxu0 %v1884
    %2001 = vmatpush1.msra.mxu0 %v1883
    %2002 = vmatprep.subr.mxu0 %v1888
    %2003 = vmatpush1.msra.mxu0 %v1887
    %2004 = vmatprep.subr.mxu0 %v1892
    %2005 = vmatpush1.msra.mxu0 %v1891
    %2006 = vmatprep.subr.mxu0 %v1896
    %2007 = vmatpush1.msra.mxu0 %v1895
    %2008 = vmatprep.subr.mxu0 %v1900
    %2009 = vmatpush1.msra.mxu0 %v1899
    %2010 = vmatprep.subr.mxu0 %v1904
    %2011 = vmatpush1.msra.mxu0 %v1903
    %2012 = vmatprep.subr.mxu0 %v1908
    %2013 = vmatpush1.msra.mxu0 %v1907
    %2014 = vmatprep.subr.mxu0 %v1912
    %2015 = vmatpush1.msra.mxu0 %v1911
    %2016 = vmatprep.subr.mxu0 0.0
    %2017 = vmatpush1.msra.mxu0 0.0
    %2018 = vmatprep.subr.mxu0 0.0
    %2019 = vmatpush1.msra.mxu0 0.0
    %2020 = vmatprep.subr.mxu0 0.0
    %2021 = vmatpush1.msra.mxu0 0.0
    %2022 = vmatprep.subr.mxu0 0.0
    %2023 = vmatpush1.msra.mxu0 0.0
    %2024 = vmatprep.subr.mxu0 0.0
    %2025 = vmatpush1.msra.mxu0 0.0
    %2026 = vmatprep.subr.mxu0 0.0
    %2027 = vmatpush1.msra.mxu0 0.0
    %2028 = vmatprep.subr.mxu0 0.0
    %2029 = vmatpush1.msra.mxu0 0.0
    %2030 = vmatprep.subr.mxu0 0.0
    %2031 = vmatpush1.msra.mxu0 0.0
    %2032 = vmatprep.subr.mxu0 0.0
    %2033 = vmatpush1.msra.mxu0 0.0
    %2034 = vmatprep.subr.mxu0 0.0
    %2035 = vmatpush1.msra.mxu0 0.0
    %2036 = vmatprep.subr.mxu0 0.0
    %2037 = vmatpush1.msra.mxu0 0.0
    %2038 = vmatprep.subr.mxu0 0.0
    %2039 = vmatpush1.msra.mxu0 0.0
    %2040 = vmatprep.subr.mxu0 0.0
    %2041 = vmatpush1.msra.mxu0 0.0
    %2042 = vmatprep.subr.mxu0 0.0
    %2043 = vmatpush1.msra.mxu0 0.0
    %2044 = vmatprep.subr.mxu0 0.0
    %2045 = vmatpush1.msra.mxu0 0.0
    %2046 = vmatprep.subr.mxu0 0.0
    %2047 = vmatpush1.msra.mxu0 0.0
    %2048 = vmatprep.mubr.f32.mxu0 0.0
    %2049 = vmatmul.mubr.f32.gmra.mrb[0].mxu0 %v1839
    %v2050 = vpop.f32.mrb[0].mxu0
    %v2051 = vadd.f32 0.0, %v2050
    %v2052 = vpop.f32.mrb[0].mxu0
    %v2053 = vadd.f32 0.0, %v2052
    %2054 = vdwg.mxu0
    %v2055 = vadd.f32 %v1845, %v1980
    %v2056 = vadd.f32 %v1846, %v1982
    %v2057 = vadd.f32 %v1847, %v2051
    %v2058 = vadd.f32 %v1848, %v2053
    %v2059 = vxor.u32 %v2055, 2147483648
    %v2060 = vmul.f32 %v2059, 1.442695
    %v2061 = vpow.pop %v2060
    %v2062 = vadd.f32 %v2061, 1.0
    %v2063 = vrcp.pop %v2062
    %v2064 = vmul.f32 1.0, %v2063
    %v2065 = vxor.u32 %v2056, 2147483648
    %v2066 = vmul.f32 %v2065, 1.442695
    %v2067 = vpow.pop %v2066
    %v2068 = vadd.f32 %v2067, 1.0
    %v2069 = vrcp.pop %v2068
    %v2070 = vmul.f32 1.0, %v2069
    %v2071 = vtanh.pop %v2057
    %v2072 = vxor.u32 %v2058, 2147483648
    %v2073 = vmul.f32 %v2072, 1.442695
    %v2074 = vpow.pop %v2073
    %v2075 = vadd.f32 %v2074, 1.0
    %v2076 = vrcp.pop %v2075
    %v2077 = vmul.f32 1.0, %v2076
    %v2078 = vmul.f32 %v2070, %v1837
    %v2079 = vmul.f32 %v2064, %v2071
    %v2080 = vadd.f32 %v2078, %v2079
    %v2081 = vtanh.pop %v2080
    %v2082 = vmul.f32 %v2077, %v2081
    %s2083 = scalar_lea.vmem [#allocation3], 48
    %2084 = vst [vmem:[%s2083] sm:$0xff] %v2082
    %s2085 = smul.u32 7, 4
    %s2086 = smul.addr %s2085, 8
    %s2087 = scalar_lea.vmem [#allocation2], %s2086
    %v2088 = vld [vmem:[%s2087] sm:$0xff]
    %v2089 = vld [vmem:[%s2087 + $0x8] sm:$0xff]
    %v2090 = vld [vmem:[%s2087 + $0x10] sm:$0xff]
    %v2091 = vld [vmem:[%s2087 + $0x18] sm:$0xff]
    %v2092 = vld [vmem:[#allocation4] sm:$0xff]
    %v2093 = vld [vmem:[#allocation4 + $0x8] sm:$0xff]
    %v2094 = vld [vmem:[#allocation4 + $0x10] sm:$0xff]
    %v2095 = vld [vmem:[#allocation4 + $0x18] sm:$0xff]
    %v2096 = vld [vmem:[#allocation4 + $0x20] sm:$0xff]
    %v2097 = vld [vmem:[#allocation4 + $0x28] sm:$0xff]
    %v2098 = vld [vmem:[#allocation4 + $0x30] sm:$0xff]
    %v2099 = vld [vmem:[#allocation4 + $0x38] sm:$0xff]
    %v2100 = vld [vmem:[#allocation4 + $0x40] sm:$0xff]
    %v2101 = vld [vmem:[#allocation4 + $0x48] sm:$0xff]
    %v2102 = vld [vmem:[#allocation4 + $0x50] sm:$0xff]
    %v2103 = vld [vmem:[#allocation4 + $0x58] sm:$0xff]
    %v2104 = vld [vmem:[#allocation4 + $0x60] sm:$0xff]
    %v2105 = vld [vmem:[#allocation4 + $0x68] sm:$0xff]
    %v2106 = vld [vmem:[#allocation4 + $0x70] sm:$0xff]
    %v2107 = vld [vmem:[#allocation4 + $0x78] sm:$0xff]
    %v2108 = vld [vmem:[#allocation4 + $0x80] sm:$0xff]
    %v2109 = vld [vmem:[#allocation4 + $0x88] sm:$0xff]
    %v2110 = vld [vmem:[#allocation4 + $0x90] sm:$0xff]
    %v2111 = vld [vmem:[#allocation4 + $0x98] sm:$0xff]
    %v2112 = vld [vmem:[#allocation4 + $0xa0] sm:$0xff]
    %v2113 = vld [vmem:[#allocation4 + $0xa8] sm:$0xff]
    %v2114 = vld [vmem:[#allocation4 + $0xb0] sm:$0xff]
    %v2115 = vld [vmem:[#allocation4 + $0xb8] sm:$0xff]
    %v2116 = vld [vmem:[#allocation4 + $0xc0] sm:$0xff]
    %v2117 = vld [vmem:[#allocation4 + $0xc8] sm:$0xff]
    %v2118 = vld [vmem:[#allocation4 + $0xd0] sm:$0xff]
    %v2119 = vld [vmem:[#allocation4 + $0xd8] sm:$0xff]
    %v2120 = vld [vmem:[#allocation4 + $0xe0] sm:$0xff]
    %v2121 = vld [vmem:[#allocation4 + $0xe8] sm:$0xff]
    %v2122 = vld [vmem:[#allocation4 + $0xf0] sm:$0xff]
    %v2123 = vld [vmem:[#allocation4 + $0xf8] sm:$0xff]
    %v2124 = vld [vmem:[#allocation4 + $0x100] sm:$0xff]
    %v2125 = vld [vmem:[#allocation4 + $0x108] sm:$0xff]
    %v2126 = vld [vmem:[#allocation4 + $0x110] sm:$0xff]
    %v2127 = vld [vmem:[#allocation4 + $0x118] sm:$0xff]
    %v2128 = vld [vmem:[#allocation4 + $0x120] sm:$0xff]
    %v2129 = vld [vmem:[#allocation4 + $0x128] sm:$0xff]
    %v2130 = vld [vmem:[#allocation4 + $0x130] sm:$0xff]
    %v2131 = vld [vmem:[#allocation4 + $0x138] sm:$0xff]
    %v2132 = vld [vmem:[#allocation4 + $0x140] sm:$0xff]
    %v2133 = vld [vmem:[#allocation4 + $0x148] sm:$0xff]
    %v2134 = vld [vmem:[#allocation4 + $0x150] sm:$0xff]
    %v2135 = vld [vmem:[#allocation4 + $0x158] sm:$0xff]
    %v2136 = vld [vmem:[#allocation4 + $0x160] sm:$0xff]
    %v2137 = vld [vmem:[#allocation4 + $0x168] sm:$0xff]
    %v2138 = vld [vmem:[#allocation4 + $0x170] sm:$0xff]
    %v2139 = vld [vmem:[#allocation4 + $0x178] sm:$0xff]
    %v2140 = vld [vmem:[#allocation4 + $0x180] sm:$0xff]
    %v2141 = vld [vmem:[#allocation4 + $0x188] sm:$0xff]
    %v2142 = vld [vmem:[#allocation4 + $0x190] sm:$0xff]
    %v2143 = vld [vmem:[#allocation4 + $0x198] sm:$0xff]
    %v2144 = vld [vmem:[#allocation4 + $0x1a0] sm:$0xff]
    %v2145 = vld [vmem:[#allocation4 + $0x1a8] sm:$0xff]
    %v2146 = vld [vmem:[#allocation4 + $0x1b0] sm:$0xff]
    %v2147 = vld [vmem:[#allocation4 + $0x1b8] sm:$0xff]
    %v2148 = vld [vmem:[#allocation4 + $0x1c0] sm:$0xff]
    %v2149 = vld [vmem:[#allocation4 + $0x1c8] sm:$0xff]
    %v2150 = vld [vmem:[#allocation4 + $0x1d0] sm:$0xff]
    %v2151 = vld [vmem:[#allocation4 + $0x1d8] sm:$0xff]
    %v2152 = vld [vmem:[#allocation4 + $0x1e0] sm:$0xff]
    %v2153 = vld [vmem:[#allocation4 + $0x1e8] sm:$0xff]
    %v2154 = vld [vmem:[#allocation4 + $0x1f0] sm:$0xff]
    %v2155 = vld [vmem:[#allocation4 + $0x1f8] sm:$0xff]
    %2156 = vmatprep.subr.mxu0 %v2093
    %2157 = vmatpush1.msra.mxu0 %v2092
    %2158 = vmatprep.subr.mxu0 %v2097
    %2159 = vmatpush1.msra.mxu0 %v2096
    %2160 = vmatprep.subr.mxu0 %v2101
    %2161 = vmatpush1.msra.mxu0 %v2100
    %2162 = vmatprep.subr.mxu0 %v2105
    %2163 = vmatpush1.msra.mxu0 %v2104
    %2164 = vmatprep.subr.mxu0 %v2109
    %2165 = vmatpush1.msra.mxu0 %v2108
    %2166 = vmatprep.subr.mxu0 %v2113
    %2167 = vmatpush1.msra.mxu0 %v2112
    %2168 = vmatprep.subr.mxu0 %v2117
    %2169 = vmatpush1.msra.mxu0 %v2116
    %2170 = vmatprep.subr.mxu0 %v2121
    %2171 = vmatpush1.msra.mxu0 %v2120
    %2172 = vmatprep.subr.mxu0 %v2125
    %2173 = vmatpush1.msra.mxu0 %v2124
    %2174 = vmatprep.subr.mxu0 %v2129
    %2175 = vmatpush1.msra.mxu0 %v2128
    %2176 = vmatprep.subr.mxu0 %v2133
    %2177 = vmatpush1.msra.mxu0 %v2132
    %2178 = vmatprep.subr.mxu0 %v2137
    %2179 = vmatpush1.msra.mxu0 %v2136
    %2180 = vmatprep.subr.mxu0 %v2141
    %2181 = vmatpush1.msra.mxu0 %v2140
    %2182 = vmatprep.subr.mxu0 %v2145
    %2183 = vmatpush1.msra.mxu0 %v2144
    %2184 = vmatprep.subr.mxu0 %v2149
    %2185 = vmatpush1.msra.mxu0 %v2148
    %2186 = vmatprep.subr.mxu0 %v2153
    %2187 = vmatpush1.msra.mxu0 %v2152
    %2188 = vmatprep.subr.mxu0 0.0
    %2189 = vmatpush1.msra.mxu0 0.0
    %2190 = vmatprep.subr.mxu0 0.0
    %2191 = vmatpush1.msra.mxu0 0.0
    %2192 = vmatprep.subr.mxu0 0.0
    %2193 = vmatpush1.msra.mxu0 0.0
    %2194 = vmatprep.subr.mxu0 0.0
    %2195 = vmatpush1.msra.mxu0 0.0
    %2196 = vmatprep.subr.mxu0 0.0
    %2197 = vmatpush1.msra.mxu0 0.0
    %2198 = vmatprep.subr.mxu0 0.0
    %2199 = vmatpush1.msra.mxu0 0.0
    %2200 = vmatprep.subr.mxu0 0.0
    %2201 = vmatpush1.msra.mxu0 0.0
    %2202 = vmatprep.subr.mxu0 0.0
    %2203 = vmatpush1.msra.mxu0 0.0
    %2204 = vmatprep.subr.mxu0 0.0
    %2205 = vmatpush1.msra.mxu0 0.0
    %2206 = vmatprep.subr.mxu0 0.0
    %2207 = vmatpush1.msra.mxu0 0.0
    %2208 = vmatprep.subr.mxu0 0.0
    %2209 = vmatpush1.msra.mxu0 0.0
    %2210 = vmatprep.subr.mxu0 0.0
    %2211 = vmatpush1.msra.mxu0 0.0
    %2212 = vmatprep.subr.mxu0 0.0
    %2213 = vmatpush1.msra.mxu0 0.0
    %2214 = vmatprep.subr.mxu0 0.0
    %2215 = vmatpush1.msra.mxu0 0.0
    %2216 = vmatprep.subr.mxu0 0.0
    %2217 = vmatpush1.msra.mxu0 0.0
    %2218 = vmatprep.subr.mxu0 0.0
    %2219 = vmatpush1.msra.mxu0 0.0
    %2220 = vmatprep.mubr.f32.mxu0 0.0
    %2221 = vmatmul.mubr.f32.gmra.mrb[0].mxu0 %v2082
    %v2222 = vpop.f32.mrb[0].mxu0
    %v2223 = vadd.f32 0.0, %v2222
    %v2224 = vpop.f32.mrb[0].mxu0
    %v2225 = vadd.f32 0.0, %v2224
    %2226 = vdwg.mxu0
    %2227 = vmatprep.subr.mxu0 %v2095
    %2228 = vmatpush1.msra.mxu0 %v2094
    %2229 = vmatprep.subr.mxu0 %v2099
    %2230 = vmatpush1.msra.mxu0 %v2098
    %2231 = vmatprep.subr.mxu0 %v2103
    %2232 = vmatpush1.msra.mxu0 %v2102
    %2233 = vmatprep.subr.mxu0 %v2107
    %2234 = vmatpush1.msra.mxu0 %v2106
    %2235 = vmatprep.subr.mxu0 %v2111
    %2236 = vmatpush1.msra.mxu0 %v2110
    %2237 = vmatprep.subr.mxu0 %v2115
    %2238 = vmatpush1.msra.mxu0 %v2114
    %2239 = vmatprep.subr.mxu0 %v2119
    %2240 = vmatpush1.msra.mxu0 %v2118
    %2241 = vmatprep.subr.mxu0 %v2123
    %2242 = vmatpush1.msra.mxu0 %v2122
    %2243 = vmatprep.subr.mxu0 %v2127
    %2244 = vmatpush1.msra.mxu0 %v2126
    %2245 = vmatprep.subr.mxu0 %v2131
    %2246 = vmatpush1.msra.mxu0 %v2130
    %2247 = vmatprep.subr.mxu0 %v2135
    %2248 = vmatpush1.msra.mxu0 %v2134
    %2249 = vmatprep.subr.mxu0 %v2139
    %2250 = vmatpush1.msra.mxu0 %v2138
    %2251 = vmatprep.subr.mxu0 %v2143
    %2252 = vmatpush1.msra.mxu0 %v2142
    %2253 = vmatprep.subr.mxu0 %v2147
    %2254 = vmatpush1.msra.mxu0 %v2146
    %2255 = vmatprep.subr.mxu0 %v2151
    %2256 = vmatpush1.msra.mxu0 %v2150
    %2257 = vmatprep.subr.mxu0 %v2155
    %2258 = vmatpush1.msra.mxu0 %v2154
    %2259 = vmatprep.subr.mxu0 0.0
    %2260 = vmatpush1.msra.mxu0 0.0
    %2261 = vmatprep.subr.mxu0 0.0
    %2262 = vmatpush1.msra.mxu0 0.0
    %2263 = vmatprep.subr.mxu0 0.0
    %2264 = vmatpush1.msra.mxu0 0.0
    %2265 = vmatprep.subr.mxu0 0.0
    %2266 = vmatpush1.msra.mxu0 0.0
    %2267 = vmatprep.subr.mxu0 0.0
    %2268 = vmatpush1.msra.mxu0 0.0
    %2269 = vmatprep.subr.mxu0 0.0
    %2270 = vmatpush1.msra.mxu0 0.0
    %2271 = vmatprep.subr.mxu0 0.0
    %2272 = vmatpush1.msra.mxu0 0.0
    %2273 = vmatprep.subr.mxu0 0.0
    %2274 = vmatpush1.msra.mxu0 0.0
    %2275 = vmatprep.subr.mxu0 0.0
    %2276 = vmatpush1.msra.mxu0 0.0
    %2277 = vmatprep.subr.mxu0 0.0
    %2278 = vmatpush1.msra.mxu0 0.0
    %2279 = vmatprep.subr.mxu0 0.0
    %2280 = vmatpush1.msra.mxu0 0.0
    %2281 = vmatprep.subr.mxu0 0.0
    %2282 = vmatpush1.msra.mxu0 0.0
    %2283 = vmatprep.subr.mxu0 0.0
    %2284 = vmatpush1.msra.mxu0 0.0
    %2285 = vmatprep.subr.mxu0 0.0
    %2286 = vmatpush1.msra.mxu0 0.0
    %2287 = vmatprep.subr.mxu0 0.0
    %2288 = vmatpush1.msra.mxu0 0.0
    %2289 = vmatprep.subr.mxu0 0.0
    %2290 = vmatpush1.msra.mxu0 0.0
    %2291 = vmatprep.mubr.f32.mxu0 0.0
    %2292 = vmatmul.mubr.f32.gmra.mrb[0].mxu0 %v2082
    %v2293 = vpop.f32.mrb[0].mxu0
    %v2294 = vadd.f32 0.0, %v2293
    %v2295 = vpop.f32.mrb[0].mxu0
    %v2296 = vadd.f32 0.0, %v2295
    %2297 = vdwg.mxu0
    %v2298 = vadd.f32 %v2088, %v2223
    %v2299 = vadd.f32 %v2089, %v2225
    %v2300 = vadd.f32 %v2090, %v2294
    %v2301 = vadd.f32 %v2091, %v2296
    %v2302 = vxor.u32 %v2298, 2147483648
    %v2303 = vmul.f32 %v2302, 1.442695
    %v2304 = vpow.pop %v2303
    %v2305 = vadd.f32 %v2304, 1.0
    %v2306 = vrcp.pop %v2305
    %v2307 = vmul.f32 1.0, %v2306
    %v2308 = vxor.u32 %v2299, 2147483648
    %v2309 = vmul.f32 %v2308, 1.442695
    %v2310 = vpow.pop %v2309
    %v2311 = vadd.f32 %v2310, 1.0
    %v2312 = vrcp.pop %v2311
    %v2313 = vmul.f32 1.0, %v2312
    %v2314 = vtanh.pop %v2300
    %v2315 = vxor.u32 %v2301, 2147483648
    %v2316 = vmul.f32 %v2315, 1.442695
    %v2317 = vpow.pop %v2316
    %v2318 = vadd.f32 %v2317, 1.0
    %v2319 = vrcp.pop %v2318
    %v2320 = vmul.f32 1.0, %v2319
    %v2321 = vmul.f32 %v2313, %v2080
    %v2322 = vmul.f32 %v2307, %v2314
    %v2323 = vadd.f32 %v2321, %v2322
    %v2324 = vtanh.pop %v2323
    %v2325 = vmul.f32 %v2320, %v2324
    %s2326 = scalar_lea.vmem [#allocation3], 56
    %2327 = vst [vmem:[%s2326] sm:$0xff] %v2325
    %2328 = vst [vmem:[#allocation10] sm:$0xff] %v2325
    %2329 = vst [vmem:[#allocation12] sm:$0xff] %v2323
    %v2330 = vld [vmem:[#allocation3] sm:$0xff]
    %v2331 = vld [vmem:[#allocation3 + $0x8] sm:$0xff]
    %v2332 = vld [vmem:[#allocation3 + $0x10] sm:$0xff]
    %v2333 = vld [vmem:[#allocation3 + $0x18] sm:$0xff]
    %v2334 = vld [vmem:[#allocation3 + $0x20] sm:$0xff]
    %v2335 = vld [vmem:[#allocation3 + $0x28] sm:$0xff]
    %v2336 = vld [vmem:[#allocation3 + $0x30] sm:$0xff]
    %v2337 = vld [vmem:[#allocation3 + $0x38] sm:$0xff]
    %v2338 = vld [vmem:[#allocation7] sm:$0xff]
    %v2339 = vld [vmem:[#allocation7 + $0x8] sm:$0xff]
    %v2340 = vld [vmem:[#allocation7 + $0x10] sm:$0xff]
    %v2341 = vld [vmem:[#allocation7 + $0x18] sm:$0xff]
    %v2342 = vld [vmem:[#allocation7 + $0x20] sm:$0xff]
    %v2343 = vld [vmem:[#allocation7 + $0x28] sm:$0xff]
    %v2344 = vld [vmem:[#allocation7 + $0x30] sm:$0xff]
    %v2345 = vld [vmem:[#allocation7 + $0x38] sm:$0xff]
    %v2346 = vld [vmem:[#allocation7 + $0x40] sm:$0xff]
    %v2347 = vld [vmem:[#allocation7 + $0x48] sm:$0xff]
    %v2348 = vld [vmem:[#allocation7 + $0x50] sm:$0xff]
    %v2349 = vld [vmem:[#allocation7 + $0x58] sm:$0xff]
    %v2350 = vld [vmem:[#allocation7 + $0x60] sm:$0xff]
    %v2351 = vld [vmem:[#allocation7 + $0x68] sm:$0xff]
    %v2352 = vld [vmem:[#allocation7 + $0x70] sm:$0xff]
    %v2353 = vld [vmem:[#allocation7 + $0x78] sm:$0xff]
    %v2354 = vld [vmem:[%s7] sm:$0x1]
    %v2356 = vlaneseq
    %v2357 = vshrl.u32 %v2356, 7
    %v2358 = vsub.s32 0, %v2357
    %v2359 = vrot.slane %v2354, %v2358
    %2361 = vmatprep.subr.mxu0 0.0
    %2362 = vmatpush1.msra.mxu0 %v2338
    %2363 = vmatprep.subr.mxu0 0.0
    %2364 = vmatpush1.msra.mxu0 %v2339
    %2365 = vmatprep.subr.mxu0 0.0
    %2366 = vmatpush1.msra.mxu0 %v2340
    %2367 = vmatprep.subr.mxu0 0.0
    %2368 = vmatpush1.msra.mxu0 %v2341
    %2369 = vmatprep.subr.mxu0 0.0
    %2370 = vmatpush1.msra.mxu0 %v2342
    %2371 = vmatprep.subr.mxu0 0.0
    %2372 = vmatpush1.msra.mxu0 %v2343
    %2373 = vmatprep.subr.mxu0 0.0
    %2374 = vmatpush1.msra.mxu0 %v2344
    %2375 = vmatprep.subr.mxu0 0.0
    %2376 = vmatpush1.msra.mxu0 %v2345
    %2377 = vmatprep.subr.mxu0 0.0
    %2378 = vmatpush1.msra.mxu0 %v2346
    %2379 = vmatprep.subr.mxu0 0.0
    %2380 = vmatpush1.msra.mxu0 %v2347
    %2381 = vmatprep.subr.mxu0 0.0
    %2382 = vmatpush1.msra.mxu0 %v2348
    %2383 = vmatprep.subr.mxu0 0.0
    %2384 = vmatpush1.msra.mxu0 %v2349
    %2385 = vmatprep.subr.mxu0 0.0
    %2386 = vmatpush1.msra.mxu0 %v2350
    %2387 = vmatprep.subr.mxu0 0.0
    %2388 = vmatpush1.msra.mxu0 %v2351
    %2389 = vmatprep.subr.mxu0 0.0
    %2390 = vmatpush1.msra.mxu0 %v2352
    %2391 = vmatprep.subr.mxu0 0.0
    %2392 = vmatpush1.msra.mxu0 %v2353
    %2393 = vmatprep.subr.mxu0 0.0
    %2394 = vmatpush1.msra.mxu0 0.0
    %2395 = vmatprep.subr.mxu0 0.0
    %2396 = vmatpush1.msra.mxu0 0.0
    %2397 = vmatprep.subr.mxu0 0.0
    %2398 = vmatpush1.msra.mxu0 0.0
    %2399 = vmatprep.subr.mxu0 0.0
    %2400 = vmatpush1.msra.mxu0 0.0
    %2401 = vmatprep.subr.mxu0 0.0
    %2402 = vmatpush1.msra.mxu0 0.0
    %2403 = vmatprep.subr.mxu0 0.0
    %2404 = vmatpush1.msra.mxu0 0.0
    %2405 = vmatprep.subr.mxu0 0.0
    %2406 = vmatpush1.msra.mxu0 0.0
    %2407 = vmatprep.subr.mxu0 0.0
    %2408 = vmatpush1.msra.mxu0 0.0
    %2409 = vmatprep.subr.mxu0 0.0
    %2410 = vmatpush1.msra.mxu0 0.0
    %2411 = vmatprep.subr.mxu0 0.0
    %2412 = vmatpush1.msra.mxu0 0.0
    %2413 = vmatprep.subr.mxu0 0.0
    %2414 = vmatpush1.msra.mxu0 0.0
    %2415 = vmatprep.subr.mxu0 0.0
    %2416 = vmatpush1.msra.mxu0 0.0
    %2417 = vmatprep.subr.mxu0 0.0
    %2418 = vmatpush1.msra.mxu0 0.0
    %2419 = vmatprep.subr.mxu0 0.0
    %2420 = vmatpush1.msra.mxu0 0.0
    %2421 = vmatprep.subr.mxu0 0.0
    %2422 = vmatpush1.msra.mxu0 0.0
    %2423 = vmatprep.subr.mxu0 0.0
    %2424 = vmatpush1.msra.mxu0 0.0
    %2425 = vmatprep.mubr.f32.mxu0 0.0
    %2426 = vmatmul.mubr.f32.gmra.mrb[0].mxu0 %v2330
    %v2427 = vpop.f32.mrb[0].mxu0
    %v2428 = vadd.f32 %v2359, %v2427
    %v2429 = vpop.f32.mrb[0].mxu0
    %2430 = vmatprep.mubr.f32.mxu0 0.0
    %2431 = vmatmul.mubr.f32.gmra.mrb[0].mxu0 %v2331
    %v2432 = vpop.f32.mrb[0].mxu0
    %v2433 = vadd.f32 %v2359, %v2432
    %v2434 = vpop.f32.mrb[0].mxu0
    %2435 = vmatprep.mubr.f32.mxu0 0.0
    %2436 = vmatmul.mubr.f32.gmra.mrb[0].mxu0 %v2332
    %v2437 = vpop.f32.mrb[0].mxu0
    %v2438 = vadd.f32 %v2359, %v2437
    %v2439 = vpop.f32.mrb[0].mxu0
    %2440 = vmatprep.mubr.f32.mxu0 0.0
    %2441 = vmatmul.mubr.f32.gmra.mrb[0].mxu0 %v2333
    %v2442 = vpop.f32.mrb[0].mxu0
    %v2443 = vadd.f32 %v2359, %v2442
    %v2444 = vpop.f32.mrb[0].mxu0
    %2445 = vmatprep.mubr.f32.mxu0 0.0
    %2446 = vmatmul.mubr.f32.gmra.mrb[0].mxu0 %v2334
    %v2447 = vpop.f32.mrb[0].mxu0
    %v2448 = vadd.f32 %v2359, %v2447
    %v2449 = vpop.f32.mrb[0].mxu0
    %2450 = vmatprep.mubr.f32.mxu0 0.0
    %2451 = vmatmul.mubr.f32.gmra.mrb[0].mxu0 %v2335
    %v2452 = vpop.f32.mrb[0].mxu0
    %v2453 = vadd.f32 %v2359, %v2452
    %v2454 = vpop.f32.mrb[0].mxu0
    %2455 = vmatprep.mubr.f32.mxu0 0.0
    %2456 = vmatmul.mubr.f32.gmra.mrb[0].mxu0 %v2336
    %v2457 = vpop.f32.mrb[0].mxu0
    %v2458 = vadd.f32 %v2359, %v2457
    %v2459 = vpop.f32.mrb[0].mxu0
    %2460 = vmatprep.mubr.f32.mxu0 0.0
    %2461 = vmatmul.mubr.f32.gmra.mrb[0].mxu0 %v2337
    %v2462 = vpop.f32.mrb[0].mxu0
    %v2463 = vadd.f32 %v2359, %v2462
    %v2464 = vpop.f32.mrb[0].mxu0
    %2465 = vdwg.mxu0
    %2466 = vst [vmem:[#allocation9] sm:$0xff] %v2428
    %2467 = vst [vmem:[#allocation9 + $0x8] sm:$0xff] %v2433
    %2468 = vst [vmem:[#allocation9 + $0x10] sm:$0xff] %v2438
    %2469 = vst [vmem:[#allocation9 + $0x18] sm:$0xff] %v2443
    %2470 = vst [vmem:[#allocation9 + $0x20] sm:$0xff] %v2448
    %2471 = vst [vmem:[#allocation9 + $0x28] sm:$0xff] %v2453
    %2472 = vst [vmem:[#allocation9 + $0x30] sm:$0xff] %v2458
    %2473 = vst [vmem:[#allocation9 + $0x38] sm:$0xff] %v2463
    // Predicated region
    $region42: #{tpu_custom_call.1} parent=1 // pred_check
      _
    $region43: #{tpu_custom_call.1} parent=1 // pred_check_branch
      %2475 = sbr.rel (0) target = $region45
    $region44: #{tpu_custom_call.1} parent=1 // pred_region
      %s2477 = ssub.s32 1024, 1024
      %2478 = vsyncadd [#allocation6], %s2477
      %s2479 = sshll.u32 [#allocation9], 4
      %s2480 = int_to_ptr.vmem [resolvable:$true] %s2479
      %2485 = dma.vmem_to_hbm [thread:$0]  %s2480, 1024, %s8, [#allocation6], 128, 128, 8
    $region45: #{tpu_custom_call.1} parent=1 // pred_fallthru
      _
    // Predicated region
    $region46: #{tpu_custom_call.1} parent=1 // pred_check
      _
    $region47: #{tpu_custom_call.1} parent=1 // pred_check_branch
      %2487 = sbr.rel (0) target = $region49
    $region48: #{tpu_custom_call.1} parent=1 // pred_region
      %s2489 = ssub.s32 128, 128
      %2490 = vsyncadd [#allocation11], %s2489
      %s2492 = sshll.u32 [#allocation10], 4
      %s2493 = int_to_ptr.vmem [resolvable:$true] %s2492
      %2495 = dma.vmem_to_hbm [thread:$0]  %s2493, 128, %s9, [#allocation11]
    $region49: #{tpu_custom_call.1} parent=1 // pred_fallthru
      _
    // Predicated region
    $region50: #{tpu_custom_call.1} parent=1 // pred_check
      _
    $region51: #{tpu_custom_call.1} parent=1 // pred_check_branch
      %2497 = sbr.rel (0) target = $region53
    $region52: #{tpu_custom_call.1} parent=1 // pred_region
      %s2499 = ssub.s32 128, 128
      %2500 = vsyncadd [#allocation11], %s2499
      %s2502 = sshll.u32 [#allocation12], 4
      %s2503 = int_to_ptr.vmem [resolvable:$true] %s2502
      %2505 = dma.vmem_to_hbm [thread:$0]  %s2503, 128, %s10, [#allocation11]
    $region53: #{tpu_custom_call.1} parent=1 // pred_fallthru
      _
    // Predicated region
    $region54: #{tpu_custom_call.1} parent=1 // pred_check
      _
    $region55: #{tpu_custom_call.1} parent=1 // pred_check_branch
      %2507 = sbr.rel (0) target = $region57
    $region56: #{tpu_custom_call.1} parent=1 // pred_region
      %2508 = dma.done [#allocation6], 1024
    $region57: #{tpu_custom_call.1} parent=1 // pred_fallthru
      _
    // Predicated region
    $region58: #{tpu_custom_call.1} parent=1 // pred_check
      _
    $region59: #{tpu_custom_call.1} parent=1 // pred_check_branch
      %2510 = sbr.rel (0) target = $region61
    $region60: #{tpu_custom_call.1} parent=1 // pred_region
      %2511 = dma.done [#allocation11], 128
    $region61: #{tpu_custom_call.1} parent=1 // pred_fallthru
      _
    // Predicated region
    $region62: #{tpu_custom_call.1} parent=1 // pred_check
      _
    $region63: #{tpu_custom_call.1} parent=1 // pred_check_branch
      %2513 = sbr.rel (0) target = $region65
    $region64: #{tpu_custom_call.1} parent=1 // pred_region
      %2514 = dma.done [#allocation11], 128
    $region65: #{tpu_custom_call.1} parent=1 // pred_fallthru
      _
    %2515 = vsyncpa [#allocation5], 1
    %2516 = vsyncpa [#allocation8], 1
    %2517 = vsyncpa [#allocation6], 1
    %2518 = vsyncpa [#allocation11], 1

</llo_original>
